<compile_context>
chip_gen: v7x
topology: tpu7x:2x2x1
jax: 0.10.0
libtpu: 0.0.40
codegen_flags: <defaults>
</compile_context>

<pallas_src>
import math
import functools

import jax
import jax.numpy as jnp
from jax.experimental import pallas as pl
from jax.experimental.pallas import tpu as pltpu


_VMEM_LIMIT = 48 * 1024 * 1024           # safe on v5e/v6e/v7x
_SQRT_HALF = 1.0 / math.sqrt(2.0)


def _pick_tile(dim, desired, align):
    """Largest tile <= desired that divides dim and is a multiple of align;
    falls back to the full dim (always legal for BlockSpecs)."""
    if dim <= desired:
        return dim
    t = (desired // align) * align
    while t >= align:
        if dim % t == 0:
            return t
        t -= align
    return dim


def _gelu_exact(y):
    # torch.nn.GELU() default (erf form)
    return 0.5 * y * (1.0 + jax.lax.erf(y * _SQRT_HALF))


def _layernorm_f32(x, gamma, beta, eps):
    mu = jnp.mean(x, axis=-1, keepdims=True)
    xc = x - mu
    var = jnp.mean(xc * xc, axis=-1, keepdims=True)
    return (xc * jax.lax.rsqrt(var + eps)) * gamma + beta


# ------------------- fused LN1 + c_attn + q/k/v LoRA kernel -------------------
# One row-tile grid axis.  LayerNorm once, one wide (C,3C) matmul, one merged
# (C,3r) LoRA-A matmul and one block-diagonal (3r,3C) LoRA-B matmul.

def _ln_qkv_lora_kernel(x_ref, g_ref, bt_ref, w_ref, b_ref, wa_ref, ba_ref,
                        bbd_ref, o_ref, *, eps):
    h = _layernorm_f32(x_ref[...], g_ref[...], bt_ref[...], eps)
    hb = h.astype(jnp.bfloat16)
    base = jnp.dot(hb, w_ref[...], preferred_element_type=jnp.float32) + b_ref[...]
    # merged LoRA:  q@A_q = h@(W_q A_q) + b_q A_q ;  block-diag B keeps q/k/v separate
    t = jnp.dot(hb, wa_ref[...], preferred_element_type=jnp.float32) + ba_ref[...]
    lora = jnp.dot(t.astype(jnp.bfloat16), bbd_ref[...],
                   preferred_element_type=jnp.float32)
    o_ref[...] = (base + lora).astype(o_ref.dtype)


def ln_qkv_lora(x2d, gamma, beta, w, b, wa, ba, bbd, *, eps=1e-5, tm_desired=512):
    M, C = x2d.shape
    C3 = w.shape[1]
    r3 = wa.shape[1]
    tm = _pick_tile(M, tm_desired, 8)
    kern = functools.partial(_ln_qkv_lora_kernel, eps=eps)
    return pl.pallas_call(
        kern,
        out_shape=jax.ShapeDtypeStruct((M, C3), jnp.bfloat16),
        grid_spec=pltpu.PrefetchScalarGridSpec(
            num_scalar_prefetch=0,
            grid=(M // tm,),
            in_specs=[
                pl.BlockSpec((tm, C), lambda i: (i, 0)),
                pl.BlockSpec((1, C), lambda i: (0, 0)),
                pl.BlockSpec((1, C), lambda i: (0, 0)),
                pl.BlockSpec((C, C3), lambda i: (0, 0)),
                pl.BlockSpec((1, C3), lambda i: (0, 0)),
                pl.BlockSpec((C, r3), lambda i: (0, 0)),
                pl.BlockSpec((1, r3), lambda i: (0, 0)),
                pl.BlockSpec((r3, C3), lambda i: (0, 0)),
            ],
            out_specs=pl.BlockSpec((tm, C3), lambda i: (i, 0)),
        ),
        compiler_params=pltpu.CompilerParams(
            dimension_semantics=("parallel",),
            vmem_limit_bytes=_VMEM_LIMIT),
    )(x2d, gamma.reshape(1, C), beta.reshape(1, C), w, b.reshape(1, C3),
      wa, ba.reshape(1, r3), bbd)


# --------- fused causal attention + c_proj + o-LoRA + residual kernel ---------
# grid = (B, T/tq).  K/V for the batch row stay resident across q tiles (their
# block index only depends on b, so they are not re-DMA'd).  Heads are sliced
# in-kernel and concatenated so the output store is one lane-dense (tq,C) tile.

def _attn_proj_res_kernel(q_ref, k_ref, v_ref, w_ref, b_ref, a_ref, bb_ref,
                          r_ref, o_ref, *, n_head, hd, scale, tq):
    T = k_ref.shape[1]
    q0 = pl.program_id(1) * tq
    row = q0 + jax.lax.broadcasted_iota(jnp.int32, (tq, T), 0)
    col = jax.lax.broadcasted_iota(jnp.int32, (tq, T), 1)
    causal = col <= row
    dn = (((1,), (1,)), ((), ()))          # contract last dims: q @ k^T on MXU
    heads = []
    for h in range(n_head):                # static head count; static slices
        lo = h * hd
        q = q_ref[0, :, lo:lo + hd]
        k = k_ref[0, :, lo:lo + hd]
        v = v_ref[0, :, lo:lo + hd]
        s = jax.lax.dot_general(q, k, dn,
                                preferred_element_type=jnp.float32) * scale
        s = jnp.where(causal, s, -1e30)
        m = jnp.max(s, axis=-1, keepdims=True)
        p = jnp.exp(s - m)
        l = jnp.sum(p, axis=-1, keepdims=True)
        p = p * pl.reciprocal(l, approx=True)
        heads.append(jnp.dot(p.astype(jnp.bfloat16), v,
                             preferred_element_type=jnp.float32))
    # concat heads -> lane-dense (tq, C) tile, stored once
    y = jnp.concatenate(heads, axis=-1).astype(jnp.bfloat16)
    base = jnp.dot(y, w_ref[...], preferred_element_type=jnp.float32) + b_ref[...]
    t = jnp.dot(y, a_ref[...], preferred_element_type=jnp.float32)
    lora = jnp.dot(t.astype(jnp.bfloat16), bb_ref[...],
                   preferred_element_type=jnp.float32)
    o_ref[0] = r_ref[0] + base + lora
    # TODO(synk): for very long sequences (T >= 2048) convert the per-head
    # softmax to a kv-tiled online-softmax (flash) loop with causal tile skip.


def attn_proj_residual(qkv3d, resid3d, w, b, oA, oB, n_head, *, tq_desired=128):
    B, T, C3 = qkv3d.shape
    C = C3 // 3
    hd = C // n_head
    r = oA.shape[1]
    tq = _pick_tile(T, tq_desired, 8)
    kern = functools.partial(_attn_proj_res_kernel, n_head=n_head, hd=hd,
                             scale=1.0 / math.sqrt(hd), tq=tq)
    return pl.pallas_call(
        kern,
        out_shape=jax.ShapeDtypeStruct((B, T, C), jnp.float32),
        grid_spec=pltpu.PrefetchScalarGridSpec(
            num_scalar_prefetch=0,
            grid=(B, T // tq),
            in_specs=[
                pl.BlockSpec((1, tq, C), lambda b, qi: (b, qi, 0)),   # Q tile
                pl.BlockSpec((1, T, C), lambda b, qi: (b, 0, 1)),     # all K
                pl.BlockSpec((1, T, C), lambda b, qi: (b, 0, 2)),     # all V
                pl.BlockSpec((C, C), lambda b, qi: (0, 0)),           # c_proj W
                pl.BlockSpec((1, C), lambda b, qi: (0, 0)),           # c_proj b
                pl.BlockSpec((C, r), lambda b, qi: (0, 0)),           # oLoRA A
                pl.BlockSpec((r, C), lambda b, qi: (0, 0)),           # oLoRA B
                pl.BlockSpec((1, tq, C), lambda b, qi: (b, qi, 0)),   # residual
            ],
            out_specs=pl.BlockSpec((1, tq, C), lambda b, qi: (b, qi, 0)),
        ),
        input_output_aliases={7: 0},       # residual stream aliased to output
        compiler_params=pltpu.CompilerParams(
            dimension_semantics=("parallel", "parallel"),
            vmem_limit_bytes=_VMEM_LIMIT),
    )(qkv3d, qkv3d, qkv3d, w, b.reshape(1, C), oA, oB, resid3d)


# ------------------ fused LayerNorm + Linear (+GELU) kernel -------------------
# LayerNorm is hoisted out of the N-tiling loop: computed once per row tile at
# j == 0 into a VMEM scratch and reused for every output column tile.

def _ln_linear_kernel(x_ref, g_ref, bt_ref, w_ref, b_ref, o_ref, h_ref, *,
                      eps, activation):
    @pl.when(pl.program_id(1) == 0)
    def _():
        h = _layernorm_f32(x_ref[...], g_ref[...], bt_ref[...], eps)
        h_ref[...] = h.astype(jnp.bfloat16)

    y = jnp.dot(h_ref[...], w_ref[...],
                preferred_element_type=jnp.float32) + b_ref[...]
    if activation == "gelu":
        y = _gelu_exact(y)
    o_ref[...] = y.astype(o_ref.dtype)


def ln_linear(x2d, gamma, beta, w, b, *, activation=None,
              out_dtype=jnp.bfloat16, eps=1e-5, tm_desired=512, tn_desired=1024):
    M, C = x2d.shape
    Cw, N = w.shape
    assert Cw == C
    tm = _pick_tile(M, tm_desired, 8)
    tn = _pick_tile(N, tn_desired, 128)
    kern = functools.partial(_ln_linear_kernel, eps=eps, activation=activation)
    return pl.pallas_call(
        kern,
        out_shape=jax.ShapeDtypeStruct((M, N), out_dtype),
        grid_spec=pltpu.PrefetchScalarGridSpec(
            num_scalar_prefetch=0,
            grid=(M // tm, N // tn),
            in_specs=[
                pl.BlockSpec((tm, C), lambda i, j: (i, 0)),
                pl.BlockSpec((1, C), lambda i, j: (0, 0)),
                pl.BlockSpec((1, C), lambda i, j: (0, 0)),
                pl.BlockSpec((C, tn), lambda i, j: (0, j)),
                pl.BlockSpec((1, tn), lambda i, j: (0, j)),
            ],
            out_specs=pl.BlockSpec((tm, tn), lambda i, j: (i, j)),
            scratch_shapes=[pltpu.VMEM((tm, C), jnp.bfloat16)],
        ),
        compiler_params=pltpu.CompilerParams(
            dimension_semantics=("parallel", "arbitrary"),
            vmem_limit_bytes=_VMEM_LIMIT),
    )(x2d, gamma.reshape(1, C), beta.reshape(1, C), w, b.reshape(1, N))


# --------- tiled matmul + bias + residual (mlp c_proj), N axis removed --------

def _matmul_res_kernel(x_ref, w_ref, b_ref, r_ref, o_ref, acc_ref):
    kk = pl.program_id(1)

    @pl.when(kk == 0)
    def _():
        acc_ref[...] = jnp.zeros_like(acc_ref)

    acc_ref[...] += jnp.dot(x_ref[...], w_ref[...],
                            preferred_element_type=jnp.float32)

    @pl.when(kk == pl.num_programs(1) - 1)
    def _():
        o_ref[...] = (acc_ref[...] + b_ref[...] + r_ref[...]).astype(o_ref.dtype)


def linear_bias_residual(x2d, w, b, resid, *, tm_desired=512, tk_desired=1024):
    M, K = x2d.shape
    K2, N = w.shape
    assert K == K2
    tm = _pick_tile(M, tm_desired, 8)
    tk = _pick_tile(K, tk_desired, 128)
    return pl.pallas_call(
        _matmul_res_kernel,
        out_shape=jax.ShapeDtypeStruct((M, N), jnp.float32),
        grid_spec=pltpu.PrefetchScalarGridSpec(
            num_scalar_prefetch=0,
            grid=(M // tm, K // tk),
            in_specs=[
                pl.BlockSpec((tm, tk), lambda i, k: (i, k)),
                pl.BlockSpec((tk, N), lambda i, k: (k, 0)),
                pl.BlockSpec((1, N), lambda i, k: (0, 0)),
                pl.BlockSpec((tm, N), lambda i, k: (i, 0)),
            ],
            out_specs=pl.BlockSpec((tm, N), lambda i, k: (i, 0)),
            scratch_shapes=[pltpu.VMEM((tm, N), jnp.float32)],
        ),
        input_output_aliases={3: 0},       # residual stream aliased to output
        compiler_params=pltpu.CompilerParams(
            dimension_semantics=("parallel", "arbitrary"),
            vmem_limit_bytes=_VMEM_LIMIT),
    )(x2d, w, b.reshape(1, N), resid)


# ------------------------------- parameter init -------------------------------

def init_params(key, *, vocab_size, block_size, n_layer, n_head, n_embd, lora_r):
    C = n_embd
    keys = iter(jax.random.split(key, 8 + n_layer * 8))

    def w(shape, scale=0.02):
        return scale * jax.random.normal(next(keys), shape, jnp.float32)

    def kaiming(shape):  # LoRA A: kaiming_uniform_(a=sqrt(5)) -> U(+-1/sqrt(fan_in))
        bound = 1.0 / math.sqrt(shape[0])
        return jax.random.uniform(next(keys), shape, jnp.float32, -bound, bound)

    wte = w((vocab_size, C))
    # pad tied lm_head vocab axis to a multiple of 1024 -> lane-dense N tiles
    vpad = ((vocab_size + 1023) // 1024) * 1024
    lm_head_w = jnp.pad(wte.T, ((0, 0), (0, vpad - vocab_size)))

    params = {
        "wte": wte,                                      # f32 for embedding gather
        "lm_head_w": lm_head_w.astype(jnp.bfloat16),     # pre-transposed + padded ONCE
        "lm_head_b": jnp.zeros((vpad,), jnp.float32),
        "wpe": w((block_size, C)),
        "ln_f_g": jnp.ones((C,), jnp.float32),
        "ln_f_b": jnp.zeros((C,), jnp.float32),
        "blocks": [],
    }
    for _ in range(n_layer):
        c_attn_w = w((C, 3 * C))
        c_attn_b = jnp.zeros((3 * C,), jnp.float32)
        qA, kA, vA, oA = (kaiming((C, lora_r)) for _ in range(4))
        qkv_B = jnp.zeros((3, lora_r, C), jnp.float32)   # LoRA B init: zeros

        # Merge q/k/v LoRA-A into the LN output:  q@A_q = h@(W_q A_q) + b_q A_q
        wa = jnp.concatenate(
            [c_attn_w[:, j * C:(j + 1) * C] @ A
             for j, A in enumerate((qA, kA, vA))], axis=1)          # (C, 3r)
        ba = jnp.concatenate(
            [c_attn_b[j * C:(j + 1) * C] @ A
             for j, A in enumerate((qA, kA, vA))])                   # (3r,)
        # Block-diagonal LoRA-B so q/k/v stay independent in one matmul.
        bbd = jnp.zeros((3 * lora_r, 3 * C), jnp.float32)
        for j in range(3):
            bbd = bbd.at[j * lora_r:(j + 1) * lora_r,
                         j * C:(j + 1) * C].set(qkv_B[j])

        blk = {
            "ln1_g": jnp.ones((C,), jnp.float32),
            "ln1_b": jnp.zeros((C,), jnp.float32),
            "c_attn_w": c_attn_w.astype(jnp.bfloat16),
            "c_attn_b": c_attn_b,
            "qkv_WA": wa.astype(jnp.bfloat16),
            "qkv_bA": ba,
            "qkv_Bbd": bbd.astype(jnp.bfloat16),
            "c_proj_w": w((C, C)).astype(jnp.bfloat16),
            "c_proj_b": jnp.zeros((C,), jnp.float32),
            "oA": oA.astype(jnp.bfloat16),
            "oB": jnp.zeros((lora_r, C), jnp.bfloat16),
            "ln2_g": jnp.ones((C,), jnp.float32),
            "ln2_b": jnp.zeros((C,), jnp.float32),
            "fc_w": w((C, 4 * C)).astype(jnp.bfloat16),
            "fc_b": jnp.zeros((4 * C,), jnp.float32),
            "proj_w": w((4 * C, C)).astype(jnp.bfloat16),
            "proj_b": jnp.zeros((C,), jnp.float32),
        }
        params["blocks"].append(blk)
    return params


# --------------------------------- forward pass -------------------------------

def gpt_forward(params, idx, n_head):
    Bb, T = idx.shape
    vocab, C = params["wte"].shape
    M = Bb * T

    # embeddings (gather is XLA glue, not a Pallas hot path)
    tok_emb = jnp.take(params["wte"], idx, axis=0)               # (B, T, C)
    pos_emb = params["wpe"][:T]
    xf = (tok_emb + pos_emb[None]).astype(jnp.float32).reshape(M, C)

    for blk in params["blocks"]:
        # attention: ln_1 + c_attn + (merged) q/k/v LoRA fused
        qkv = ln_qkv_lora(xf, blk["ln1_g"], blk["ln1_b"],
                          blk["c_attn_w"], blk["c_attn_b"],
                          blk["qkv_WA"], blk["qkv_bA"], blk["qkv_Bbd"])
        # causal attention + c_proj + o-LoRA + residual add, fused
        x3 = attn_proj_residual(qkv.reshape(Bb, T, 3 * C),
                                xf.reshape(Bb, T, C),
                                blk["c_proj_w"], blk["c_proj_b"],
                                blk["oA"], blk["oB"], n_head)
        xf = x3.reshape(M, C)

        # MLP: ln_2 + c_fc + GELU fused, then tiled c_proj + residual
        h = ln_linear(xf, blk["ln2_g"], blk["ln2_b"], blk["fc_w"], blk["fc_b"],
                      activation="gelu", out_dtype=jnp.bfloat16)
        xf = linear_bias_residual(h, blk["proj_w"], blk["proj_b"], xf)

    # ln_f + tied lm_head (vocab padded to 128/1024-multiple; sliced back after)
    logits = ln_linear(xf, params["ln_f_g"], params["ln_f_b"],
                       params["lm_head_w"], params["lm_head_b"],
                       out_dtype=jnp.float32)
    logits = logits[:, :vocab]
    # TODO(synk): cross-entropy loss branch (targets is not None) not implemented;
    #             forward returns logits only.
    return logits.reshape(Bb, T, vocab)


# ------------------------------------- main ------------------------------------

if __name__ == "__main__":
    # small config consistent with the module (n_embd % n_head == 0)
    vocab_size, block_size = 512, 64
    n_layer, n_head, n_embd, lora_r = 2, 4, 128, 4
    Bb, T = 2, 16

    key = jax.random.PRNGKey(0)
    k_params, k_idx = jax.random.split(key)
    params = init_params(k_params, vocab_size=vocab_size, block_size=block_size,
                         n_layer=n_layer, n_head=n_head, n_embd=n_embd,
                         lora_r=lora_r)
    idx = jax.random.randint(k_idx, (Bb, T), 0, vocab_size, dtype=jnp.int32)

    fwd = jax.jit(functools.partial(gpt_forward, n_head=n_head))
    logits = fwd(params, idx)
    jax.block_until_ready(logits)
    assert logits.shape == (Bb, T, vocab_size)
    assert bool(jnp.all(jnp.isfinite(logits)))
    print("KERNEL_OK")
</pallas_src>

<mosaic_0001>
module attributes {stable_mosaic.version = 11 : i64} {
  func.func @_ln_linear_kernel(%arg0: i32, %arg1: i32, %arg2: memref<32x128xf32, #tpu.memory_space<vmem>>, %arg3: memref<1x128xf32, #tpu.memory_space<vmem>>, %arg4: memref<1x128xf32, #tpu.memory_space<vmem>>, %arg5: memref<128x512xbf16, #tpu.memory_space<vmem>>, %arg6: memref<1x512xf32, #tpu.memory_space<vmem>>, %arg7: memref<32x512xbf16, #tpu.memory_space<vmem>>, %arg8: memref<32x128xbf16, #tpu.memory_space<vmem>>) attributes {dimension_semantics = [#tpu.dimension_semantics<parallel>, #tpu.dimension_semantics<arbitrary>], iteration_bounds = array<i64: 1, 1>, scalar_prefetch = 0 : i64, scratch_operands = 1 : i64, tpu.core_type = #tpu.core_type<tc>, window_params = [{transform_indices = @transform_0, window_bounds = array<i64: 32, 128>}, {pipeline_mode = #tpu.pipeline_mode<synchronous>, transform_indices = @transform_1, window_bounds = array<i64: 1, 128>}, {pipeline_mode = #tpu.pipeline_mode<synchronous>, transform_indices = @transform_2, window_bounds = array<i64: 1, 128>}, {transform_indices = @transform_3, window_bounds = array<i64: 128, 512>}, {transform_indices = @transform_4, window_bounds = array<i64: 1, 512>}, {transform_indices = @transform_5, window_bounds = array<i64: 32, 512>}]} {
    %c0_i32 = arith.constant 0 : i32
    %0 = arith.cmpi eq, %arg1, %c0_i32 : i32
    %1 = arith.extui %0 : i1 to i32
    %c0_i32_0 = arith.constant 0 : i32
    %2 = arith.cmpi ne, %1, %c0_i32_0 : i32
    scf.if %2 {
      %c0_11 = arith.constant 0 : index
      %c0_12 = arith.constant 0 : index
      %19 = vector.load %arg2[%c0_11, %c0_12] : memref<32x128xf32, #tpu.memory_space<vmem>>, vector<32x128xf32>
      %c0_13 = arith.constant 0 : index
      %c0_14 = arith.constant 0 : index
      %20 = vector.load %arg3[%c0_13, %c0_14] : memref<1x128xf32, #tpu.memory_space<vmem>>, vector<1x128xf32>
      %c0_15 = arith.constant 0 : index
      %c0_16 = arith.constant 0 : index
      %21 = vector.load %arg4[%c0_15, %c0_16] : memref<1x128xf32, #tpu.memory_space<vmem>>, vector<1x128xf32>
      %cst_17 = arith.constant dense<0.000000e+00> : vector<32xf32>
      %22 = vector.multi_reduction <add>, %19, %cst_17 [1] : vector<32x128xf32> to vector<32xf32>
      %23 = vector.shape_cast %22 : vector<32xf32> to vector<32x1xf32>
      %cst_18 = arith.constant 1.280000e+02 : f32
      %24 = vector.broadcast %cst_18 : f32 to vector<32x1xf32>
      %25 = arith.divf %23, %24 : vector<32x1xf32>
      %26 = vector.broadcast %25 : vector<32x1xf32> to vector<32x128xf32>
      %27 = arith.subf %19, %26 : vector<32x128xf32>
      %28 = arith.mulf %27, %27 : vector<32x128xf32>
      %cst_19 = arith.constant dense<0.000000e+00> : vector<32xf32>
      %29 = vector.multi_reduction <add>, %28, %cst_19 [1] : vector<32x128xf32> to vector<32xf32>
      %30 = vector.shape_cast %29 : vector<32xf32> to vector<32x1xf32>
      %cst_20 = arith.constant 1.280000e+02 : f32
      %31 = vector.broadcast %cst_20 : f32 to vector<32x1xf32>
      %32 = arith.divf %30, %31 : vector<32x1xf32>
      %cst_21 = arith.constant 9.99999974E-6 : f32
      %33 = vector.broadcast %cst_21 : f32 to vector<32x1xf32>
      %34 = arith.addf %32, %33 : vector<32x1xf32>
      %35 = math.rsqrt %34 : vector<32x1xf32>
      %36 = vector.broadcast %35 : vector<32x1xf32> to vector<32x128xf32>
      %37 = arith.mulf %27, %36 : vector<32x128xf32>
      %38 = vector.broadcast %20 : vector<1x128xf32> to vector<32x128xf32>
      %39 = arith.mulf %37, %38 : vector<32x128xf32>
      %40 = vector.broadcast %21 : vector<1x128xf32> to vector<32x128xf32>
      %41 = arith.addf %39, %40 : vector<32x128xf32>
      %42 = arith.truncf %41 : vector<32x128xf32> to vector<32x128xbf16>
      %c0_22 = arith.constant 0 : index
      %c0_23 = arith.constant 0 : index
      %43 = vector.load %arg8[%c0_22, %c0_23] : memref<32x128xbf16, #tpu.memory_space<vmem>>, vector<32x128xbf16>
      tpu.vector_store %arg8[%c0_22, %c0_23], %42 {strides = array<i32>} : memref<32x128xbf16, #tpu.memory_space<vmem>>, vector<32x128xbf16>,
    } else {
    }
    %c0 = arith.constant 0 : index
    %c0_1 = arith.constant 0 : index
    %3 = vector.load %arg8[%c0, %c0_1] : memref<32x128xbf16, #tpu.memory_space<vmem>>, vector<32x128xbf16>
    %c0_2 = arith.constant 0 : index
    %c0_3 = arith.constant 0 : index
    %4 = vector.load %arg5[%c0_2, %c0_3] : memref<128x512xbf16, #tpu.memory_space<vmem>>, vector<128x512xbf16>
    %cst = arith.constant dense<0.000000e+00> : vector<32x512xf32>
    %5 = tpu.matmul %3, %4, %cst {dimension_numbers = #tpu.dot_dimension_numbers<[1], [0], [0], [1], [0, 0, 1, 1], [], []>} : vector<32x128xbf16>, vector<128x512xbf16>, vector<32x512xf32> -> vector<32x512xf32>
    %c0_4 = arith.constant 0 : index
    %c0_5 = arith.constant 0 : index
    %6 = vector.load %arg6[%c0_4, %c0_5] : memref<1x512xf32, #tpu.memory_space<vmem>>, vector<1x512xf32>
    %7 = vector.broadcast %6 : vector<1x512xf32> to vector<32x512xf32>
    %8 = arith.addf %5, %7 : vector<32x512xf32>
    %cst_6 = arith.constant 5.000000e-01 : f32
    %9 = vector.broadcast %cst_6 : f32 to vector<32x512xf32>
    %10 = arith.mulf %9, %8 : vector<32x512xf32>
    %cst_7 = arith.constant 0.707106769 : f32
    %11 = vector.broadcast %cst_7 : f32 to vector<32x512xf32>
    %12 = arith.mulf %8, %11 : vector<32x512xf32>
    %13 = math.erf %12 : vector<32x512xf32>
    %cst_8 = arith.constant 1.000000e+00 : f32
    %14 = vector.broadcast %cst_8 : f32 to vector<32x512xf32>
    %15 = arith.addf %14, %13 : vector<32x512xf32>
    %16 = arith.mulf %10, %15 : vector<32x512xf32>
    %17 = arith.truncf %16 : vector<32x512xf32> to vector<32x512xbf16>
    %c0_9 = arith.constant 0 : index
    %c0_10 = arith.constant 0 : index
    %18 = vector.load %arg7[%c0_9, %c0_10] : memref<32x512xbf16, #tpu.memory_space<vmem>>, vector<32x512xbf16>
    tpu.vector_store %arg7[%c0_9, %c0_10], %17 {strides = array<i32>} : memref<32x512xbf16, #tpu.memory_space<vmem>>, vector<32x512xbf16>,
    return
  }
  func.func @transform_0(%arg0: i32, %arg1: i32) -> (i32, i32) {
    %c0_i32 = arith.constant 0 : i32
    %c0_i32_0 = arith.constant 0 : i32
    return %arg0, %c0_i32 : i32, i32
  }
  func.func @transform_1(%arg0: i32, %arg1: i32) -> (i32, i32) {
    %c0_i32 = arith.constant 0 : i32
    %c0_i32_0 = arith.constant 0 : i32
    %c0_i32_1 = arith.constant 0 : i32
    return %c0_i32, %c0_i32_0 : i32, i32
  }
  func.func @transform_2(%arg0: i32, %arg1: i32) -> (i32, i32) {
    %c0_i32 = arith.constant 0 : i32
    %c0_i32_0 = arith.constant 0 : i32
    %c0_i32_1 = arith.constant 0 : i32
    return %c0_i32, %c0_i32_0 : i32, i32
  }
  func.func @transform_3(%arg0: i32, %arg1: i32) -> (i32, i32) {
    %c0_i32 = arith.constant 0 : i32
    %c0_i32_0 = arith.constant 0 : i32
    return %c0_i32, %arg1 : i32, i32
  }
  func.func @transform_4(%arg0: i32, %arg1: i32) -> (i32, i32) {
    %c0_i32 = arith.constant 0 : i32
    %c0_i32_0 = arith.constant 0 : i32
    return %c0_i32, %arg1 : i32, i32
  }
  func.func @transform_5(%arg0: i32, %arg1: i32) -> (i32, i32) {
    %c0_i32 = arith.constant 0 : i32
    return %arg0, %arg1 : i32, i32
  }
}

module attributes {stable_mosaic.version = 11 : i64} {
  func.func @_attn_proj_res_kernel(%arg0: i32, %arg1: i32, %arg2: memref<1x16x128xbf16, #tpu.memory_space<vmem>>, %arg3: memref<1x16x128xbf16, #tpu.memory_space<vmem>>, %arg4: memref<1x16x128xbf16, #tpu.memory_space<vmem>>, %arg5: memref<128x128xbf16, #tpu.memory_space<vmem>>, %arg6: memref<1x128xf32, #tpu.memory_space<vmem>>, %arg7: memref<128x4xbf16, #tpu.memory_space<vmem>>, %arg8: memref<4x128xbf16, #tpu.memory_space<vmem>>, %arg9: memref<1x16x128xf32, #tpu.memory_space<vmem>>, %arg10: memref<1x16x128xf32, #tpu.memory_space<vmem>>) attributes {dimension_semantics = [#tpu.dimension_semantics<parallel>, #tpu.dimension_semantics<parallel>], iteration_bounds = array<i64: 2, 1>, scalar_prefetch = 0 : i64, scratch_operands = 0 : i64, tpu.core_type = #tpu.core_type<tc>, window_params = [{transform_indices = @transform_0, window_bounds = array<i64: 1, 16, 128>}, {transform_indices = @transform_1, window_bounds = array<i64: 1, 16, 128>}, {transform_indices = @transform_2, window_bounds = array<i64: 1, 16, 128>}, {pipeline_mode = #tpu.pipeline_mode<synchronous>, transform_indices = @transform_3, window_bounds = array<i64: 128, 128>}, {pipeline_mode = #tpu.pipeline_mode<synchronous>, transform_indices = @transform_4, window_bounds = array<i64: 1, 128>}, {pipeline_mode = #tpu.pipeline_mode<synchronous>, transform_indices = @transform_5, window_bounds = array<i64: 128, 4>}, {pipeline_mode = #tpu.pipeline_mode<synchronous>, transform_indices = @transform_6, window_bounds = array<i64: 4, 128>}, {transform_indices = @transform_7, window_bounds = array<i64: 1, 16, 128>}, {transform_indices = @transform_8, window_bounds = array<i64: 1, 16, 128>}]} {
    %c16_i32 = arith.constant 16 : i32
    %0 = arith.muli %arg1, %c16_i32 : i32
    %1 = tpu.iota {dimensions = array<i32: 0>} : vector<16x16xi32>
    %2 = vector.broadcast %0 : i32 to vector<16x16xi32>
    %3 = arith.addi %2, %1 : vector<16x16xi32>
    %4 = tpu.iota {dimensions = array<i32: 1>} : vector<16x16xi32>
    %5 = arith.cmpi sle, %4, %3 : vector<16x16xi32>
    %c0 = arith.constant 0 : index
    %c0_0 = arith.constant 0 : index
    %c0_1 = arith.constant 0 : index
    %6 = vector.load %arg2[%c0, %c0_0, %c0_1] : memref<1x16x128xbf16, #tpu.memory_space<vmem>>, vector<1x16x32xbf16>
    %7 = vector.shape_cast %6 : vector<1x16x32xbf16> to vector<16x32xbf16>
    %c0_2 = arith.constant 0 : index
    %c0_3 = arith.constant 0 : index
    %c0_4 = arith.constant 0 : index
    %8 = vector.load %arg3[%c0_2, %c0_3, %c0_4] : memref<1x16x128xbf16, #tpu.memory_space<vmem>>, vector<1x16x32xbf16>
    %9 = vector.shape_cast %8 : vector<1x16x32xbf16> to vector<16x32xbf16>
    %c0_5 = arith.constant 0 : index
    %c0_6 = arith.constant 0 : index
    %c0_7 = arith.constant 0 : index
    %10 = vector.load %arg4[%c0_5, %c0_6, %c0_7] : memref<1x16x128xbf16, #tpu.memory_space<vmem>>, vector<1x16x32xbf16>
    %11 = vector.shape_cast %10 : vector<1x16x32xbf16> to vector<16x32xbf16>
    %cst = arith.constant dense<0.000000e+00> : vector<16x16xf32>
    %12 = tpu.matmul %7, %9, %cst {dimension_numbers = #tpu.dot_dimension_numbers<[1], [1], [0], [0], [0, 0, 1, 0], [], []>} : vector<16x32xbf16>, vector<16x32xbf16>, vector<16x16xf32> -> vector<16x16xf32>
    %cst_8 = arith.constant 0.176776692 : f32
    %13 = vector.broadcast %cst_8 : f32 to vector<16x16xf32>
    %14 = arith.mulf %12, %13 : vector<16x16xf32>
    %cst_9 = arith.constant -1.000000e+30 : f32
    %15 = vector.broadcast %cst_9 : f32 to vector<16x16xf32>
    %16 = arith.select %5, %14, %15 : vector<16x16xi1>, vector<16x16xf32>
    %cst_10 = arith.constant dense<0xFF800000> : vector<16xf32>
    %17 = vector.multi_reduction <maximumf>, %16, %cst_10 [1] : vector<16x16xf32> to vector<16xf32>
    %18 = vector.shape_cast %17 : vector<16xf32> to vector<16x1xf32>
    %19 = vector.broadcast %18 : vector<16x1xf32> to vector<16x16xf32>
    %20 = arith.subf %16, %19 : vector<16x16xf32>
    %21 = math.exp %20 : vector<16x16xf32>
    %cst_11 = arith.constant dense<0.000000e+00> : vector<16xf32>
    %22 = vector.multi_reduction <add>, %21, %cst_11 [1] : vector<16x16xf32> to vector<16xf32>
    %23 = vector.shape_cast %22 : vector<16xf32> to vector<16x1xf32>
    %24 = tpu.reciprocal %23 {approx = true} : vector<16x1xf32> -> vector<16x1xf32>
    %25 = vector.broadcast %24 : vector<16x1xf32> to vector<16x16xf32>
    %26 = arith.mulf %21, %25 : vector<16x16xf32>
    %27 = arith.truncf %26 : vector<16x16xf32> to vector<16x16xbf16>
    %cst_12 = arith.constant dense<0.000000e+00> : vector<16x32xf32>
    %28 = tpu.matmul %27, %11, %cst_12 {dimension_numbers = #tpu.dot_dimension_numbers<[1], [0], [0], [1], [0, 0, 1, 1], [], []>} : vector<16x16xbf16>, vector<16x32xbf16>, vector<16x32xf32> -> vector<16x32xf32>
    %c0_13 = arith.constant 0 : index
    %c0_14 = arith.constant 0 : index
    %c32 = arith.constant 32 : index
    %29 = vector.load %arg2[%c0_13, %c0_14, %c32] : memref<1x16x128xbf16, #tpu.memory_space<vmem>>, vector<1x16x32xbf16>
    %30 = vector.shape_cast %29 : vector<1x16x32xbf16> to vector<16x32xbf16>
    %c0_15 = arith.constant 0 : index
    %c0_16 = arith.constant 0 : index
    %c32_17 = arith.constant 32 : index
    %31 = vector.load %arg3[%c0_15, %c0_16, %c32_17] : memref<1x16x128xbf16, #tpu.memory_space<vmem>>, vector<1x16x32xbf16>
    %32 = vector.shape_cast %31 : vector<1x16x32xbf16> to vector<16x32xbf16>
    %c0_18 = arith.constant 0 : index
    %c0_19 = arith.constant 0 : index
    %c32_20 = arith.constant 32 : index
    %33 = vector.load %arg4[%c0_18, %c0_19, %c32_20] : memref<1x16x128xbf16, #tpu.memory_space<vmem>>, vector<1x16x32xbf16>
    %34 = vector.shape_cast %33 : vector<1x16x32xbf16> to vector<16x32xbf16>
    %cst_21 = arith.constant dense<0.000000e+00> : vector<16x16xf32>
    %35 = tpu.matmul %30, %32, %cst_21 {dimension_numbers = #tpu.dot_dimension_numbers<[1], [1], [0], [0], [0, 0, 1, 0], [], []>} : vector<16x32xbf16>, vector<16x32xbf16>, vector<16x16xf32> -> vector<16x16xf32>
    %cst_22 = arith.constant 0.176776692 : f32
    %36 = vector.broadcast %cst_22 : f32 to vector<16x16xf32>
    %37 = arith.mulf %35, %36 : vector<16x16xf32>
    %cst_23 = arith.constant -1.000000e+30 : f32
    %38 = vector.broadcast %cst_23 : f32 to vector<16x16xf32>
    %39 = arith.select %5, %37, %38 : vector<16x16xi1>, vector<16x16xf32>
    %cst_24 = arith.constant dense<0xFF800000> : vector<16xf32>
    %40 = vector.multi_reduction <maximumf>, %39, %cst_24 [1] : vector<16x16xf32> to vector<16xf32>
    %41 = vector.shape_cast %40 : vector<16xf32> to vector<16x1xf32>
    %42 = vector.broadcast %41 : vector<16x1xf32> to vector<16x16xf32>
    %43 = arith.subf %39, %42 : vector<16x16xf32>
    %44 = math.exp %43 : vector<16x16xf32>
    %cst_25 = arith.constant dense<0.000000e+00> : vector<16xf32>
    %45 = vector.multi_reduction <add>, %44, %cst_25 [1] : vector<16x16xf32> to vector<16xf32>
    %46 = vector.shape_cast %45 : vector<16xf32> to vector<16x1xf32>
    %47 = tpu.reciprocal %46 {approx = true} : vector<16x1xf32> -> vector<16x1xf32>
    %48 = vector.broadcast %47 : vector<16x1xf32> to vector<16x16xf32>
    %49 = arith.mulf %44, %48 : vector<16x16xf32>
    %50 = arith.truncf %49 : vector<16x16xf32> to vector<16x16xbf16>
    %cst_26 = arith.constant dense<0.000000e+00> : vector<16x32xf32>
    %51 = tpu.matmul %50, %34, %cst_26 {dimension_numbers = #tpu.dot_dimension_numbers<[1], [0], [0], [1], [0, 0, 1, 1], [], []>} : vector<16x16xbf16>, vector<16x32xbf16>, vector<16x32xf32> -> vector<16x32xf32>
    %c0_27 = arith.constant 0 : index
    %c0_28 = arith.constant 0 : index
    %c64 = arith.constant 64 : index
    %52 = vector.load %arg2[%c0_27, %c0_28, %c64] : memref<1x16x128xbf16, #tpu.memory_space<vmem>>, vector<1x16x32xbf16>
    %53 = vector.shape_cast %52 : vector<1x16x32xbf16> to vector<16x32xbf16>
    %c0_29 = arith.constant 0 : index
    %c0_30 = arith.constant 0 : index
    %c64_31 = arith.constant 64 : index
    %54 = vector.load %arg3[%c0_29, %c0_30, %c64_31] : memref<1x16x128xbf16, #tpu.memory_space<vmem>>, vector<1x16x32xbf16>
    %55 = vector.shape_cast %54 : vector<1x16x32xbf16> to vector<16x32xbf16>
    %c0_32 = arith.constant 0 : index
    %c0_33 = arith.constant 0 : index
    %c64_34 = arith.constant 64 : index
    %56 = vector.load %arg4[%c0_32, %c0_33, %c64_34] : memref<1x16x128xbf16, #tpu.memory_space<vmem>>, vector<1x16x32xbf16>
    %57 = vector.shape_cast %56 : vector<1x16x32xbf16> to vector<16x32xbf16>
    %cst_35 = arith.constant dense<0.000000e+00> : vector<16x16xf32>
    %58 = tpu.matmul %53, %55, %cst_35 {dimension_numbers = #tpu.dot_dimension_numbers<[1], [1], [0], [0], [0, 0, 1, 0], [], []>} : vector<16x32xbf16>, vector<16x32xbf16>, vector<16x16xf32> -> vector<16x16xf32>
    %cst_36 = arith.constant 0.176776692 : f32
    %59 = vector.broadcast %cst_36 : f32 to vector<16x16xf32>
    %60 = arith.mulf %58, %59 : vector<16x16xf32>
    %cst_37 = arith.constant -1.000000e+30 : f32
    %61 = vector.broadcast %cst_37 : f32 to vector<16x16xf32>
    %62 = arith.select %5, %60, %61 : vector<16x16xi1>, vector<16x16xf32>
    %cst_38 = arith.constant dense<0xFF800000> : vector<16xf32>
    %63 = vector.multi_reduction <maximumf>, %62, %cst_38 [1] : vector<16x16xf32> to vector<16xf32>
    %64 = vector.shape_cast %63 : vector<16xf32> to vector<16x1xf32>
    %65 = vector.broadcast %64 : vector<16x1xf32> to vector<16x16xf32>
    %66 = arith.subf %62, %65 : vector<16x16xf32>
    %67 = math.exp %66 : vector<16x16xf32>
    %cst_39 = arith.constant dense<0.000000e+00> : vector<16xf32>
    %68 = vector.multi_reduction <add>, %67, %cst_39 [1] : vector<16x16xf32> to vector<16xf32>
    %69 = vector.shape_cast %68 : vector<16xf32> to vector<16x1xf32>
    %70 = tpu.reciprocal %69 {approx = true} : vector<16x1xf32> -> vector<16x1xf32>
    %71 = vector.broadcast %70 : vector<16x1xf32> to vector<16x16xf32>
    %72 = arith.mulf %67, %71 : vector<16x16xf32>
    %73 = arith.truncf %72 : vector<16x16xf32> to vector<16x16xbf16>
    %cst_40 = arith.constant dense<0.000000e+00> : vector<16x32xf32>
    %74 = tpu.matmul %73, %57, %cst_40 {dimension_numbers = #tpu.dot_dimension_numbers<[1], [0], [0], [1], [0, 0, 1, 1], [], []>} : vector<16x16xbf16>, vector<16x32xbf16>, vector<16x32xf32> -> vector<16x32xf32>
    %c0_41 = arith.constant 0 : index
    %c0_42 = arith.constant 0 : index
    %c96 = arith.constant 96 : index
    %75 = vector.load %arg2[%c0_41, %c0_42, %c96] : memref<1x16x128xbf16, #tpu.memory_space<vmem>>, vector<1x16x32xbf16>
    %76 = vector.shape_cast %75 : vector<1x16x32xbf16> to vector<16x32xbf16>
    %c0_43 = arith.constant 0 : index
    %c0_44 = arith.constant 0 : index
    %c96_45 = arith.constant 96 : index
    %77 = vector.load %arg3[%c0_43, %c0_44, %c96_45] : memref<1x16x128xbf16, #tpu.memory_space<vmem>>, vector<1x16x32xbf16>
    %78 = vector.shape_cast %77 : vector<1x16x32xbf16> to vector<16x32xbf16>
    %c0_46 = arith.constant 0 : index
    %c0_47 = arith.constant 0 : index
    %c96_48 = arith.constant 96 : index
    %79 = vector.load %arg4[%c0_46, %c0_47, %c96_48] : memref<1x16x128xbf16, #tpu.memory_space<vmem>>, vector<1x16x32xbf16>
    %80 = vector.shape_cast %79 : vector<1x16x32xbf16> to vector<16x32xbf16>
    %cst_49 = arith.constant dense<0.000000e+00> : vector<16x16xf32>
    %81 = tpu.matmul %76, %78, %cst_49 {dimension_numbers = #tpu.dot_dimension_numbers<[1], [1], [0], [0], [0, 0, 1, 0], [], []>} : vector<16x32xbf16>, vector<16x32xbf16>, vector<16x16xf32> -> vector<16x16xf32>
    %cst_50 = arith.constant 0.176776692 : f32
    %82 = vector.broadcast %cst_50 : f32 to vector<16x16xf32>
    %83 = arith.mulf %81, %82 : vector<16x16xf32>
    %cst_51 = arith.constant -1.000000e+30 : f32
    %84 = vector.broadcast %cst_51 : f32 to vector<16x16xf32>
    %85 = arith.select %5, %83, %84 : vector<16x16xi1>, vector<16x16xf32>
    %cst_52 = arith.constant dense<0xFF800000> : vector<16xf32>
    %86 = vector.multi_reduction <maximumf>, %85, %cst_52 [1] : vector<16x16xf32> to vector<16xf32>
    %87 = vector.shape_cast %86 : vector<16xf32> to vector<16x1xf32>
    %88 = vector.broadcast %87 : vector<16x1xf32> to vector<16x16xf32>
    %89 = arith.subf %85, %88 : vector<16x16xf32>
    %90 = math.exp %89 : vector<16x16xf32>
    %cst_53 = arith.constant dense<0.000000e+00> : vector<16xf32>
    %91 = vector.multi_reduction <add>, %90, %cst_53 [1] : vector<16x16xf32> to vector<16xf32>
    %92 = vector.shape_cast %91 : vector<16xf32> to vector<16x1xf32>
    %93 = tpu.reciprocal %92 {approx = true} : vector<16x1xf32> -> vector<16x1xf32>
    %94 = vector.broadcast %93 : vector<16x1xf32> to vector<16x16xf32>
    %95 = arith.mulf %90, %94 : vector<16x16xf32>
    %96 = arith.truncf %95 : vector<16x16xf32> to vector<16x16xbf16>
    %cst_54 = arith.constant dense<0.000000e+00> : vector<16x32xf32>
    %97 = tpu.matmul %96, %80, %cst_54 {dimension_numbers = #tpu.dot_dimension_numbers<[1], [0], [0], [1], [0, 0, 1, 1], [], []>} : vector<16x16xbf16>, vector<16x32xbf16>, vector<16x32xf32> -> vector<16x32xf32>
    %98 = tpu.concatenate %28, %51, %74, %97 in 1 : vector<16x32xf32>, vector<16x32xf32>, vector<16x32xf32>, vector<16x32xf32> -> vector<16x128xf32>
    %99 = arith.truncf %98 : vector<16x128xf32> to vector<16x128xbf16>
    %c0_55 = arith.constant 0 : index
    %c0_56 = arith.constant 0 : index
    %100 = vector.load %arg5[%c0_55, %c0_56] : memref<128x128xbf16, #tpu.memory_space<vmem>>, vector<128x128xbf16>
    %cst_57 = arith.constant dense<0.000000e+00> : vector<16x128xf32>
    %101 = tpu.matmul %99, %100, %cst_57 {dimension_numbers = #tpu.dot_dimension_numbers<[1], [0], [0], [1], [0, 0, 1, 1], [], []>} : vector<16x128xbf16>, vector<128x128xbf16>, vector<16x128xf32> -> vector<16x128xf32>
    %c0_58 = arith.constant 0 : index
    %c0_59 = arith.constant 0 : index
    %102 = vector.load %arg6[%c0_58, %c0_59] : memref<1x128xf32, #tpu.memory_space<vmem>>, vector<1x128xf32>
    %103 = vector.broadcast %102 : vector<1x128xf32> to vector<16x128xf32>
    %104 = arith.addf %101, %103 : vector<16x128xf32>
    %c0_60 = arith.constant 0 : index
    %c0_61 = arith.constant 0 : index
    %105 = vector.load %arg7[%c0_60, %c0_61] : memref<128x4xbf16, #tpu.memory_space<vmem>>, vector<128x4xbf16>
    %cst_62 = arith.constant dense<0.000000e+00> : vector<16x4xf32>
    %106 = tpu.matmul %99, %105, %cst_62 {dimension_numbers = #tpu.dot_dimension_numbers<[1], [0], [0], [1], [0, 0, 1, 1], [], []>} : vector<16x128xbf16>, vector<128x4xbf16>, vector<16x4xf32> -> vector<16x4xf32>
    %107 = arith.truncf %106 : vector<16x4xf32> to vector<16x4xbf16>
    %c0_63 = arith.constant 0 : index
    %c0_64 = arith.constant 0 : index
    %108 = vector.load %arg8[%c0_63, %c0_64] : memref<4x128xbf16, #tpu.memory_space<vmem>>, vector<4x128xbf16>
    %cst_65 = arith.constant dense<0.000000e+00> : vector<16x128xf32>
    %109 = tpu.matmul %107, %108, %cst_65 {dimension_numbers = #tpu.dot_dimension_numbers<[1], [0], [0], [1], [0, 0, 1, 1], [], []>} : vector<16x4xbf16>, vector<4x128xbf16>, vector<16x128xf32> -> vector<16x128xf32>
    %c0_66 = arith.constant 0 : index
    %c0_67 = arith.constant 0 : index
    %c0_68 = arith.constant 0 : index
    %110 = vector.load %arg9[%c0_66, %c0_67, %c0_68] : memref<1x16x128xf32, #tpu.memory_space<vmem>>, vector<1x16x128xf32>
    %111 = vector.shape_cast %110 : vector<1x16x128xf32> to vector<16x128xf32>
    %112 = arith.addf %111, %104 : vector<16x128xf32>
    %113 = arith.addf %112, %109 : vector<16x128xf32>
    %c0_69 = arith.constant 0 : index
    %c0_70 = arith.constant 0 : index
    %c0_71 = arith.constant 0 : index
    %114 = vector.load %arg10[%c0_69, %c0_70, %c0_71] : memref<1x16x128xf32, #tpu.memory_space<vmem>>, vector<1x16x128xf32>
    %115 = vector.shape_cast %114 : vector<1x16x128xf32> to vector<16x128xf32>
    %116 = vector.shape_cast %113 : vector<16x128xf32> to vector<1x16x128xf32>
    tpu.vector_store %arg10[%c0_69, %c0_70, %c0_71], %116 {strides = array<i32>} : memref<1x16x128xf32, #tpu.memory_space<vmem>>, vector<1x16x128xf32>,
    return
  }
  func.func @transform_0(%arg0: i32, %arg1: i32) -> (i32, i32, i32) {
    %c0_i32 = arith.constant 0 : i32
    %c0_i32_0 = arith.constant 0 : i32
    return %arg0, %arg1, %c0_i32 : i32, i32, i32
  }
  func.func @transform_1(%arg0: i32, %arg1: i32) -> (i32, i32, i32) {
    %c0_i32 = arith.constant 0 : i32
    %c1_i32 = arith.constant 1 : i32
    %c0_i32_0 = arith.constant 0 : i32
    return %arg0, %c0_i32, %c1_i32 : i32, i32, i32
  }
  func.func @transform_2(%arg0: i32, %arg1: i32) -> (i32, i32, i32) {
    %c0_i32 = arith.constant 0 : i32
    %c2_i32 = arith.constant 2 : i32
    %c0_i32_0 = arith.constant 0 : i32
    return %arg0, %c0_i32, %c2_i32 : i32, i32, i32
  }
  func.func @transform_3(%arg0: i32, %arg1: i32) -> (i32, i32) {
    %c0_i32 = arith.constant 0 : i32
    %c0_i32_0 = arith.constant 0 : i32
    %c0_i32_1 = arith.constant 0 : i32
    return %c0_i32, %c0_i32_0 : i32, i32
  }
  func.func @transform_4(%arg0: i32, %arg1: i32) -> (i32, i32) {
    %c0_i32 = arith.constant 0 : i32
    %c0_i32_0 = arith.constant 0 : i32
    %c0_i32_1 = arith.constant 0 : i32
    return %c0_i32, %c0_i32_0 : i32, i32
  }
  func.func @transform_5(%arg0: i32, %arg1: i32) -> (i32, i32) {
    %c0_i32 = arith.constant 0 : i32
    %c0_i32_0 = arith.constant 0 : i32
    %c0_i32_1 = arith.constant 0 : i32
    return %c0_i32, %c0_i32_0 : i32, i32
  }
  func.func @transform_6(%arg0: i32, %arg1: i32) -> (i32, i32) {
    %c0_i32 = arith.constant 0 : i32
    %c0_i32_0 = arith.constant 0 : i32
    %c0_i32_1 = arith.constant 0 : i32
    return %c0_i32, %c0_i32_0 : i32, i32
  }
  func.func @transform_7(%arg0: i32, %arg1: i32) -> (i32, i32, i32) {
    %c0_i32 = arith.constant 0 : i32
    %c0_i32_0 = arith.constant 0 : i32
    return %arg0, %arg1, %c0_i32 : i32, i32, i32
  }
  func.func @transform_8(%arg0: i32, %arg1: i32) -> (i32, i32, i32) {
    %c0_i32 = arith.constant 0 : i32
    %c0_i32_0 = arith.constant 0 : i32
    return %arg0, %arg1, %c0_i32 : i32, i32, i32
  }
}

module attributes {stable_mosaic.version = 11 : i64} {
  func.func @_matmul_res_kernel(%arg0: i32, %arg1: i32, %arg2: memref<32x512xbf16, #tpu.memory_space<vmem>>, %arg3: memref<512x128xbf16, #tpu.memory_space<vmem>>, %arg4: memref<1x128xf32, #tpu.memory_space<vmem>>, %arg5: memref<32x128xf32, #tpu.memory_space<vmem>>, %arg6: memref<32x128xf32, #tpu.memory_space<vmem>>, %arg7: memref<32x128xf32, #tpu.memory_space<vmem>>) attributes {dimension_semantics = [#tpu.dimension_semantics<parallel>, #tpu.dimension_semantics<arbitrary>], iteration_bounds = array<i64: 1, 1>, scalar_prefetch = 0 : i64, scratch_operands = 1 : i64, tpu.core_type = #tpu.core_type<tc>, window_params = [{transform_indices = @transform_0, window_bounds = array<i64: 32, 512>}, {transform_indices = @transform_1, window_bounds = array<i64: 512, 128>}, {pipeline_mode = #tpu.pipeline_mode<synchronous>, transform_indices = @transform_2, window_bounds = array<i64: 1, 128>}, {transform_indices = @transform_3, window_bounds = array<i64: 32, 128>}, {transform_indices = @transform_4, window_bounds = array<i64: 32, 128>}]} {
    %c0_i32 = arith.constant 0 : i32
    %0 = arith.cmpi eq, %arg1, %c0_i32 : i32
    %1 = arith.extui %0 : i1 to i32
    %c0_i32_0 = arith.constant 0 : i32
    %2 = arith.cmpi ne, %1, %c0_i32_0 : i32
    scf.if %2 {
      %cst_10 = arith.constant 0.000000e+00 : f32
      %12 = vector.broadcast %cst_10 : f32 to vector<32x128xf32>
      %c0_11 = arith.constant 0 : index
      %c0_12 = arith.constant 0 : index
      %13 = vector.load %arg7[%c0_11, %c0_12] : memref<32x128xf32, #tpu.memory_space<vmem>>, vector<32x128xf32>
      tpu.vector_store %arg7[%c0_11, %c0_12], %12 {strides = array<i32>} : memref<32x128xf32, #tpu.memory_space<vmem>>, vector<32x128xf32>,
    } else {
    }
    %c0 = arith.constant 0 : index
    %c0_1 = arith.constant 0 : index
    %3 = vector.load %arg7[%c0, %c0_1] : memref<32x128xf32, #tpu.memory_space<vmem>>, vector<32x128xf32>
    %c0_2 = arith.constant 0 : index
    %c0_3 = arith.constant 0 : index
    %4 = vector.load %arg2[%c0_2, %c0_3] : memref<32x512xbf16, #tpu.memory_space<vmem>>, vector<32x512xbf16>
    %c0_4 = arith.constant 0 : index
    %c0_5 = arith.constant 0 : index
    %5 = vector.load %arg3[%c0_4, %c0_5] : memref<512x128xbf16, #tpu.memory_space<vmem>>, vector<512x128xbf16>
    %cst = arith.constant dense<0.000000e+00> : vector<32x128xf32>
    %6 = tpu.matmul %4, %5, %cst {dimension_numbers = #tpu.dot_dimension_numbers<[1], [0], [0], [1], [0, 0, 1, 1], [], []>} : vector<32x512xbf16>, vector<512x128xbf16>, vector<32x128xf32> -> vector<32x128xf32>
    %7 = arith.addf %3, %6 : vector<32x128xf32>
    %c0_6 = arith.constant 0 : index
    %c0_7 = arith.constant 0 : index
    %8 = vector.load %arg7[%c0_6, %c0_7] : memref<32x128xf32, #tpu.memory_space<vmem>>, vector<32x128xf32>
    tpu.vector_store %arg7[%c0_6, %c0_7], %7 {strides = array<i32>} : memref<32x128xf32, #tpu.memory_space<vmem>>, vector<32x128xf32>,
    %c0_i32_8 = arith.constant 0 : i32
    %9 = arith.cmpi eq, %arg1, %c0_i32_8 : i32
    %10 = arith.extui %9 : i1 to i32
    %c0_i32_9 = arith.constant 0 : i32
    %11 = arith.cmpi ne, %10, %c0_i32_9 : i32
    scf.if %11 {
      %c0_10 = arith.constant 0 : index
      %c0_11 = arith.constant 0 : index
      %12 = vector.load %arg7[%c0_10, %c0_11] : memref<32x128xf32, #tpu.memory_space<vmem>>, vector<32x128xf32>
      %c0_12 = arith.constant 0 : index
      %c0_13 = arith.constant 0 : index
      %13 = vector.load %arg4[%c0_12, %c0_13] : memref<1x128xf32, #tpu.memory_space<vmem>>, vector<1x128xf32>
      %14 = vector.broadcast %13 : vector<1x128xf32> to vector<32x128xf32>
      %15 = arith.addf %12, %14 : vector<32x128xf32>
      %c0_14 = arith.constant 0 : index
      %c0_15 = arith.constant 0 : index
      %16 = vector.load %arg5[%c0_14, %c0_15] : memref<32x128xf32, #tpu.memory_space<vmem>>, vector<32x128xf32>
      %17 = arith.addf %15, %16 : vector<32x128xf32>
      %c0_16 = arith.constant 0 : index
      %c0_17 = arith.constant 0 : index
      %18 = vector.load %arg6[%c0_16, %c0_17] : memref<32x128xf32, #tpu.memory_space<vmem>>, vector<32x128xf32>
      tpu.vector_store %arg6[%c0_16, %c0_17], %17 {strides = array<i32>} : memref<32x128xf32, #tpu.memory_space<vmem>>, vector<32x128xf32>,
    } else {
    }
    return
  }
  func.func @transform_0(%arg0: i32, %arg1: i32) -> (i32, i32) {
    %c0_i32 = arith.constant 0 : i32
    return %arg0, %arg1 : i32, i32
  }
  func.func @transform_1(%arg0: i32, %arg1: i32) -> (i32, i32) {
    %c0_i32 = arith.constant 0 : i32
    %c0_i32_0 = arith.constant 0 : i32
    return %arg1, %c0_i32 : i32, i32
  }
  func.func @transform_2(%arg0: i32, %arg1: i32) -> (i32, i32) {
    %c0_i32 = arith.constant 0 : i32
    %c0_i32_0 = arith.constant 0 : i32
    %c0_i32_1 = arith.constant 0 : i32
    return %c0_i32, %c0_i32_0 : i32, i32
  }
  func.func @transform_3(%arg0: i32, %arg1: i32) -> (i32, i32) {
    %c0_i32 = arith.constant 0 : i32
    %c0_i32_0 = arith.constant 0 : i32
    return %arg0, %c0_i32 : i32, i32
  }
  func.func @transform_4(%arg0: i32, %arg1: i32) -> (i32, i32) {
    %c0_i32 = arith.constant 0 : i32
    %c0_i32_0 = arith.constant 0 : i32
    return %arg0, %c0_i32 : i32, i32
  }
}

module attributes {stable_mosaic.version = 11 : i64} {
  func.func @_ln_qkv_lora_kernel(%arg0: i32, %arg1: memref<32x128xf32, #tpu.memory_space<vmem>>, %arg2: memref<1x128xf32, #tpu.memory_space<vmem>>, %arg3: memref<1x128xf32, #tpu.memory_space<vmem>>, %arg4: memref<128x384xbf16, #tpu.memory_space<vmem>>, %arg5: memref<1x384xf32, #tpu.memory_space<vmem>>, %arg6: memref<128x12xbf16, #tpu.memory_space<vmem>>, %arg7: memref<1x12xf32, #tpu.memory_space<vmem>>, %arg8: memref<12x384xbf16, #tpu.memory_space<vmem>>, %arg9: memref<32x384xbf16, #tpu.memory_space<vmem>>) attributes {dimension_semantics = [#tpu.dimension_semantics<parallel>], iteration_bounds = array<i64: 1>, scalar_prefetch = 0 : i64, scratch_operands = 0 : i64, tpu.core_type = #tpu.core_type<tc>, window_params = [{transform_indices = @transform_0, window_bounds = array<i64: 32, 128>}, {pipeline_mode = #tpu.pipeline_mode<synchronous>, transform_indices = @transform_1, window_bounds = array<i64: 1, 128>}, {pipeline_mode = #tpu.pipeline_mode<synchronous>, transform_indices = @transform_2, window_bounds = array<i64: 1, 128>}, {pipeline_mode = #tpu.pipeline_mode<synchronous>, transform_indices = @transform_3, window_bounds = array<i64: 128, 384>}, {pipeline_mode = #tpu.pipeline_mode<synchronous>, transform_indices = @transform_4, window_bounds = array<i64: 1, 384>}, {pipeline_mode = #tpu.pipeline_mode<synchronous>, transform_indices = @transform_5, window_bounds = array<i64: 128, 12>}, {pipeline_mode = #tpu.pipeline_mode<synchronous>, transform_indices = @transform_6, window_bounds = array<i64: 1, 12>}, {pipeline_mode = #tpu.pipeline_mode<synchronous>, transform_indices = @transform_7, window_bounds = array<i64: 12, 384>}, {transform_indices = @transform_8, window_bounds = array<i64: 32, 384>}]} {
    %c0 = arith.constant 0 : index
    %c0_0 = arith.constant 0 : index
    %0 = vector.load %arg1[%c0, %c0_0] : memref<32x128xf32, #tpu.memory_space<vmem>>, vector<32x128xf32>
    %c0_1 = arith.constant 0 : index
    %c0_2 = arith.constant 0 : index
    %1 = vector.load %arg2[%c0_1, %c0_2] : memref<1x128xf32, #tpu.memory_space<vmem>>, vector<1x128xf32>
    %c0_3 = arith.constant 0 : index
    %c0_4 = arith.constant 0 : index
    %2 = vector.load %arg3[%c0_3, %c0_4] : memref<1x128xf32, #tpu.memory_space<vmem>>, vector<1x128xf32>
    %cst = arith.constant dense<0.000000e+00> : vector<32xf32>
    %3 = vector.multi_reduction <add>, %0, %cst [1] : vector<32x128xf32> to vector<32xf32>
    %4 = vector.shape_cast %3 : vector<32xf32> to vector<32x1xf32>
    %cst_5 = arith.constant 1.280000e+02 : f32
    %5 = vector.broadcast %cst_5 : f32 to vector<32x1xf32>
    %6 = arith.divf %4, %5 : vector<32x1xf32>
    %7 = vector.broadcast %6 : vector<32x1xf32> to vector<32x128xf32>
    %8 = arith.subf %0, %7 : vector<32x128xf32>
    %9 = arith.mulf %8, %8 : vector<32x128xf32>
    %cst_6 = arith.constant dense<0.000000e+00> : vector<32xf32>
    %10 = vector.multi_reduction <add>, %9, %cst_6 [1] : vector<32x128xf32> to vector<32xf32>
    %11 = vector.shape_cast %10 : vector<32xf32> to vector<32x1xf32>
    %cst_7 = arith.constant 1.280000e+02 : f32
    %12 = vector.broadcast %cst_7 : f32 to vector<32x1xf32>
    %13 = arith.divf %11, %12 : vector<32x1xf32>
    %cst_8 = arith.constant 9.99999974E-6 : f32
    %14 = vector.broadcast %cst_8 : f32 to vector<32x1xf32>
    %15 = arith.addf %13, %14 : vector<32x1xf32>
    %16 = math.rsqrt %15 : vector<32x1xf32>
    %17 = vector.broadcast %16 : vector<32x1xf32> to vector<32x128xf32>
    %18 = arith.mulf %8, %17 : vector<32x128xf32>
    %19 = vector.broadcast %1 : vector<1x128xf32> to vector<32x128xf32>
    %20 = arith.mulf %18, %19 : vector<32x128xf32>
    %21 = vector.broadcast %2 : vector<1x128xf32> to vector<32x128xf32>
    %22 = arith.addf %20, %21 : vector<32x128xf32>
    %23 = arith.truncf %22 : vector<32x128xf32> to vector<32x128xbf16>
    %c0_9 = arith.constant 0 : index
    %c0_10 = arith.constant 0 : index
    %24 = vector.load %arg4[%c0_9, %c0_10] : memref<128x384xbf16, #tpu.memory_space<vmem>>, vector<128x384xbf16>
    %cst_11 = arith.constant dense<0.000000e+00> : vector<32x384xf32>
    %25 = tpu.matmul %23, %24, %cst_11 {dimension_numbers = #tpu.dot_dimension_numbers<[1], [0], [0], [1], [0, 0, 1, 1], [], []>} : vector<32x128xbf16>, vector<128x384xbf16>, vector<32x384xf32> -> vector<32x384xf32>
    %c0_12 = arith.constant 0 : index
    %c0_13 = arith.constant 0 : index
    %26 = vector.load %arg5[%c0_12, %c0_13] : memref<1x384xf32, #tpu.memory_space<vmem>>, vector<1x384xf32>
    %27 = vector.broadcast %26 : vector<1x384xf32> to vector<32x384xf32>
    %28 = arith.addf %25, %27 : vector<32x384xf32>
    %c0_14 = arith.constant 0 : index
    %c0_15 = arith.constant 0 : index
    %29 = vector.load %arg6[%c0_14, %c0_15] : memref<128x12xbf16, #tpu.memory_space<vmem>>, vector<128x12xbf16>
    %cst_16 = arith.constant dense<0.000000e+00> : vector<32x12xf32>
    %30 = tpu.matmul %23, %29, %cst_16 {dimension_numbers = #tpu.dot_dimension_numbers<[1], [0], [0], [1], [0, 0, 1, 1], [], []>} : vector<32x128xbf16>, vector<128x12xbf16>, vector<32x12xf32> -> vector<32x12xf32>
    %c0_17 = arith.constant 0 : index
    %c0_18 = arith.constant 0 : index
    %31 = vector.load %arg7[%c0_17, %c0_18] : memref<1x12xf32, #tpu.memory_space<vmem>>, vector<1x12xf32>
    %32 = vector.broadcast %31 : vector<1x12xf32> to vector<32x12xf32>
    %33 = arith.addf %30, %32 : vector<32x12xf32>
    %34 = arith.truncf %33 : vector<32x12xf32> to vector<32x12xbf16>
    %c0_19 = arith.constant 0 : index
    %c0_20 = arith.constant 0 : index
    %35 = vector.load %arg8[%c0_19, %c0_20] : memref<12x384xbf16, #tpu.memory_space<vmem>>, vector<12x384xbf16>
    %cst_21 = arith.constant dense<0.000000e+00> : vector<32x384xf32>
    %36 = tpu.matmul %34, %35, %cst_21 {dimension_numbers = #tpu.dot_dimension_numbers<[1], [0], [0], [1], [0, 0, 1, 1], [], []>} : vector<32x12xbf16>, vector<12x384xbf16>, vector<32x384xf32> -> vector<32x384xf32>
    %37 = arith.addf %28, %36 : vector<32x384xf32>
    %38 = arith.truncf %37 : vector<32x384xf32> to vector<32x384xbf16>
    %c0_22 = arith.constant 0 : index
    %c0_23 = arith.constant 0 : index
    %39 = vector.load %arg9[%c0_22, %c0_23] : memref<32x384xbf16, #tpu.memory_space<vmem>>, vector<32x384xbf16>
    tpu.vector_store %arg9[%c0_22, %c0_23], %38 {strides = array<i32>} : memref<32x384xbf16, #tpu.memory_space<vmem>>, vector<32x384xbf16>,
    return
  }
  func.func @transform_0(%arg0: i32) -> (i32, i32) {
    %c0_i32 = arith.constant 0 : i32
    %c0_i32_0 = arith.constant 0 : i32
    return %arg0, %c0_i32 : i32, i32
  }
  func.func @transform_1(%arg0: i32) -> (i32, i32) {
    %c0_i32 = arith.constant 0 : i32
    %c0_i32_0 = arith.constant 0 : i32
    %c0_i32_1 = arith.constant 0 : i32
    return %c0_i32, %c0_i32_0 : i32, i32
  }
  func.func @transform_2(%arg0: i32) -> (i32, i32) {
    %c0_i32 = arith.constant 0 : i32
    %c0_i32_0 = arith.constant 0 : i32
    %c0_i32_1 = arith.constant 0 : i32
    return %c0_i32, %c0_i32_0 : i32, i32
  }
  func.func @transform_3(%arg0: i32) -> (i32, i32) {
    %c0_i32 = arith.constant 0 : i32
    %c0_i32_0 = arith.constant 0 : i32
    %c0_i32_1 = arith.constant 0 : i32
    return %c0_i32, %c0_i32_0 : i32, i32
  }
  func.func @transform_4(%arg0: i32) -> (i32, i32) {
    %c0_i32 = arith.constant 0 : i32
    %c0_i32_0 = arith.constant 0 : i32
    %c0_i32_1 = arith.constant 0 : i32
    return %c0_i32, %c0_i32_0 : i32, i32
  }
  func.func @transform_5(%arg0: i32) -> (i32, i32) {
    %c0_i32 = arith.constant 0 : i32
    %c0_i32_0 = arith.constant 0 : i32
    %c0_i32_1 = arith.constant 0 : i32
    return %c0_i32, %c0_i32_0 : i32, i32
  }
  func.func @transform_6(%arg0: i32) -> (i32, i32) {
    %c0_i32 = arith.constant 0 : i32
    %c0_i32_0 = arith.constant 0 : i32
    %c0_i32_1 = arith.constant 0 : i32
    return %c0_i32, %c0_i32_0 : i32, i32
  }
  func.func @transform_7(%arg0: i32) -> (i32, i32) {
    %c0_i32 = arith.constant 0 : i32
    %c0_i32_0 = arith.constant 0 : i32
    %c0_i32_1 = arith.constant 0 : i32
    return %c0_i32, %c0_i32_0 : i32, i32
  }
  func.func @transform_8(%arg0: i32) -> (i32, i32) {
    %c0_i32 = arith.constant 0 : i32
    %c0_i32_0 = arith.constant 0 : i32
    return %arg0, %c0_i32 : i32, i32
  }
}

module attributes {stable_mosaic.version = 11 : i64} {
  func.func @_ln_linear_kernel(%arg0: i32, %arg1: i32, %arg2: memref<32x128xf32, #tpu.memory_space<vmem>>, %arg3: memref<1x128xf32, #tpu.memory_space<vmem>>, %arg4: memref<1x128xf32, #tpu.memory_space<vmem>>, %arg5: memref<128x1024xbf16, #tpu.memory_space<vmem>>, %arg6: memref<1x1024xf32, #tpu.memory_space<vmem>>, %arg7: memref<32x1024xf32, #tpu.memory_space<vmem>>, %arg8: memref<32x128xbf16, #tpu.memory_space<vmem>>) attributes {dimension_semantics = [#tpu.dimension_semantics<parallel>, #tpu.dimension_semantics<arbitrary>], iteration_bounds = array<i64: 1, 1>, scalar_prefetch = 0 : i64, scratch_operands = 1 : i64, tpu.core_type = #tpu.core_type<tc>, window_params = [{transform_indices = @transform_0, window_bounds = array<i64: 32, 128>}, {pipeline_mode = #tpu.pipeline_mode<synchronous>, transform_indices = @transform_1, window_bounds = array<i64: 1, 128>}, {pipeline_mode = #tpu.pipeline_mode<synchronous>, transform_indices = @transform_2, window_bounds = array<i64: 1, 128>}, {transform_indices = @transform_3, window_bounds = array<i64: 128, 1024>}, {transform_indices = @transform_4, window_bounds = array<i64: 1, 1024>}, {transform_indices = @transform_5, window_bounds = array<i64: 32, 1024>}]} {
    %c0_i32 = arith.constant 0 : i32
    %0 = arith.cmpi eq, %arg1, %c0_i32 : i32
    %1 = arith.extui %0 : i1 to i32
    %c0_i32_0 = arith.constant 0 : i32
    %2 = arith.cmpi ne, %1, %c0_i32_0 : i32
    scf.if %2 {
      %c0_8 = arith.constant 0 : index
      %c0_9 = arith.constant 0 : index
      %10 = vector.load %arg2[%c0_8, %c0_9] : memref<32x128xf32, #tpu.memory_space<vmem>>, vector<32x128xf32>
      %c0_10 = arith.constant 0 : index
      %c0_11 = arith.constant 0 : index
      %11 = vector.load %arg3[%c0_10, %c0_11] : memref<1x128xf32, #tpu.memory_space<vmem>>, vector<1x128xf32>
      %c0_12 = arith.constant 0 : index
      %c0_13 = arith.constant 0 : index
      %12 = vector.load %arg4[%c0_12, %c0_13] : memref<1x128xf32, #tpu.memory_space<vmem>>, vector<1x128xf32>
      %cst_14 = arith.constant dense<0.000000e+00> : vector<32xf32>
      %13 = vector.multi_reduction <add>, %10, %cst_14 [1] : vector<32x128xf32> to vector<32xf32>
      %14 = vector.shape_cast %13 : vector<32xf32> to vector<32x1xf32>
      %cst_15 = arith.constant 1.280000e+02 : f32
      %15 = vector.broadcast %cst_15 : f32 to vector<32x1xf32>
      %16 = arith.divf %14, %15 : vector<32x1xf32>
      %17 = vector.broadcast %16 : vector<32x1xf32> to vector<32x128xf32>
      %18 = arith.subf %10, %17 : vector<32x128xf32>
      %19 = arith.mulf %18, %18 : vector<32x128xf32>
      %cst_16 = arith.constant dense<0.000000e+00> : vector<32xf32>
      %20 = vector.multi_reduction <add>, %19, %cst_16 [1] : vector<32x128xf32> to vector<32xf32>
      %21 = vector.shape_cast %20 : vector<32xf32> to vector<32x1xf32>
      %cst_17 = arith.constant 1.280000e+02 : f32
      %22 = vector.broadcast %cst_17 : f32 to vector<32x1xf32>
      %23 = arith.divf %21, %22 : vector<32x1xf32>
      %cst_18 = arith.constant 9.99999974E-6 : f32
      %24 = vector.broadcast %cst_18 : f32 to vector<32x1xf32>
      %25 = arith.addf %23, %24 : vector<32x1xf32>
      %26 = math.rsqrt %25 : vector<32x1xf32>
      %27 = vector.broadcast %26 : vector<32x1xf32> to vector<32x128xf32>
      %28 = arith.mulf %18, %27 : vector<32x128xf32>
      %29 = vector.broadcast %11 : vector<1x128xf32> to vector<32x128xf32>
      %30 = arith.mulf %28, %29 : vector<32x128xf32>
      %31 = vector.broadcast %12 : vector<1x128xf32> to vector<32x128xf32>
      %32 = arith.addf %30, %31 : vector<32x128xf32>
      %33 = arith.truncf %32 : vector<32x128xf32> to vector<32x128xbf16>
      %c0_19 = arith.constant 0 : index
      %c0_20 = arith.constant 0 : index
      %34 = vector.load %arg8[%c0_19, %c0_20] : memref<32x128xbf16, #tpu.memory_space<vmem>>, vector<32x128xbf16>
      tpu.vector_store %arg8[%c0_19, %c0_20], %33 {strides = array<i32>} : memref<32x128xbf16, #tpu.memory_space<vmem>>, vector<32x128xbf16>,
    } else {
    }
    %c0 = arith.constant 0 : index
    %c0_1 = arith.constant 0 : index
    %3 = vector.load %arg8[%c0, %c0_1] : memref<32x128xbf16, #tpu.memory_space<vmem>>, vector<32x128xbf16>
    %c0_2 = arith.constant 0 : index
    %c0_3 = arith.constant 0 : index
    %4 = vector.load %arg5[%c0_2, %c0_3] : memref<128x1024xbf16, #tpu.memory_space<vmem>>, vector<128x1024xbf16>
    %cst = arith.constant dense<0.000000e+00> : vector<32x1024xf32>
    %5 = tpu.matmul %3, %4, %cst {dimension_numbers = #tpu.dot_dimension_numbers<[1], [0], [0], [1], [0, 0, 1, 1], [], []>} : vector<32x128xbf16>, vector<128x1024xbf16>, vector<32x1024xf32> -> vector<32x1024xf32>
    %c0_4 = arith.constant 0 : index
    %c0_5 = arith.constant 0 : index
    %6 = vector.load %arg6[%c0_4, %c0_5] : memref<1x1024xf32, #tpu.memory_space<vmem>>, vector<1x1024xf32>
    %7 = vector.broadcast %6 : vector<1x1024xf32> to vector<32x1024xf32>
    %8 = arith.addf %5, %7 : vector<32x1024xf32>
    %c0_6 = arith.constant 0 : index
    %c0_7 = arith.constant 0 : index
    %9 = vector.load %arg7[%c0_6, %c0_7] : memref<32x1024xf32, #tpu.memory_space<vmem>>, vector<32x1024xf32>
    tpu.vector_store %arg7[%c0_6, %c0_7], %8 {strides = array<i32>} : memref<32x1024xf32, #tpu.memory_space<vmem>>, vector<32x1024xf32>,
    return
  }
  func.func @transform_0(%arg0: i32, %arg1: i32) -> (i32, i32) {
    %c0_i32 = arith.constant 0 : i32
    %c0_i32_0 = arith.constant 0 : i32
    return %arg0, %c0_i32 : i32, i32
  }
  func.func @transform_1(%arg0: i32, %arg1: i32) -> (i32, i32) {
    %c0_i32 = arith.constant 0 : i32
    %c0_i32_0 = arith.constant 0 : i32
    %c0_i32_1 = arith.constant 0 : i32
    return %c0_i32, %c0_i32_0 : i32, i32
  }
  func.func @transform_2(%arg0: i32, %arg1: i32) -> (i32, i32) {
    %c0_i32 = arith.constant 0 : i32
    %c0_i32_0 = arith.constant 0 : i32
    %c0_i32_1 = arith.constant 0 : i32
    return %c0_i32, %c0_i32_0 : i32, i32
  }
  func.func @transform_3(%arg0: i32, %arg1: i32) -> (i32, i32) {
    %c0_i32 = arith.constant 0 : i32
    %c0_i32_0 = arith.constant 0 : i32
    return %c0_i32, %arg1 : i32, i32
  }
  func.func @transform_4(%arg0: i32, %arg1: i32) -> (i32, i32) {
    %c0_i32 = arith.constant 0 : i32
    %c0_i32_0 = arith.constant 0 : i32
    return %c0_i32, %arg1 : i32, i32
  }
  func.func @transform_5(%arg0: i32, %arg1: i32) -> (i32, i32) {
    %c0_i32 = arith.constant 0 : i32
    return %arg0, %arg1 : i32, i32
  }
}

</mosaic_0001>

<llo_original>
// kernel: gpt_forward.11
$region0: #{gpt_forward.11}
  #allocation0 [shape = 'u32[]', space=smem, size = 0x4, offset = 0x4, fixed_abs, tag = 'smem constant byte address 0x4 - core index']
  #allocation1 [shape = 'u32[144,128]{1,0:T(1,128)}', space=vmem, size = 0x12000, scoped, tag = 'internal scratch']
  #allocation2 [shape = 'bf16[32,128]{1,0:T(16,128)(2,1)}', space=vmem, size = 0x2000, scoped, tag = 'scratch operand']
  %s0 = inlined_call_operand.vmem [shape: f32[32,128], index: 0, kind: input, shape index: {}]
  %s1 = inlined_call_operand.vmem [shape: f32[1,128], index: 1, kind: input, shape index: {}]
  %s2 = inlined_call_operand.vmem [shape: f32[1,128], index: 2, kind: input, shape index: {}]
  %s3 = inlined_call_operand.vmem [shape: bf16[128,512], index: 3, kind: input, shape index: {}]
  %s4 = inlined_call_operand.vmem [shape: f32[1,512], index: 4, kind: input, shape index: {}]
  %s5 = inlined_call_operand.vmem [shape: bf16[32,512], index: 5, kind: output, shape index: {}]
  %s6 = sld [smem:[#allocation0]]
  $region34: #{gpt_forward.11} parent=0
    _
  %s8 = ssub.s32 1, %s6
  %s9 = scalar_select 0, %s8, %s6
  // Predicated region
  $region2: #{gpt_forward.11} parent=0 // pred_check
    _
  $region3: #{gpt_forward.11} parent=0 // pred_check_branch
    %11 = sbr.rel (0) target = $region5
  $region4: #{gpt_forward.11} parent=0 // pred_region
    _
  $region5: #{gpt_forward.11} parent=0 // pred_fallthru
    _
  // Predicated region
  $region6: #{gpt_forward.11} parent=0 // pred_check
    _
  $region7: #{gpt_forward.11} parent=0 // pred_check_branch
    %13 = sbr.rel (0) target = $region9
  $region8: #{gpt_forward.11} parent=0 // pred_region
    _
  $region9: #{gpt_forward.11} parent=0 // pred_fallthru
    _
  // Predicated region
  $region10: #{gpt_forward.11} parent=0 // pred_check
    _
  $region11: #{gpt_forward.11} parent=0 // pred_check_branch
    %15 = sbr.rel (0) target = $region13
  $region12: #{gpt_forward.11} parent=0 // pred_region
    _
  $region13: #{gpt_forward.11} parent=0 // pred_fallthru
    _
  // Predicated region
  $region14: #{gpt_forward.11} parent=0 // pred_check
    _
  $region15: #{gpt_forward.11} parent=0 // pred_check_branch
    %17 = sbr.rel (0) target = $region17
  $region16: #{gpt_forward.11} parent=0 // pred_region
    _
  $region17: #{gpt_forward.11} parent=0 // pred_fallthru
    _
  // Predicated region
  $region18: #{gpt_forward.11} parent=0 // pred_check
    _
  $region19: #{gpt_forward.11} parent=0 // pred_check_branch
    %19 = sbr.rel (0) target = $region21
  $region20: #{gpt_forward.11} parent=0 // pred_region
    _
  $region21: #{gpt_forward.11} parent=0 // pred_fallthru
    _
  %p21 = scmp.eq.s32.totalorder 0, 0
  // Predicated region
  $region22: #{gpt_forward.11} parent=0 // pred_check
    %p22 = pneg %p21
  $region23: #{gpt_forward.11} parent=0 // pred_check_branch
    %24 = sbr.rel (%p22) target = $region25
  $region24: #{gpt_forward.11} parent=0 // pred_region
    %v25 = vld [vmem:[%s0] sm:$0xff]
    %v26 = vld [vmem:[%s0 + $0x8] sm:$0xff]
    %v27 = vld [vmem:[%s0 + $0x10] sm:$0xff]
    %v28 = vld [vmem:[%s0 + $0x18] sm:$0xff]
    %v29 = vld [vmem:[%s1] sm:$0x1]
    %v30 = vld [vmem:[%s2] sm:$0x1]
    %31 = vadd.xlane.f32.xlu0 %v25
    %v32 = vpop.xlane.xlu0 %31
    %33 = vadd.xlane.f32.xlu0 %v26
    %v34 = vpop.xlane.xlu0 %33
    %35 = vadd.xlane.f32.xlu0 %v27
    %v36 = vpop.xlane.xlu0 %35
    %37 = vadd.xlane.f32.xlu0 %v28
    %v38 = vpop.xlane.xlu0 %37
    %v39 = vrcp.pop 128.0
    %v40 = vmul.f32 %v32, %v39
    %v41 = vmul.f32 %v34, %v39
    %v42 = vmul.f32 %v36, %v39
    %v43 = vmul.f32 %v38, %v39
    %v44 = vsub.f32 %v25, %v40
    %v45 = vsub.f32 %v26, %v41
    %v46 = vsub.f32 %v27, %v42
    %v47 = vsub.f32 %v28, %v43
    %v48 = vmul.f32 %v44, %v44
    %v49 = vmul.f32 %v45, %v45
    %v50 = vmul.f32 %v46, %v46
    %v51 = vmul.f32 %v47, %v47
    %52 = vadd.xlane.f32.xlu0 %v48
    %v53 = vpop.xlane.xlu0 %52
    %54 = vadd.xlane.f32.xlu0 %v49
    %v55 = vpop.xlane.xlu0 %54
    %56 = vadd.xlane.f32.xlu0 %v50
    %v57 = vpop.xlane.xlu0 %56
    %58 = vadd.xlane.f32.xlu0 %v51
    %v59 = vpop.xlane.xlu0 %58
    %v60 = vmul.f32 %v53, %v39
    %v61 = vmul.f32 %v55, %v39
    %v62 = vmul.f32 %v57, %v39
    %v63 = vmul.f32 %v59, %v39
    %v64 = vadd.f32 %v60, 1e-05
    %v65 = vadd.f32 %v61, 1e-05
    %v66 = vadd.f32 %v62, 1e-05
    %v67 = vadd.f32 %v63, 1e-05
    %v68 = vrsqrt.pop %v64
    %v69 = vrsqrt.pop %v65
    %v70 = vrsqrt.pop %v66
    %v71 = vrsqrt.pop %v67
    %v72 = vmul.f32 %v44, %v68
    %v73 = vmul.f32 %v45, %v69
    %v74 = vmul.f32 %v46, %v70
    %v75 = vmul.f32 %v47, %v71
    %v77 = vlaneseq
    %v78 = vshrl.u32 %v77, 7
    %v79 = vsub.s32 0, %v78
    %v80 = vrot.slane %v29, %v79
    %v82 = vmul.f32 %v72, %v80
    %v83 = vmul.f32 %v73, %v80
    %v84 = vmul.f32 %v74, %v80
    %v85 = vmul.f32 %v75, %v80
    %v87 = vlaneseq
    %v88 = vshrl.u32 %v87, 7
    %v89 = vsub.s32 0, %v88
    %v90 = vrot.slane %v30, %v89
    %v92 = vadd.f32 %v82, %v90
    %v93 = vadd.f32 %v83, %v90
    %v94 = vadd.f32 %v84, %v90
    %v95 = vadd.f32 %v85, %v90
    %v96 = vpack.c.bf16 %v93, %v92
    %v97 = vpack.c.bf16 %v95, %v94
    %98 = vst [vmem:[#allocation2] sm:$0xff] %v96
    %99 = vst [vmem:[#allocation2 + $0x8] sm:$0xff] %v97
  $region25: #{gpt_forward.11} parent=0 // pred_fallthru
    _
  %v100 = vld [vmem:[#allocation2] sm:$0xff]
  %v101 = vld [vmem:[#allocation2 + $0x8] sm:$0xff]
  %v102 = vld [vmem:[%s3] sm:$0xff]
  %v103 = vld [vmem:[%s3 + $0x8] sm:$0xff]
  %v104 = vld [vmem:[%s3 + $0x10] sm:$0xff]
  %v105 = vld [vmem:[%s3 + $0x18] sm:$0xff]
  %v106 = vld [vmem:[%s3 + $0x20] sm:$0xff]
  %v107 = vld [vmem:[%s3 + $0x28] sm:$0xff]
  %v108 = vld [vmem:[%s3 + $0x30] sm:$0xff]
  %v109 = vld [vmem:[%s3 + $0x38] sm:$0xff]
  %v110 = vld [vmem:[%s3 + $0x40] sm:$0xff]
  %v111 = vld [vmem:[%s3 + $0x48] sm:$0xff]
  %v112 = vld [vmem:[%s3 + $0x50] sm:$0xff]
  %v113 = vld [vmem:[%s3 + $0x58] sm:$0xff]
  %v114 = vld [vmem:[%s3 + $0x60] sm:$0xff]
  %v115 = vld [vmem:[%s3 + $0x68] sm:$0xff]
  %v116 = vld [vmem:[%s3 + $0x70] sm:$0xff]
  %v117 = vld [vmem:[%s3 + $0x78] sm:$0xff]
  %v118 = vld [vmem:[%s3 + $0x80] sm:$0xff]
  %v119 = vld [vmem:[%s3 + $0x88] sm:$0xff]
  %v120 = vld [vmem:[%s3 + $0x90] sm:$0xff]
  %v121 = vld [vmem:[%s3 + $0x98] sm:$0xff]
  %v122 = vld [vmem:[%s3 + $0xa0] sm:$0xff]
  %v123 = vld [vmem:[%s3 + $0xa8] sm:$0xff]
  %v124 = vld [vmem:[%s3 + $0xb0] sm:$0xff]
  %v125 = vld [vmem:[%s3 + $0xb8] sm:$0xff]
  %v126 = vld [vmem:[%s3 + $0xc0] sm:$0xff]
  %v127 = vld [vmem:[%s3 + $0xc8] sm:$0xff]
  %v128 = vld [vmem:[%s3 + $0xd0] sm:$0xff]
  %v129 = vld [vmem:[%s3 + $0xd8] sm:$0xff]
  %v130 = vld [vmem:[%s3 + $0xe0] sm:$0xff]
  %v131 = vld [vmem:[%s3 + $0xe8] sm:$0xff]
  %v132 = vld [vmem:[%s3 + $0xf0] sm:$0xff]
  %v133 = vld [vmem:[%s3 + $0xf8] sm:$0xff]
  %v134 = vld [vmem:[%s4] sm:$0xf]
  %v136 = vlaneseq
  %v137 = vshrl.u32 %v136, 7
  %v138 = vsub.s32 0, %v137
  %v139 = vrot.slane %v134, %v138
  %v140 = vlaneseq
  %v141 = vshrl.u32 %v140, 7
  %v142 = vsub.s32 1, %v141
  %v143 = vrot.slane %v134, %v142
  %v144 = vlaneseq
  %v145 = vshrl.u32 %v144, 7
  %v146 = vsub.s32 2, %v145
  %v147 = vrot.slane %v134, %v146
  %v148 = vlaneseq
  %v149 = vshrl.u32 %v148, 7
  %v150 = vsub.s32 3, %v149
  %v151 = vrot.slane %v134, %v150
  %v188 = vunpack.c.l.b16 %v102
  %v189 = vunpack.c.h.b16 %v102
  %v190 = vunpack.c.l.b16 %v103
  %v191 = vunpack.c.h.b16 %v103
  %v192 = vunpack.c.l.b16 %v104
  %v193 = vunpack.c.h.b16 %v104
  %v194 = vunpack.c.l.b16 %v105
  %v195 = vunpack.c.h.b16 %v105
  %v196 = vunpack.c.l.b16 %v106
  %v197 = vunpack.c.h.b16 %v106
  %v198 = vunpack.c.l.b16 %v107
  %v199 = vunpack.c.h.b16 %v107
  %v200 = vunpack.c.l.b16 %v108
  %v201 = vunpack.c.h.b16 %v108
  %v202 = vunpack.c.l.b16 %v109
  %v203 = vunpack.c.h.b16 %v109
  %v204 = vunpack.c.l.b16 %v110
  %v205 = vunpack.c.h.b16 %v110
  %v206 = vunpack.c.l.b16 %v111
  %v207 = vunpack.c.h.b16 %v111
  %v208 = vunpack.c.l.b16 %v112
  %v209 = vunpack.c.h.b16 %v112
  %v210 = vunpack.c.l.b16 %v113
  %v211 = vunpack.c.h.b16 %v113
  %v212 = vunpack.c.l.b16 %v114
  %v213 = vunpack.c.h.b16 %v114
  %v214 = vunpack.c.l.b16 %v115
  %v215 = vunpack.c.h.b16 %v115
  %v216 = vunpack.c.l.b16 %v116
  %v217 = vunpack.c.h.b16 %v116
  %v218 = vunpack.c.l.b16 %v117
  %v219 = vunpack.c.h.b16 %v117
  %v220 = vunpack.c.l.b16 %v118
  %v221 = vunpack.c.h.b16 %v118
  %v222 = vunpack.c.l.b16 %v119
  %v223 = vunpack.c.h.b16 %v119
  %v224 = vunpack.c.l.b16 %v120
  %v225 = vunpack.c.h.b16 %v120
  %v226 = vunpack.c.l.b16 %v121
  %v227 = vunpack.c.h.b16 %v121
  %v228 = vunpack.c.l.b16 %v122
  %v229 = vunpack.c.h.b16 %v122
  %v230 = vunpack.c.l.b16 %v123
  %v231 = vunpack.c.h.b16 %v123
  %v232 = vunpack.c.l.b16 %v124
  %v233 = vunpack.c.h.b16 %v124
  %v234 = vunpack.c.l.b16 %v125
  %v235 = vunpack.c.h.b16 %v125
  %v236 = vunpack.c.l.b16 %v126
  %v237 = vunpack.c.h.b16 %v126
  %v238 = vunpack.c.l.b16 %v127
  %v239 = vunpack.c.h.b16 %v127
  %v240 = vunpack.c.l.b16 %v128
  %v241 = vunpack.c.h.b16 %v128
  %v242 = vunpack.c.l.b16 %v129
  %v243 = vunpack.c.h.b16 %v129
  %v244 = vunpack.c.l.b16 %v130
  %v245 = vunpack.c.h.b16 %v130
  %v246 = vunpack.c.l.b16 %v131
  %v247 = vunpack.c.h.b16 %v131
  %v248 = vunpack.c.l.b16 %v132
  %v249 = vunpack.c.h.b16 %v132
  %v250 = vunpack.c.l.b16 %v133
  %v251 = vunpack.c.h.b16 %v133
  %v252 = vpack.c.b16 %v192, %v188
  %v253 = vpack.c.b16 %v193, %v189
  %v254 = vpack.c.b16 %v194, %v190
  %v255 = vpack.c.b16 %v195, %v191
  %v256 = vpack.c.b16 %v200, %v196
  %v257 = vpack.c.b16 %v201, %v197
  %v258 = vpack.c.b16 %v202, %v198
  %v259 = vpack.c.b16 %v203, %v199
  %v260 = vpack.c.b16 %v208, %v204
  %v261 = vpack.c.b16 %v209, %v205
  %v262 = vpack.c.b16 %v210, %v206
  %v263 = vpack.c.b16 %v211, %v207
  %v264 = vpack.c.b16 %v216, %v212
  %v265 = vpack.c.b16 %v217, %v213
  %v266 = vpack.c.b16 %v218, %v214
  %v267 = vpack.c.b16 %v219, %v215
  %v268 = vpack.c.b16 %v224, %v220
  %v269 = vpack.c.b16 %v225, %v221
  %v270 = vpack.c.b16 %v226, %v222
  %v271 = vpack.c.b16 %v227, %v223
  %v272 = vpack.c.b16 %v232, %v228
  %v273 = vpack.c.b16 %v233, %v229
  %v274 = vpack.c.b16 %v234, %v230
  %v275 = vpack.c.b16 %v235, %v231
  %v276 = vpack.c.b16 %v240, %v236
  %v277 = vpack.c.b16 %v241, %v237
  %v278 = vpack.c.b16 %v242, %v238
  %v279 = vpack.c.b16 %v243, %v239
  %v280 = vpack.c.b16 %v248, %v244
  %v281 = vpack.c.b16 %v249, %v245
  %v282 = vpack.c.b16 %v250, %v246
  %v283 = vpack.c.b16 %v251, %v247
  %316 = vmatprep.subr.bf16.mxu0 %v253
  %317 = vmatpush1.bf16.msra.mxu0 %v252
  %318 = vmatprep.subr.bf16.mxu0 %v257
  %319 = vmatpush1.bf16.msra.mxu0 %v256
  %320 = vmatprep.subr.bf16.mxu0 %v261
  %321 = vmatpush1.bf16.msra.mxu0 %v260
  %322 = vmatprep.subr.bf16.mxu0 %v265
  %323 = vmatpush1.bf16.msra.mxu0 %v264
  %324 = vmatprep.subr.bf16.mxu0 %v269
  %325 = vmatpush1.bf16.msra.mxu0 %v268
  %326 = vmatprep.subr.bf16.mxu0 %v273
  %327 = vmatpush1.bf16.msra.mxu0 %v272
  %328 = vmatprep.subr.bf16.mxu0 %v277
  %329 = vmatpush1.bf16.msra.mxu0 %v276
  %330 = vmatprep.subr.bf16.mxu0 %v281
  %331 = vmatpush1.bf16.msra.mxu0 %v280
  %332 = vmatprep.subr.bf16.mxu0 0
  %333 = vmatpush1.bf16.msra.mxu0 0
  %334 = vmatprep.subr.bf16.mxu0 0
  %335 = vmatpush1.bf16.msra.mxu0 0
  %336 = vmatprep.subr.bf16.mxu0 0
  %337 = vmatpush1.bf16.msra.mxu0 0
  %338 = vmatprep.subr.bf16.mxu0 0
  %339 = vmatpush1.bf16.msra.mxu0 0
  %340 = vmatprep.subr.bf16.mxu0 0
  %341 = vmatpush1.bf16.msra.mxu0 0
  %342 = vmatprep.subr.bf16.mxu0 0
  %343 = vmatpush1.bf16.msra.mxu0 0
  %344 = vmatprep.subr.bf16.mxu0 0
  %345 = vmatpush1.bf16.msra.mxu0 0
  %346 = vmatprep.subr.bf16.mxu0 0
  %347 = vmatpush1.bf16.msra.mxu0 0
  %348 = vmatprep.mubr.bf16.mxu0 0
  %349 = vmatmul.mubr.bf16.gmra.mrb[0].mxu0 %v100
  %v350 = vpop.f32.mrb[0].mxu0
  %v351 = vadd.f32 %v139, %v350
  %v352 = vpop.f32.mrb[0].mxu0
  %v353 = vadd.f32 %v143, %v352
  %v354 = vpop.f32.mrb[0].mxu0
  %v355 = vadd.f32 %v139, %v354
  %v356 = vpop.f32.mrb[0].mxu0
  %v357 = vadd.f32 %v143, %v356
  %358 = vmatprep.mubr.bf16.mxu0 0
  %359 = vmatmul.mubr.bf16.gmra.mrb[0].mxu0 %v101
  %v360 = vpop.f32.mrb[0].mxu0
  %v361 = vadd.f32 %v139, %v360
  %v362 = vpop.f32.mrb[0].mxu0
  %v363 = vadd.f32 %v143, %v362
  %v364 = vpop.f32.mrb[0].mxu0
  %v365 = vadd.f32 %v139, %v364
  %v366 = vpop.f32.mrb[0].mxu0
  %v367 = vadd.f32 %v143, %v366
  %368 = vdwg.mxu0
  %369 = vmatprep.subr.bf16.mxu0 %v255
  %370 = vmatpush1.bf16.msra.mxu0 %v254
  %371 = vmatprep.subr.bf16.mxu0 %v259
  %372 = vmatpush1.bf16.msra.mxu0 %v258
  %373 = vmatprep.subr.bf16.mxu0 %v263
  %374 = vmatpush1.bf16.msra.mxu0 %v262
  %375 = vmatprep.subr.bf16.mxu0 %v267
  %376 = vmatpush1.bf16.msra.mxu0 %v266
  %377 = vmatprep.subr.bf16.mxu0 %v271
  %378 = vmatpush1.bf16.msra.mxu0 %v270
  %379 = vmatprep.subr.bf16.mxu0 %v275
  %380 = vmatpush1.bf16.msra.mxu0 %v274
  %381 = vmatprep.subr.bf16.mxu0 %v279
  %382 = vmatpush1.bf16.msra.mxu0 %v278
  %383 = vmatprep.subr.bf16.mxu0 %v283
  %384 = vmatpush1.bf16.msra.mxu0 %v282
  %385 = vmatprep.subr.bf16.mxu0 0
  %386 = vmatpush1.bf16.msra.mxu0 0
  %387 = vmatprep.subr.bf16.mxu0 0
  %388 = vmatpush1.bf16.msra.mxu0 0
  %389 = vmatprep.subr.bf16.mxu0 0
  %390 = vmatpush1.bf16.msra.mxu0 0
  %391 = vmatprep.subr.bf16.mxu0 0
  %392 = vmatpush1.bf16.msra.mxu0 0
  %393 = vmatprep.subr.bf16.mxu0 0
  %394 = vmatpush1.bf16.msra.mxu0 0
  %395 = vmatprep.subr.bf16.mxu0 0
  %396 = vmatpush1.bf16.msra.mxu0 0
  %397 = vmatprep.subr.bf16.mxu0 0
  %398 = vmatpush1.bf16.msra.mxu0 0
  %399 = vmatprep.subr.bf16.mxu0 0
  %400 = vmatpush1.bf16.msra.mxu0 0
  %401 = vmatprep.mubr.bf16.mxu0 0
  %402 = vmatmul.mubr.bf16.gmra.mrb[0].mxu0 %v100
  %v403 = vpop.f32.mrb[0].mxu0
  %v404 = vadd.f32 %v147, %v403
  %v405 = vpop.f32.mrb[0].mxu0
  %v406 = vadd.f32 %v151, %v405
  %v407 = vpop.f32.mrb[0].mxu0
  %v408 = vadd.f32 %v147, %v407
  %v409 = vpop.f32.mrb[0].mxu0
  %v410 = vadd.f32 %v151, %v409
  %411 = vmatprep.mubr.bf16.mxu0 0
  %412 = vmatmul.mubr.bf16.gmra.mrb[0].mxu0 %v101
  %v413 = vpop.f32.mrb[0].mxu0
  %v414 = vadd.f32 %v147, %v413
  %v415 = vpop.f32.mrb[0].mxu0
  %v416 = vadd.f32 %v151, %v415
  %v417 = vpop.f32.mrb[0].mxu0
  %v418 = vadd.f32 %v147, %v417
  %v419 = vpop.f32.mrb[0].mxu0
  %v420 = vadd.f32 %v151, %v419
  %421 = vdwg.mxu0
  %v422 = vmul.f32 %v351, 0.5
  %v423 = vmul.f32 %v353, 0.5
  %v424 = vmul.f32 %v404, 0.5
  %v425 = vmul.f32 %v406, 0.5
  %v426 = vmul.f32 %v355, 0.5
  %v427 = vmul.f32 %v357, 0.5
  %v428 = vmul.f32 %v408, 0.5
  %v429 = vmul.f32 %v410, 0.5
  %v430 = vmul.f32 %v361, 0.5
  %v431 = vmul.f32 %v363, 0.5
  %v432 = vmul.f32 %v414, 0.5
  %v433 = vmul.f32 %v416, 0.5
  %v434 = vmul.f32 %v365, 0.5
  %v435 = vmul.f32 %v367, 0.5
  %v436 = vmul.f32 %v418, 0.5
  %v437 = vmul.f32 %v420, 0.5
  %v438 = vmul.f32 %v351, 0.70710677
  %v439 = vmul.f32 %v353, 0.70710677
  %v440 = vmul.f32 %v404, 0.70710677
  %v441 = vmul.f32 %v406, 0.70710677
  %v442 = vmul.f32 %v355, 0.70710677
  %v443 = vmul.f32 %v357, 0.70710677
  %v444 = vmul.f32 %v408, 0.70710677
  %v445 = vmul.f32 %v410, 0.70710677
  %v446 = vmul.f32 %v361, 0.70710677
  %v447 = vmul.f32 %v363, 0.70710677
  %v448 = vmul.f32 %v414, 0.70710677
  %v449 = vmul.f32 %v416, 0.70710677
  %v450 = vmul.f32 %v365, 0.70710677
  %v451 = vmul.f32 %v367, 0.70710677
  %v452 = vmul.f32 %v418, 0.70710677
  %v453 = vmul.f32 %v420, 0.70710677
  %v454 = verf.f32.pop %v438
  %v455 = verf.f32.pop %v439
  %v456 = verf.f32.pop %v440
  %v457 = verf.f32.pop %v441
  %v458 = verf.f32.pop %v442
  %v459 = verf.f32.pop %v443
  %v460 = verf.f32.pop %v444
  %v461 = verf.f32.pop %v445
  %v462 = verf.f32.pop %v446
  %v463 = verf.f32.pop %v447
  %v464 = verf.f32.pop %v448
  %v465 = verf.f32.pop %v449
  %v466 = verf.f32.pop %v450
  %v467 = verf.f32.pop %v451
  %v468 = verf.f32.pop %v452
  %v469 = verf.f32.pop %v453
  %v470 = vadd.f32 %v454, 1.0
  %v471 = vadd.f32 %v455, 1.0
  %v472 = vadd.f32 %v456, 1.0
  %v473 = vadd.f32 %v457, 1.0
  %v474 = vadd.f32 %v458, 1.0
  %v475 = vadd.f32 %v459, 1.0
  %v476 = vadd.f32 %v460, 1.0
  %v477 = vadd.f32 %v461, 1.0
  %v478 = vadd.f32 %v462, 1.0
  %v479 = vadd.f32 %v463, 1.0
  %v480 = vadd.f32 %v464, 1.0
  %v481 = vadd.f32 %v465, 1.0
  %v482 = vadd.f32 %v466, 1.0
  %v483 = vadd.f32 %v467, 1.0
  %v484 = vadd.f32 %v468, 1.0
  %v485 = vadd.f32 %v469, 1.0
  %v486 = vmul.f32 %v422, %v470
  %v487 = vmul.f32 %v423, %v471
  %v488 = vmul.f32 %v424, %v472
  %v489 = vmul.f32 %v425, %v473
  %v490 = vmul.f32 %v426, %v474
  %v491 = vmul.f32 %v427, %v475
  %v492 = vmul.f32 %v428, %v476
  %v493 = vmul.f32 %v429, %v477
  %v494 = vmul.f32 %v430, %v478
  %v495 = vmul.f32 %v431, %v479
  %v496 = vmul.f32 %v432, %v480
  %v497 = vmul.f32 %v433, %v481
  %v498 = vmul.f32 %v434, %v482
  %v499 = vmul.f32 %v435, %v483
  %v500 = vmul.f32 %v436, %v484
  %v501 = vmul.f32 %v437, %v485
  %v502 = vpack.c.bf16 %v490, %v486
  %v503 = vpack.c.bf16 %v491, %v487
  %v504 = vpack.c.bf16 %v492, %v488
  %v505 = vpack.c.bf16 %v493, %v489
  %v506 = vpack.c.bf16 %v498, %v494
  %v507 = vpack.c.bf16 %v499, %v495
  %v508 = vpack.c.bf16 %v500, %v496
  %v509 = vpack.c.bf16 %v501, %v497
  %v518 = vunpack.c.l.b16 %v502
  %v519 = vunpack.c.l.b16 %v503
  %v520 = vunpack.c.l.b16 %v504
  %v521 = vunpack.c.l.b16 %v505
  %v522 = vunpack.c.h.b16 %v502
  %v523 = vunpack.c.h.b16 %v503
  %v524 = vunpack.c.h.b16 %v504
  %v525 = vunpack.c.h.b16 %v505
  %v526 = vunpack.c.l.b16 %v506
  %v527 = vunpack.c.l.b16 %v507
  %v528 = vunpack.c.l.b16 %v508
  %v529 = vunpack.c.l.b16 %v509
  %v530 = vunpack.c.h.b16 %v506
  %v531 = vunpack.c.h.b16 %v507
  %v532 = vunpack.c.h.b16 %v508
  %v533 = vunpack.c.h.b16 %v509
  %v534 = vpack.c.b16 %v519, %v518
  %v535 = vpack.c.b16 %v521, %v520
  %v536 = vpack.c.b16 %v523, %v522
  %v537 = vpack.c.b16 %v525, %v524
  %v538 = vpack.c.b16 %v527, %v526
  %v539 = vpack.c.b16 %v529, %v528
  %v540 = vpack.c.b16 %v531, %v530
  %v541 = vpack.c.b16 %v533, %v532
  %550 = vst [vmem:[%s5] sm:$0xff] %v534
  %551 = vst [vmem:[%s5 + $0x8] sm:$0xff] %v535
  %552 = vst [vmem:[%s5 + $0x10] sm:$0xff] %v536
  %553 = vst [vmem:[%s5 + $0x18] sm:$0xff] %v537
  %554 = vst [vmem:[%s5 + $0x20] sm:$0xff] %v538
  %555 = vst [vmem:[%s5 + $0x28] sm:$0xff] %v539
  %556 = vst [vmem:[%s5 + $0x30] sm:$0xff] %v540
  %557 = vst [vmem:[%s5 + $0x38] sm:$0xff] %v541
  // Predicated region
  $region26: #{gpt_forward.11} parent=0 // pred_check
    _
  $region27: #{gpt_forward.11} parent=0 // pred_check_branch
    %559 = sbr.rel (0) target = $region29
  $region28: #{gpt_forward.11} parent=0 // pred_region
    _
  $region29: #{gpt_forward.11} parent=0 // pred_fallthru
    _
  // Predicated region
  $region30: #{gpt_forward.11} parent=0 // pred_check
    _
  $region31: #{gpt_forward.11} parent=0 // pred_check_branch
    %561 = sbr.rel (0) target = $region33
  $region32: #{gpt_forward.11} parent=0 // pred_region
    _
  $region33: #{gpt_forward.11} parent=0 // pred_fallthru
    _

// kernel: gpt_forward.10
$region0: #{gpt_forward.10}
  #allocation0 [shape = 'u32[]', space=smem, size = 0x4, offset = 0x4, fixed_abs, tag = 'smem constant byte address 0x4 - core index']
  #allocation1 [shape = 'u32[144,128]{1,0:T(1,128)}', space=vmem, size = 0x12000, scoped, tag = 'internal scratch']
  %s0 = inlined_call_operand.vmem [shape: bf16[2,16,384], index: 0, kind: input, shape index: {}, may-alias: {0,1,2}]
  %s1 = inlined_call_operand.vmem [shape: bf16[2,16,384], index: 1, kind: input, shape index: {}, may-alias: {0,1,2}]
  %s2 = inlined_call_operand.vmem [shape: bf16[2,16,384], index: 2, kind: input, shape index: {}, may-alias: {0,1,2}]
  %s3 = inlined_call_operand.vmem [shape: bf16[128,128], index: 3, kind: input, shape index: {}]
  %s4 = inlined_call_operand.vmem [shape: f32[1,128], index: 4, kind: input, shape index: {}]
  %s5 = inlined_call_operand.vmem [shape: bf16[128,4], index: 5, kind: input, shape index: {}]
  %s6 = inlined_call_operand.vmem [shape: bf16[4,128], index: 6, kind: input, shape index: {}]
  %s7 = inlined_call_operand.vmem [shape: f32[2,16,128], index: 7, kind: input, shape index: {}, may-alias: {7,8}]
  %s8 = inlined_call_operand.vmem [shape: f32[2,16,128], index: 8, kind: output, shape index: {}, may-alias: {7,8}]
  %s9 = sld [smem:[#allocation0]]
  $region188: #{gpt_forward.10} parent=0
    _
  %s11 = ssub.s32 1, %s9
  %s12 = scalar_select 0, %s11, %s9
  $region1: #{gpt_forward.10} parent=0
    #allocation2 [shape = 'u8[8192]{0}', space=vmem, size = 0x2000, scoped, tag = 'input window, operand 0']
    #allocation3 [shape = 'u8[8192]{0}', space=vmem, size = 0x2000, scoped, tag = 'input window, operand 1']
    #allocation4 [shape = 'u8[8192]{0}', space=vmem, size = 0x2000, scoped, tag = 'input window, operand 2']
    loop: start=0, step=1, limit=4
    $region2: #{gpt_forward.10} parent=1 // loop_pre_header
      _
    $region3: #{gpt_forward.10} parent=1 // loop_header
      %s14 = sphi 0, %s18
      %p15 = scmp.ge.s32.totalorder %s14, 4
      %s21 = sphi 0, %s33
      %s22 = sphi 0, %s29
      %s23 = sphi 0, %s21
      %s24 = sphi 0, %s22
      %s25 = sphi 0, %s23
      %s26 = sphi 0, %s24
      %s38 = sphi 0, %s40
      %s41 = sphi 0, %s38
      %s42 = sphi 0, %s41
      %s58 = sphi 0, %s42
      %s64 = sphi 0, %s66
      %s67 = sphi 0, %s64
      %s68 = sphi 0, %s67
      %s84 = sphi 0, %s68
      %s90 = sphi 0, %s92
      %s93 = sphi 0, %s90
      %s94 = sphi 0, %s93
      %s110 = sphi 0, %s94
      %s114 = sphi 0, %s114
      %s116 = sphi 0, %s114
      %s117 = sphi 0, %s116
      %s131 = sphi 0, %s117
      %s135 = sphi 0, %s135
      %s137 = sphi 0, %s135
      %s138 = sphi 0, %s137
      %s152 = sphi 0, %s138
      %s156 = sphi 0, %s156
      %s158 = sphi 0, %s156
      %s159 = sphi 0, %s158
      %s173 = sphi 0, %s159
      %s177 = sphi 0, %s177
      %s179 = sphi 0, %s177
      %s180 = sphi 0, %s179
      %s194 = sphi 0, %s180
      %s202 = sphi 0, %s204
      %s205 = sphi 0, %s202
      %s206 = sphi 0, %s205
      %s222 = sphi 0, %s206
      %s230 = sphi 0, %s232
      %s233 = sphi 0, %s230
      %s234 = sphi 0, %s233
      %s250 = sphi 0, %s234
    $region4: #{gpt_forward.10} parent=1 // loop_header_branch
      %17 = sbr.rel (%p15) target = $region8
    $region5: #{gpt_forward.10} parent=1 // loop_body
      %s19 = ssub.s32 %s14, 1
      %s20 = ssub.s32 %s14, 2
      %s27 = sadd.s32 1, %s22
      %p28 = scmp.ge.s32.totalorder %s27, 1
      %s29 = scalar_select %p28, 0, %s27
      %s30 = sadd.s32 1, %s21
      %s31 = scalar_select %p28, %s30, %s21
      %p32 = scmp.ge.s32.totalorder %s31, 2
      %s33 = scalar_select %p32, 0, %s31
      %s34 = ssub.s32 %s21, %s33
      %s35 = ssub.s32 %s22, %s29
      %s36 = sor.u32 %s34, %s35
      %p37 = scmp.eq.s32.totalorder %s36, 0
      %s39 = sadd.s32 %s38, 1
      %s40 = scalar_select %p37, %s38, %s39
      %p43 = pneg %p37
      %p44 = scmp.eq.s32.totalorder %s14, 1
      %p45 = por %p43, %p44
      %p46 = scmp.ne.s32.totalorder %s38, %s41
      %p47 = scmp.eq.s32.totalorder %s14, 0
      %p48 = por %p46, %p47
      %p49 = scmp.ne.s32.totalorder %s38, %s41
      %p50 = scmp.eq.s32.totalorder %s19, 1
      %p51 = por %p49, %p50
      %p52 = scmp.ne.s32.totalorder %s41, %s42
      %p53 = scmp.eq.s32.totalorder %s19, 0
      %p54 = por %p52, %p53
      %p55 = scmp.ne.s32.totalorder %s41, %s42
      %p56 = scmp.eq.s32.totalorder %s20, 1
      %p57 = por %p55, %p56
      %p59 = scmp.ne.s32.totalorder %s42, %s58
      %p60 = scmp.eq.s32.totalorder %s20, 0
      %p61 = por %p59, %p60
      %s62 = ssub.s32 %s21, %s33
      %p63 = scmp.eq.s32.totalorder %s62, 0
      %s65 = sadd.s32 %s64, 1
      %s66 = scalar_select %p63, %s64, %s65
      %p69 = pneg %p63
      %p70 = scmp.eq.s32.totalorder %s14, 1
      %p71 = por %p69, %p70
      %p72 = scmp.ne.s32.totalorder %s64, %s67
      %p73 = scmp.eq.s32.totalorder %s14, 0
      %p74 = por %p72, %p73
      %p75 = scmp.ne.s32.totalorder %s64, %s67
      %p76 = scmp.eq.s32.totalorder %s19, 1
      %p77 = por %p75, %p76
      %p78 = scmp.ne.s32.totalorder %s67, %s68
      %p79 = scmp.eq.s32.totalorder %s19, 0
      %p80 = por %p78, %p79
      %p81 = scmp.ne.s32.totalorder %s67, %s68
      %p82 = scmp.eq.s32.totalorder %s20, 1
      %p83 = por %p81, %p82
      %p85 = scmp.ne.s32.totalorder %s68, %s84
      %p86 = scmp.eq.s32.totalorder %s20, 0
      %p87 = por %p85, %p86
      %s88 = ssub.s32 %s21, %s33
      %p89 = scmp.eq.s32.totalorder %s88, 0
      %s91 = sadd.s32 %s90, 1
      %s92 = scalar_select %p89, %s90, %s91
      %p95 = pneg %p89
      %p96 = scmp.eq.s32.totalorder %s14, 1
      %p97 = por %p95, %p96
      %p98 = scmp.ne.s32.totalorder %s90, %s93
      %p99 = scmp.eq.s32.totalorder %s14, 0
      %p100 = por %p98, %p99
      %p101 = scmp.ne.s32.totalorder %s90, %s93
      %p102 = scmp.eq.s32.totalorder %s19, 1
      %p103 = por %p101, %p102
      %p104 = scmp.ne.s32.totalorder %s93, %s94
      %p105 = scmp.eq.s32.totalorder %s19, 0
      %p106 = por %p104, %p105
      %p107 = scmp.ne.s32.totalorder %s93, %s94
      %p108 = scmp.eq.s32.totalorder %s20, 1
      %p109 = por %p107, %p108
      %p111 = scmp.ne.s32.totalorder %s94, %s110
      %p112 = scmp.eq.s32.totalorder %s20, 0
      %p113 = por %p111, %p112
      %s115 = sadd.s32 %s114, 1
      %p118 = scmp.eq.s32.totalorder %s14, 1
      %p119 = scmp.ne.s32.totalorder %s114, %s116
      %p120 = scmp.eq.s32.totalorder %s14, 0
      %p121 = por %p119, %p120
      %p122 = scmp.ne.s32.totalorder %s114, %s116
      %p123 = scmp.eq.s32.totalorder %s19, 1
      %p124 = por %p122, %p123
      %p125 = scmp.ne.s32.totalorder %s116, %s117
      %p126 = scmp.eq.s32.totalorder %s19, 0
      %p127 = por %p125, %p126
      %p128 = scmp.ne.s32.totalorder %s116, %s117
      %p129 = scmp.eq.s32.totalorder %s20, 1
      %p130 = por %p128, %p129
      %p132 = scmp.ne.s32.totalorder %s117, %s131
      %p133 = scmp.eq.s32.totalorder %s20, 0
      %p134 = por %p132, %p133
      %s136 = sadd.s32 %s135, 1
      %p139 = scmp.eq.s32.totalorder %s14, 1
      %p140 = scmp.ne.s32.totalorder %s135, %s137
      %p141 = scmp.eq.s32.totalorder %s14, 0
      %p142 = por %p140, %p141
      %p143 = scmp.ne.s32.totalorder %s135, %s137
      %p144 = scmp.eq.s32.totalorder %s19, 1
      %p145 = por %p143, %p144
      %p146 = scmp.ne.s32.totalorder %s137, %s138
      %p147 = scmp.eq.s32.totalorder %s19, 0
      %p148 = por %p146, %p147
      %p149 = scmp.ne.s32.totalorder %s137, %s138
      %p150 = scmp.eq.s32.totalorder %s20, 1
      %p151 = por %p149, %p150
      %p153 = scmp.ne.s32.totalorder %s138, %s152
      %p154 = scmp.eq.s32.totalorder %s20, 0
      %p155 = por %p153, %p154
      %s157 = sadd.s32 %s156, 1
      %p160 = scmp.eq.s32.totalorder %s14, 1
      %p161 = scmp.ne.s32.totalorder %s156, %s158
      %p162 = scmp.eq.s32.totalorder %s14, 0
      %p163 = por %p161, %p162
      %p164 = scmp.ne.s32.totalorder %s156, %s158
      %p165 = scmp.eq.s32.totalorder %s19, 1
      %p166 = por %p164, %p165
      %p167 = scmp.ne.s32.totalorder %s158, %s159
      %p168 = scmp.eq.s32.totalorder %s19, 0
      %p169 = por %p167, %p168
      %p170 = scmp.ne.s32.totalorder %s158, %s159
      %p171 = scmp.eq.s32.totalorder %s20, 1
      %p172 = por %p170, %p171
      %p174 = scmp.ne.s32.totalorder %s159, %s173
      %p175 = scmp.eq.s32.totalorder %s20, 0
      %p176 = por %p174, %p175
      %s178 = sadd.s32 %s177, 1
      %p181 = scmp.eq.s32.totalorder %s14, 1
      %p182 = scmp.ne.s32.totalorder %s177, %s179
      %p183 = scmp.eq.s32.totalorder %s14, 0
      %p184 = por %p182, %p183
      %p185 = scmp.ne.s32.totalorder %s177, %s179
      %p186 = scmp.eq.s32.totalorder %s19, 1
      %p187 = por %p185, %p186
      %p188 = scmp.ne.s32.totalorder %s179, %s180
      %p189 = scmp.eq.s32.totalorder %s19, 0
      %p190 = por %p188, %p189
      %p191 = scmp.ne.s32.totalorder %s179, %s180
      %p192 = scmp.eq.s32.totalorder %s20, 1
      %p193 = por %p191, %p192
      %p195 = scmp.ne.s32.totalorder %s180, %s194
      %p196 = scmp.eq.s32.totalorder %s20, 0
      %p197 = por %p195, %p196
      %s198 = ssub.s32 %s21, %s33
      %s199 = ssub.s32 %s22, %s29
      %s200 = sor.u32 %s198, %s199
      %p201 = scmp.eq.s32.totalorder %s200, 0
      %s203 = sadd.s32 %s202, 1
      %s204 = scalar_select %p201, %s202, %s203
      %p207 = pneg %p201
      %p208 = scmp.eq.s32.totalorder %s14, 1
      %p209 = por %p207, %p208
      %p210 = scmp.ne.s32.totalorder %s202, %s205
      %p211 = scmp.eq.s32.totalorder %s14, 0
      %p212 = por %p210, %p211
      %p213 = scmp.ne.s32.totalorder %s202, %s205
      %p214 = scmp.eq.s32.totalorder %s19, 1
      %p215 = por %p213, %p214
      %p216 = scmp.ne.s32.totalorder %s205, %s206
      %p217 = scmp.eq.s32.totalorder %s19, 0
      %p218 = por %p216, %p217
      %p219 = scmp.ne.s32.totalorder %s205, %s206
      %p220 = scmp.eq.s32.totalorder %s20, 1
      %p221 = por %p219, %p220
      %p223 = scmp.ne.s32.totalorder %s206, %s222
      %p224 = scmp.eq.s32.totalorder %s20, 0
      %p225 = por %p223, %p224
      %s226 = ssub.s32 %s21, %s33
      %s227 = ssub.s32 %s22, %s29
      %s228 = sor.u32 %s226, %s227
      %p229 = scmp.eq.s32.totalorder %s228, 0
      %s231 = sadd.s32 %s230, 1
      %s232 = scalar_select %p229, %s230, %s231
      %p235 = pneg %p229
      %p236 = scmp.eq.s32.totalorder %s14, 1
      %p237 = por %p235, %p236
      %p238 = scmp.ne.s32.totalorder %s230, %s233
      %p239 = scmp.eq.s32.totalorder %s14, 0
      %p240 = por %p238, %p239
      %p241 = scmp.ne.s32.totalorder %s230, %s233
      %p242 = scmp.eq.s32.totalorder %s19, 1
      %p243 = por %p241, %p242
      %p244 = scmp.ne.s32.totalorder %s233, %s234
      %p245 = scmp.eq.s32.totalorder %s19, 0
      %p246 = por %p244, %p245
      %p247 = scmp.ne.s32.totalorder %s233, %s234
      %p248 = scmp.eq.s32.totalorder %s20, 1
      %p249 = por %p247, %p248
      %p251 = scmp.ne.s32.totalorder %s234, %s250
      %p252 = scmp.eq.s32.totalorder %s20, 0
      %p253 = por %p251, %p252
      %p254 = scmp.le.s32.totalorder 1, %s14
      %p255 = scmp.lt.s32.totalorder %s14, 3
      %p256 = pnand %p254, %p255
      %p257 = pneg %p256
      // Predicated region
      $region9: #{gpt_forward.10} parent=5 // pred_check
        _
      $region10: #{gpt_forward.10} parent=5 // pred_check_branch
        %259 = sbr.rel (%p256) target = $region12
      $region11: #{gpt_forward.10} parent=5 // pred_region
        %s260 = ssub.s32 %s14, 1
        // Predicated region
        $region13: #{gpt_forward.10} parent=11 // pred_check
          %p261 = pneg %p127
        $region14: #{gpt_forward.10} parent=11 // pred_check_branch
          %263 = sbr.rel (%p261) target = $region16
        $region15: #{gpt_forward.10} parent=11 // pred_region
          _
        $region16: #{gpt_forward.10} parent=11 // pred_fallthru
          _
        // Predicated region
        $region17: #{gpt_forward.10} parent=11 // pred_check
          %p264 = pneg %p148
        $region18: #{gpt_forward.10} parent=11 // pred_check_branch
          %266 = sbr.rel (%p264) target = $region20
        $region19: #{gpt_forward.10} parent=11 // pred_region
          _
        $region20: #{gpt_forward.10} parent=11 // pred_fallthru
          _
        // Predicated region
        $region21: #{gpt_forward.10} parent=11 // pred_check
          %p267 = pneg %p169
        $region22: #{gpt_forward.10} parent=11 // pred_check_branch
          %269 = sbr.rel (%p267) target = $region24
        $region23: #{gpt_forward.10} parent=11 // pred_region
          _
        $region24: #{gpt_forward.10} parent=11 // pred_fallthru
          _
        // Predicated region
        $region25: #{gpt_forward.10} parent=11 // pred_check
          %p270 = pneg %p190
        $region26: #{gpt_forward.10} parent=11 // pred_check_branch
          %272 = sbr.rel (%p270) target = $region28
        $region27: #{gpt_forward.10} parent=11 // pred_region
          _
        $region28: #{gpt_forward.10} parent=11 // pred_fallthru
          _
      $region12: #{gpt_forward.10} parent=5 // pred_fallthru
        _
      %p273 = scmp.lt.s32.totalorder %s14, 2
      // Predicated region
      $region29: #{gpt_forward.10} parent=5 // pred_check
        %p274 = pneg %p273
      $region30: #{gpt_forward.10} parent=5 // pred_check_branch
        %276 = sbr.rel (%p274) target = $region32
      $region31: #{gpt_forward.10} parent=5 // pred_region
        // Predicated region
        $region33: #{gpt_forward.10} parent=31 // pred_check
          %p277 = pneg %p48
        $region34: #{gpt_forward.10} parent=31 // pred_check_branch
          %279 = sbr.rel (%p277) target = $region36
        $region35: #{gpt_forward.10} parent=31 // pred_region
          %s280 = sand.u32 %s38, 1
          %s281 = sand.u32 %s38, 1
          %s282 = smul.addr %s281, 8
          %s283 = scalar_lea.vmem [#allocation2], %s282
          %s284 = smul.u32 2, %s22
          %s285 = smul.addr %s284, 3
          %s286 = smul.addr %s21, 6
          %s287 = sadd.s32 %s285, %s286
          %s288 = smul.addr %s287, 4
          %s289 = scalar_lea.vmem %s0, %s288
          // Predicated region
          $region37: #{gpt_forward.10} parent=35 // pred_check
            _
          $region38: #{gpt_forward.10} parent=35 // pred_check_branch
            %291 = sbr.rel (0) target = $region40
          $region39: #{gpt_forward.10} parent=35 // pred_region
            // Predicated region
            $region41: #{gpt_forward.10} parent=39 // pred_check
              _
            $region42: #{gpt_forward.10} parent=39 // pred_check_branch
              %293 = sbr.rel target = $region44
            $region43: #{gpt_forward.10} parent=39 // pred_region
              // Predicated region
              $region56: #{gpt_forward.10} parent=43 // pred_check
                _
              $region57: #{gpt_forward.10} parent=43 // pred_check_branch
                %310 = sbr.rel (0) target = $region59
              $region58: #{gpt_forward.10} parent=43 // pred_region
                loop: start=0, step=1, limit=1
                $region60: #{gpt_forward.10} parent=58 // loop_pre_header
                  _
                $region61: #{gpt_forward.10} parent=58 // loop_header
                  %s312 = sphi 0, %s316
                  %p313 = scmp.ge.s32.totalorder %s312, 1
                  %s317 = sphi %s289, %s289
                  %s318 = sphi %s283, %s283
                $region62: #{gpt_forward.10} parent=58 // loop_header_branch
                  %315 = sbr.rel (%p313) target = $region66
                $region63: #{gpt_forward.10} parent=58 // loop_body
                  _
                $region64: #{gpt_forward.10} parent=58 // loop_footer
                  %s316 = sadd.s32 1, %s312
                $region65: #{gpt_forward.10} parent=58 // loop_footer_branch
                  %311 = sbr.rel target = $region61
                $region66: #{gpt_forward.10} parent=58 // loop_exit
                  _
                loop: start=0, step=1, limit=1
                $region67: #{gpt_forward.10} parent=58 // loop_pre_header
                  _
                $region68: #{gpt_forward.10} parent=58 // loop_header
                  %s321 = sphi 0, %s325
                  %p322 = scmp.ge.s32.totalorder %s321, 1
                  %s326 = sphi %s289, %s289
                  %s327 = sphi %s283, %s283
                $region69: #{gpt_forward.10} parent=58 // loop_header_branch
                  %324 = sbr.rel (%p322) target = $region73
                $region70: #{gpt_forward.10} parent=58 // loop_body
                  %v328 = vld [vmem:[%s326] sm:$0xf]
                  %329 = vst [vmem:[%s327] sm:$0xf] %v328
                  %v330 = vld [vmem:[%s326 + $0xc] sm:$0xf]
                  %331 = vst [vmem:[%s327 + $0x4] sm:$0xf] %v330
                $region71: #{gpt_forward.10} parent=58 // loop_footer
                  %s325 = sadd.s32 1, %s321
                $region72: #{gpt_forward.10} parent=58 // loop_footer_branch
                  %320 = sbr.rel target = $region68
                $region73: #{gpt_forward.10} parent=58 // loop_exit
                  _
              $region59: #{gpt_forward.10} parent=43 // pred_fallthru
                _
            $region44: #{gpt_forward.10} parent=39 // pred_fallthru
              _
            // Predicated region
            $region45: #{gpt_forward.10} parent=39 // pred_check
              _
            $region46: #{gpt_forward.10} parent=39 // pred_check_branch
              %295 = sbr.rel (0) target = $region48
            $region47: #{gpt_forward.10} parent=39 // pred_region
              loop: start=0, step=1, limit=1
              $region49: #{gpt_forward.10} parent=47 // loop_pre_header
                _
              $region50: #{gpt_forward.10} parent=47 // loop_header
                %s298 = sphi 0, %s302
                %p299 = scmp.ge.s32.totalorder %s298, 1
                %s303 = sphi %s289, %s289
                %s304 = sphi %s283, %s283
              $region51: #{gpt_forward.10} parent=47 // loop_header_branch
                %301 = sbr.rel (%p299) target = $region55
              $region52: #{gpt_forward.10} parent=47 // loop_body
                %v305 = vld [vmem:[%s303] sm:$0xf]
                %306 = vst [vmem:[%s304] sm:$0xf] %v305
                %v307 = vld [vmem:[%s303 + $0xc] sm:$0xf]
                %308 = vst [vmem:[%s304 + $0x4] sm:$0xf] %v307
              $region53: #{gpt_forward.10} parent=47 // loop_footer
                %s302 = sadd.s32 1, %s298
              $region54: #{gpt_forward.10} parent=47 // loop_footer_branch
                %297 = sbr.rel target = $region50
              $region55: #{gpt_forward.10} parent=47 // loop_exit
                _
            $region48: #{gpt_forward.10} parent=39 // pred_fallthru
              _
          $region40: #{gpt_forward.10} parent=35 // pred_fallthru
            _
          %332 = vnop
        $region36: #{gpt_forward.10} parent=31 // pred_fallthru
          _
        // Predicated region
        $region74: #{gpt_forward.10} parent=31 // pred_check
          %p333 = pneg %p74
        $region75: #{gpt_forward.10} parent=31 // pred_check_branch
          %335 = sbr.rel (%p333) target = $region77
        $region76: #{gpt_forward.10} parent=31 // pred_region
          %s336 = sand.u32 %s64, 1
          %s337 = sand.u32 %s64, 1
          %s338 = smul.addr %s337, 8
          %s339 = scalar_lea.vmem [#allocation3], %s338
          %s340 = smul.addr %s21, 6
          %s341 = sadd.s32 1, %s340
          %s342 = smul.addr %s341, 4
          %s343 = scalar_lea.vmem %s1, %s342
          // Predicated region
          $region78: #{gpt_forward.10} parent=76 // pred_check
            _
          $region79: #{gpt_forward.10} parent=76 // pred_check_branch
            %345 = sbr.rel (0) target = $region81
          $region80: #{gpt_forward.10} parent=76 // pred_region
            // Predicated region
            $region82: #{gpt_forward.10} parent=80 // pred_check
              _
            $region83: #{gpt_forward.10} parent=80 // pred_check_branch
              %347 = sbr.rel target = $region85
            $region84: #{gpt_forward.10} parent=80 // pred_region
              // Predicated region
              $region97: #{gpt_forward.10} parent=84 // pred_check
                _
              $region98: #{gpt_forward.10} parent=84 // pred_check_branch
                %364 = sbr.rel (0) target = $region100
              $region99: #{gpt_forward.10} parent=84 // pred_region
                loop: start=0, step=1, limit=1
                $region101: #{gpt_forward.10} parent=99 // loop_pre_header
                  _
                $region102: #{gpt_forward.10} parent=99 // loop_header
                  %s366 = sphi 0, %s370
                  %p367 = scmp.ge.s32.totalorder %s366, 1
                  %s371 = sphi %s343, %s343
                  %s372 = sphi %s339, %s339
                $region103: #{gpt_forward.10} parent=99 // loop_header_branch
                  %369 = sbr.rel (%p367) target = $region107
                $region104: #{gpt_forward.10} parent=99 // loop_body
                  _
                $region105: #{gpt_forward.10} parent=99 // loop_footer
                  %s370 = sadd.s32 1, %s366
                $region106: #{gpt_forward.10} parent=99 // loop_footer_branch
                  %365 = sbr.rel target = $region102
                $region107: #{gpt_forward.10} parent=99 // loop_exit
                  _
                loop: start=0, step=1, limit=1
                $region108: #{gpt_forward.10} parent=99 // loop_pre_header
                  _
                $region109: #{gpt_forward.10} parent=99 // loop_header
                  %s375 = sphi 0, %s379
                  %p376 = scmp.ge.s32.totalorder %s375, 1
                  %s380 = sphi %s343, %s343
                  %s381 = sphi %s339, %s339
                $region110: #{gpt_forward.10} parent=99 // loop_header_branch
                  %378 = sbr.rel (%p376) target = $region114
                $region111: #{gpt_forward.10} parent=99 // loop_body
                  %v382 = vld [vmem:[%s380] sm:$0xf]
                  %383 = vst [vmem:[%s381] sm:$0xf] %v382
                  %v384 = vld [vmem:[%s380 + $0xc] sm:$0xf]
                  %385 = vst [vmem:[%s381 + $0x4] sm:$0xf] %v384
                $region112: #{gpt_forward.10} parent=99 // loop_footer
                  %s379 = sadd.s32 1, %s375
                $region113: #{gpt_forward.10} parent=99 // loop_footer_branch
                  %374 = sbr.rel target = $region109
                $region114: #{gpt_forward.10} parent=99 // loop_exit
                  _
              $region100: #{gpt_forward.10} parent=84 // pred_fallthru
                _
            $region85: #{gpt_forward.10} parent=80 // pred_fallthru
              _
            // Predicated region
            $region86: #{gpt_forward.10} parent=80 // pred_check
              _
            $region87: #{gpt_forward.10} parent=80 // pred_check_branch
              %349 = sbr.rel (0) target = $region89
            $region88: #{gpt_forward.10} parent=80 // pred_region
              loop: start=0, step=1, limit=1
              $region90: #{gpt_forward.10} parent=88 // loop_pre_header
                _
              $region91: #{gpt_forward.10} parent=88 // loop_header
                %s352 = sphi 0, %s356
                %p353 = scmp.ge.s32.totalorder %s352, 1
                %s357 = sphi %s343, %s343
                %s358 = sphi %s339, %s339
              $region92: #{gpt_forward.10} parent=88 // loop_header_branch
                %355 = sbr.rel (%p353) target = $region96
              $region93: #{gpt_forward.10} parent=88 // loop_body
                %v359 = vld [vmem:[%s357] sm:$0xf]
                %360 = vst [vmem:[%s358] sm:$0xf] %v359
                %v361 = vld [vmem:[%s357 + $0xc] sm:$0xf]
                %362 = vst [vmem:[%s358 + $0x4] sm:$0xf] %v361
              $region94: #{gpt_forward.10} parent=88 // loop_footer
                %s356 = sadd.s32 1, %s352
              $region95: #{gpt_forward.10} parent=88 // loop_footer_branch
                %351 = sbr.rel target = $region91
              $region96: #{gpt_forward.10} parent=88 // loop_exit
                _
            $region89: #{gpt_forward.10} parent=80 // pred_fallthru
              _
          $region81: #{gpt_forward.10} parent=76 // pred_fallthru
            _
          %386 = vnop
        $region77: #{gpt_forward.10} parent=31 // pred_fallthru
          _
        // Predicated region
        $region115: #{gpt_forward.10} parent=31 // pred_check
          %p387 = pneg %p100
        $region116: #{gpt_forward.10} parent=31 // pred_check_branch
          %389 = sbr.rel (%p387) target = $region118
        $region117: #{gpt_forward.10} parent=31 // pred_region
          %s390 = sand.u32 %s90, 1
          %s391 = sand.u32 %s90, 1
          %s392 = smul.addr %s391, 8
          %s393 = scalar_lea.vmem [#allocation4], %s392
          %s394 = smul.addr %s21, 6
          %s395 = sadd.s32 2, %s394
          %s396 = smul.addr %s395, 4
          %s397 = scalar_lea.vmem %s2, %s396
          // Predicated region
          $region119: #{gpt_forward.10} parent=117 // pred_check
            _
          $region120: #{gpt_forward.10} parent=117 // pred_check_branch
            %399 = sbr.rel (0) target = $region122
          $region121: #{gpt_forward.10} parent=117 // pred_region
            // Predicated region
            $region123: #{gpt_forward.10} parent=121 // pred_check
              _
            $region124: #{gpt_forward.10} parent=121 // pred_check_branch
              %401 = sbr.rel target = $region126
            $region125: #{gpt_forward.10} parent=121 // pred_region
              // Predicated region
              $region138: #{gpt_forward.10} parent=125 // pred_check
                _
              $region139: #{gpt_forward.10} parent=125 // pred_check_branch
                %418 = sbr.rel (0) target = $region141
              $region140: #{gpt_forward.10} parent=125 // pred_region
                loop: start=0, step=1, limit=1
                $region142: #{gpt_forward.10} parent=140 // loop_pre_header
                  _
                $region143: #{gpt_forward.10} parent=140 // loop_header
                  %s420 = sphi 0, %s424
                  %p421 = scmp.ge.s32.totalorder %s420, 1
                  %s425 = sphi %s397, %s397
                  %s426 = sphi %s393, %s393
                $region144: #{gpt_forward.10} parent=140 // loop_header_branch
                  %423 = sbr.rel (%p421) target = $region148
                $region145: #{gpt_forward.10} parent=140 // loop_body
                  _
                $region146: #{gpt_forward.10} parent=140 // loop_footer
                  %s424 = sadd.s32 1, %s420
                $region147: #{gpt_forward.10} parent=140 // loop_footer_branch
                  %419 = sbr.rel target = $region143
                $region148: #{gpt_forward.10} parent=140 // loop_exit
                  _
                loop: start=0, step=1, limit=1
                $region149: #{gpt_forward.10} parent=140 // loop_pre_header
                  _
                $region150: #{gpt_forward.10} parent=140 // loop_header
                  %s429 = sphi 0, %s433
                  %p430 = scmp.ge.s32.totalorder %s429, 1
                  %s434 = sphi %s397, %s397
                  %s435 = sphi %s393, %s393
                $region151: #{gpt_forward.10} parent=140 // loop_header_branch
                  %432 = sbr.rel (%p430) target = $region155
                $region152: #{gpt_forward.10} parent=140 // loop_body
                  %v436 = vld [vmem:[%s434] sm:$0xf]
                  %437 = vst [vmem:[%s435] sm:$0xf] %v436
                  %v438 = vld [vmem:[%s434 + $0xc] sm:$0xf]
                  %439 = vst [vmem:[%s435 + $0x4] sm:$0xf] %v438
                $region153: #{gpt_forward.10} parent=140 // loop_footer
                  %s433 = sadd.s32 1, %s429
                $region154: #{gpt_forward.10} parent=140 // loop_footer_branch
                  %428 = sbr.rel target = $region150
                $region155: #{gpt_forward.10} parent=140 // loop_exit
                  _
              $region141: #{gpt_forward.10} parent=125 // pred_fallthru
                _
            $region126: #{gpt_forward.10} parent=121 // pred_fallthru
              _
            // Predicated region
            $region127: #{gpt_forward.10} parent=121 // pred_check
              _
            $region128: #{gpt_forward.10} parent=121 // pred_check_branch
              %403 = sbr.rel (0) target = $region130
            $region129: #{gpt_forward.10} parent=121 // pred_region
              loop: start=0, step=1, limit=1
              $region131: #{gpt_forward.10} parent=129 // loop_pre_header
                _
              $region132: #{gpt_forward.10} parent=129 // loop_header
                %s406 = sphi 0, %s410
                %p407 = scmp.ge.s32.totalorder %s406, 1
                %s411 = sphi %s397, %s397
                %s412 = sphi %s393, %s393
              $region133: #{gpt_forward.10} parent=129 // loop_header_branch
                %409 = sbr.rel (%p407) target = $region137
              $region134: #{gpt_forward.10} parent=129 // loop_body
                %v413 = vld [vmem:[%s411] sm:$0xf]
                %414 = vst [vmem:[%s412] sm:$0xf] %v413
                %v415 = vld [vmem:[%s411 + $0xc] sm:$0xf]
                %416 = vst [vmem:[%s412 + $0x4] sm:$0xf] %v415
              $region135: #{gpt_forward.10} parent=129 // loop_footer
                %s410 = sadd.s32 1, %s406
              $region136: #{gpt_forward.10} parent=129 // loop_footer_branch
                %405 = sbr.rel target = $region132
              $region137: #{gpt_forward.10} parent=129 // loop_exit
                _
            $region130: #{gpt_forward.10} parent=121 // pred_fallthru
              _
          $region122: #{gpt_forward.10} parent=117 // pred_fallthru
            _
          %440 = vnop
        $region118: #{gpt_forward.10} parent=31 // pred_fallthru
          _
        // Predicated region
        $region156: #{gpt_forward.10} parent=31 // pred_check
          %p441 = pneg %p212
        $region157: #{gpt_forward.10} parent=31 // pred_check_branch
          %443 = sbr.rel (%p441) target = $region159
        $region158: #{gpt_forward.10} parent=31 // pred_region
          %s444 = smul.u32 2, %s22
          %p445 = scmp.lt.s32.totalorder %s21, 1
          %s446 = scalar_select %p445, %s21, 1
          %p447 = scmp.lt.s32.totalorder %s444, 1
          %s448 = scalar_select %p447, %s444, 1
          %s449 = smul.addr %s446, 2
          %s450 = sadd.s32 %s448, %s449
          %s451 = smul.addr %s450, 8
          %s452 = scalar_lea.vmem %s7, %s451
          %s453 = smul.u32 2, %s22
        $region159: #{gpt_forward.10} parent=31 // pred_fallthru
          _
      $region32: #{gpt_forward.10} parent=5 // pred_fallthru
        _
      %p454 = scmp.le.s32.totalorder 1, %s14
      %p455 = scmp.lt.s32.totalorder %s14, 3
      %p456 = pnand %p454, %p455
      %p457 = pneg %p456
      // Predicated region
      $region160: #{gpt_forward.10} parent=5 // pred_check
        _
      $region161: #{gpt_forward.10} parent=5 // pred_check_branch
        %459 = sbr.rel (%p456) target = $region163
      $region162: #{gpt_forward.10} parent=5 // pred_region
        %s460 = ssub.s32 %s14, 1
        %s461 = sand.u32 %s41, 1
        %s462 = sand.u32 %s41, 1
        %s463 = smul.addr %s462, 8
        %s464 = scalar_lea.vmem [#allocation2], %s463
        // Predicated region
        $region164: #{gpt_forward.10} parent=162 // pred_check
          %p465 = pneg %p54
        $region165: #{gpt_forward.10} parent=162 // pred_check_branch
          %467 = sbr.rel (%p465) target = $region167
        $region166: #{gpt_forward.10} parent=162 // pred_region
          _
        $region167: #{gpt_forward.10} parent=162 // pred_fallthru
          _
        %s468 = sand.u32 %s67, 1
        %s469 = sand.u32 %s67, 1
        %s470 = smul.addr %s469, 8
        %s471 = scalar_lea.vmem [#allocation3], %s470
        // Predicated region
        $region168: #{gpt_forward.10} parent=162 // pred_check
          %p472 = pneg %p80
        $region169: #{gpt_forward.10} parent=162 // pred_check_branch
          %474 = sbr.rel (%p472) target = $region171
        $region170: #{gpt_forward.10} parent=162 // pred_region
          _
        $region171: #{gpt_forward.10} parent=162 // pred_fallthru
          _
        %s475 = sand.u32 %s93, 1
        %s476 = sand.u32 %s93, 1
        %s477 = smul.addr %s476, 8
        %s478 = scalar_lea.vmem [#allocation4], %s477
        // Predicated region
        $region172: #{gpt_forward.10} parent=162 // pred_check
          %p479 = pneg %p106
        $region173: #{gpt_forward.10} parent=162 // pred_check_branch
          %481 = sbr.rel (%p479) target = $region175
        $region174: #{gpt_forward.10} parent=162 // pred_region
          _
        $region175: #{gpt_forward.10} parent=162 // pred_fallthru
          _
        %s482 = sand.u32 %s41, 1
        %s483 = sand.u32 %s41, 1
        %s484 = smul.addr %s483, 8
        %s485 = scalar_lea.vmem [#allocation2], %s484
        %p486 = pneg %p54
        %p487 = pneg %p51
        %s488 = sand.u32 %s67, 1
        %s489 = sand.u32 %s67, 1
        %s490 = smul.addr %s489, 8
        %s491 = scalar_lea.vmem [#allocation3], %s490
        %p492 = pneg %p80
        %p493 = pneg %p77
        %s494 = sand.u32 %s93, 1
        %s495 = sand.u32 %s93, 1
        %s496 = smul.addr %s495, 8
        %s497 = scalar_lea.vmem [#allocation4], %s496
        %p498 = pneg %p106
        %p499 = pneg %p103
        %p500 = pneg %p127
        %p501 = pneg %p124
        %p502 = pneg %p148
        %p503 = pneg %p145
        %p504 = pneg %p169
        %p505 = pneg %p166
        %p506 = pneg %p190
        %p507 = pneg %p187
        %s508 = smul.u32 2, %s24
        %p509 = scmp.lt.s32.totalorder %s23, 1
        %s510 = scalar_select %p509, %s23, 1
        %p511 = scmp.lt.s32.totalorder %s508, 1
        %s512 = scalar_select %p511, %s508, 1
        %s513 = smul.addr %s510, 2
        %s514 = sadd.s32 %s512, %s513
        %s515 = smul.addr %s514, 8
        %s516 = scalar_lea.vmem %s7, %s515
        %p517 = pneg %p218
        %p518 = pneg %p215
        %p519 = pneg %p246
        %p520 = pneg %p243
        %s521 = smul.u32 2, %s24
        %p522 = scmp.lt.s32.totalorder %s23, 1
        %s523 = scalar_select %p522, %s23, 1
        %p524 = scmp.lt.s32.totalorder %s521, 1
        %s525 = scalar_select %p524, %s521, 1
        %s526 = smul.addr %s523, 2
        %s527 = sadd.s32 %s525, %s526
        %s528 = smul.addr %s527, 8
        %s529 = scalar_lea.vmem %s8, %s528
        %s530 = smul.u32 2, %s24
        %s531 = smul.u32 2, %s24
        %p532 = scmp.lt.s32.totalorder %s23, 1
        %s533 = scalar_select %p532, %s23, 1
        %p534 = scmp.lt.s32.totalorder %s531, 1
        %s535 = scalar_select %p534, %s531, 1
        %s536 = smul.addr %s533, 2
        %s537 = sadd.s32 %s535, %s536
        %s538 = smul.addr %s537, 8
        %s539 = scalar_lea.vmem %s7, %s538
        %s540 = smul.u32 2, %s24
        %s541 = smul.u32 2, %s24
        %p542 = scmp.lt.s32.totalorder %s23, 1
        %s543 = scalar_select %p542, %s23, 1
        %p544 = scmp.lt.s32.totalorder %s541, 1
        %s545 = scalar_select %p544, %s541, 1
        %s546 = smul.addr %s543, 2
        %s547 = sadd.s32 %s545, %s546
        %s548 = smul.addr %s547, 8
        %s549 = scalar_lea.vmem %s8, %s548
        %s550 = smul.u32 2, %s24
        %s552 = smul.u32 %s24, 16
        %v553 = vlaneseq
        %v554 = vshrl.u32 %v553, 7
        %v555 = vadd.s32 %v554, 8
        %v556 = vstv %s552
        %v557 = vadd.s32 %v556, %v554
        %v558 = vadd.s32 %v556, %v555
        %v559 = vlaneseq
        %v560 = vand.u32 %v559, 127
        %vm561 = vcmp.le.s32.totalorder %v560, %v557
        %vm562 = vcmp.le.s32.totalorder %v560, %v558
        %v563 = vld [vmem:[%s464] sm:$0xf]
        %v564 = vld [vmem:[%s464 + $0x4] sm:$0xf]
        %v565 = vld [vmem:[%s471] sm:$0xf]
        %v566 = vld [vmem:[%s471 + $0x4] sm:$0xf]
        %v567 = vld [vmem:[%s478] sm:$0xf]
        %v568 = vld [vmem:[%s478 + $0x4] sm:$0xf]
        %v571 = vunpack.c.l.b16 %v563
        %v572 = vunpack.c.l.b16 %v564
        %v573 = vpack.c.b16 %v572, %v571
        %v576 = vunpack.c.l.b16 %v565
        %v577 = vunpack.c.l.b16 %v566
        %v578 = vpack.c.b16 %v577, %v576
        %vm579 = vcmask 261120
        %v581 = vsel %vm579, %v573, 0
        %v584 = vsel %vm579, %v578, 0
        %586 = vmatprep.subr.bf16.mxu0 0
        %587 = vmatpush1.bf16.xpose.msra.mxu0 %v584
        %588 = vmatprep.subr.bf16.mxu0 0
        %589 = vmatpush1.bf16.xpose.msra.mxu0 0
        %590 = vmatprep.subr.bf16.mxu0 0
        %591 = vmatpush1.bf16.xpose.msra.mxu0 0
        %592 = vmatprep.subr.bf16.mxu0 0
        %593 = vmatpush1.bf16.xpose.msra.mxu0 0
        %594 = vmatprep.subr.bf16.mxu0 0
        %595 = vmatpush1.bf16.xpose.msra.mxu0 0
        %596 = vmatprep.subr.bf16.mxu0 0
        %597 = vmatpush1.bf16.xpose.msra.mxu0 0
        %598 = vmatprep.subr.bf16.mxu0 0
        %599 = vmatpush1.bf16.xpose.msra.mxu0 0
        %600 = vmatprep.subr.bf16.mxu0 0
        %601 = vmatpush1.bf16.xpose.msra.mxu0 0
        %602 = vmatprep.subr.bf16.mxu0 0
        %603 = vmatpush1.bf16.xpose.msra.mxu0 0
        %604 = vmatprep.subr.bf16.mxu0 0
        %605 = vmatpush1.bf16.xpose.msra.mxu0 0
        %606 = vmatprep.subr.bf16.mxu0 0
        %607 = vmatpush1.bf16.xpose.msra.mxu0 0
        %608 = vmatprep.subr.bf16.mxu0 0
        %609 = vmatpush1.bf16.xpose.msra.mxu0 0
        %610 = vmatprep.subr.bf16.mxu0 0
        %611 = vmatpush1.bf16.xpose.msra.mxu0 0
        %612 = vmatprep.subr.bf16.mxu0 0
        %613 = vmatpush1.bf16.xpose.msra.mxu0 0
        %614 = vmatprep.subr.bf16.mxu0 0
        %615 = vmatpush1.bf16.xpose.msra.mxu0 0
        %616 = vmatprep.subr.bf16.mxu0 0
        %617 = vmatpush1.bf16.xpose.msra.mxu0 0
        %618 = vmatprep.mubr.bf16.mxu0 0
        %619 = vmatmul.mubr.bf16.gmra.mrb[0].mxu0 %v581
        %v620 = vpop.f32.mrb[0].mxu0
        %v621 = vadd.f32 0.0, %v620
        %v622 = vpop.f32.mrb[0].mxu0
        %v623 = vpop.f32.mrb[0].mxu0
        %v624 = vadd.f32 0.0, %v623
        %v625 = vpop.f32.mrb[0].mxu0
        %626 = vdwg.mxu0
        %v627 = vmul.f32 %v621, 0.17677669
        %v628 = vmul.f32 %v624, 0.17677669
        %v629 = vsel %vm561, %v627, -1e+30
        %v630 = vsel %vm562, %v628, -1e+30
        %vm631 = vcmask 130048
        %v632 = vsel %vm631, %v629, -inf
        %633 = vmax.xlane.f32.xlu0 %v632
        %v634 = vpop.xlane.xlu0 %633
        %v635 = vsel %vm631, %v630, -inf
        %636 = vmax.xlane.f32.xlu0 %v635
        %v637 = vpop.xlane.xlu0 %636
        %v638 = vsub.f32 %v629, %v634
        %v639 = vsub.f32 %v630, %v637
        %v640 = vmul.f32 %v638, 1.442695
        %v641 = vpow.pop %v640
        %v642 = vmul.f32 %v639, 1.442695
        %v643 = vpow.pop %v642
        %v644 = vsel %vm631, %v641, 0.0
        %645 = vadd.xlane.f32.xlu0 %v644
        %v646 = vpop.xlane.xlu0 %645
        %v647 = vsel %vm631, %v643, 0.0
        %648 = vadd.xlane.f32.xlu0 %v647
        %v649 = vpop.xlane.xlu0 %648
        %v650 = vrcp.pop %v646
        %v651 = vrcp.pop %v649
        %v652 = vmul.f32 %v641, %v650
        %v653 = vmul.f32 %v643, %v651
        %v654 = vpack.c.bf16 %v653, %v652
        %v657 = vunpack.c.l.b16 %v567
        %v658 = vunpack.c.l.b16 %v568
        %v659 = vpack.c.b16 %v658, %v657
        %v662 = vsel %vm631, %v654, 0
        %664 = vmatprep.subr.bf16.mxu0 0
        %665 = vmatpush1.bf16.msra.mxu0 %v659
        %666 = vmatprep.subr.bf16.mxu0 0
        %667 = vmatpush1.bf16.msra.mxu0 0
        %668 = vmatprep.subr.bf16.mxu0 0
        %669 = vmatpush1.bf16.msra.mxu0 0
        %670 = vmatprep.subr.bf16.mxu0 0
        %671 = vmatpush1.bf16.msra.mxu0 0
        %672 = vmatprep.subr.bf16.mxu0 0
        %673 = vmatpush1.bf16.msra.mxu0 0
        %674 = vmatprep.subr.bf16.mxu0 0
        %675 = vmatpush1.bf16.msra.mxu0 0
        %676 = vmatprep.subr.bf16.mxu0 0
        %677 = vmatpush1.bf16.msra.mxu0 0
        %678 = vmatprep.subr.bf16.mxu0 0
        %679 = vmatpush1.bf16.msra.mxu0 0
        %680 = vmatprep.subr.bf16.mxu0 0
        %681 = vmatpush1.bf16.msra.mxu0 0
        %682 = vmatprep.subr.bf16.mxu0 0
        %683 = vmatpush1.bf16.msra.mxu0 0
        %684 = vmatprep.subr.bf16.mxu0 0
        %685 = vmatpush1.bf16.msra.mxu0 0
        %686 = vmatprep.subr.bf16.mxu0 0
        %687 = vmatpush1.bf16.msra.mxu0 0
        %688 = vmatprep.subr.bf16.mxu0 0
        %689 = vmatpush1.bf16.msra.mxu0 0
        %690 = vmatprep.subr.bf16.mxu0 0
        %691 = vmatpush1.bf16.msra.mxu0 0
        %692 = vmatprep.subr.bf16.mxu0 0
        %693 = vmatpush1.bf16.msra.mxu0 0
        %694 = vmatprep.subr.bf16.mxu0 0
        %695 = vmatpush1.bf16.msra.mxu0 0
        %696 = vmatprep.mubr.bf16.mxu0 0
        %697 = vmatmul.mubr.bf16.gmra.mrb[0].mxu0 %v662
        %v698 = vpop.f32.mrb[0].mxu0
        %v699 = vadd.f32 0.0, %v698
        %v700 = vpop.f32.mrb[0].mxu0
        %v701 = vpop.f32.mrb[0].mxu0
        %v702 = vadd.f32 0.0, %v701
        %v703 = vpop.f32.mrb[0].mxu0
        %704 = vdwg.mxu0
        %705 = vrot.lane.b32.xlu0 %v573, 96
        %v706 = vpop.permute.xlu0 %705
        %707 = vrot.lane.b32.xlu0 %v578, 96
        %v708 = vpop.permute.xlu0 %707
        %v710 = vsel %vm579, %v706, 0
        %v713 = vsel %vm579, %v708, 0
        %715 = vmatprep.subr.bf16.mxu0 0
        %716 = vmatpush1.bf16.xpose.msra.mxu0 %v713
        %717 = vmatprep.subr.bf16.mxu0 0
        %718 = vmatpush1.bf16.xpose.msra.mxu0 0
        %719 = vmatprep.subr.bf16.mxu0 0
        %720 = vmatpush1.bf16.xpose.msra.mxu0 0
        %721 = vmatprep.subr.bf16.mxu0 0
        %722 = vmatpush1.bf16.xpose.msra.mxu0 0
        %723 = vmatprep.subr.bf16.mxu0 0
        %724 = vmatpush1.bf16.xpose.msra.mxu0 0
        %725 = vmatprep.subr.bf16.mxu0 0
        %726 = vmatpush1.bf16.xpose.msra.mxu0 0
        %727 = vmatprep.subr.bf16.mxu0 0
        %728 = vmatpush1.bf16.xpose.msra.mxu0 0
        %729 = vmatprep.subr.bf16.mxu0 0
        %730 = vmatpush1.bf16.xpose.msra.mxu0 0
        %731 = vmatprep.subr.bf16.mxu0 0
        %732 = vmatpush1.bf16.xpose.msra.mxu0 0
        %733 = vmatprep.subr.bf16.mxu0 0
        %734 = vmatpush1.bf16.xpose.msra.mxu0 0
        %735 = vmatprep.subr.bf16.mxu0 0
        %736 = vmatpush1.bf16.xpose.msra.mxu0 0
        %737 = vmatprep.subr.bf16.mxu0 0
        %738 = vmatpush1.bf16.xpose.msra.mxu0 0
        %739 = vmatprep.subr.bf16.mxu0 0
        %740 = vmatpush1.bf16.xpose.msra.mxu0 0
        %741 = vmatprep.subr.bf16.mxu0 0
        %742 = vmatpush1.bf16.xpose.msra.mxu0 0
        %743 = vmatprep.subr.bf16.mxu0 0
        %744 = vmatpush1.bf16.xpose.msra.mxu0 0
        %745 = vmatprep.subr.bf16.mxu0 0
        %746 = vmatpush1.bf16.xpose.msra.mxu0 0
        %747 = vmatprep.mubr.bf16.mxu0 0
        %748 = vmatmul.mubr.bf16.gmra.mrb[0].mxu0 %v710
        %v749 = vpop.f32.mrb[0].mxu0
        %v750 = vadd.f32 0.0, %v749
        %v751 = vpop.f32.mrb[0].mxu0
        %v752 = vpop.f32.mrb[0].mxu0
        %v753 = vadd.f32 0.0, %v752
        %v754 = vpop.f32.mrb[0].mxu0
        %755 = vdwg.mxu0
        %v756 = vmul.f32 %v750, 0.17677669
        %v757 = vmul.f32 %v753, 0.17677669
        %v758 = vsel %vm561, %v756, -1e+30
        %v759 = vsel %vm562, %v757, -1e+30
        %v760 = vsel %vm631, %v758, -inf
        %761 = vmax.xlane.f32.xlu0 %v760
        %v762 = vpop.xlane.xlu0 %761
        %v763 = vsel %vm631, %v759, -inf
        %764 = vmax.xlane.f32.xlu0 %v763
        %v765 = vpop.xlane.xlu0 %764
        %v766 = vsub.f32 %v758, %v762
        %v767 = vsub.f32 %v759, %v765
        %v768 = vmul.f32 %v766, 1.442695
        %v769 = vpow.pop %v768
        %v770 = vmul.f32 %v767, 1.442695
        %v771 = vpow.pop %v770
        %v772 = vsel %vm631, %v769, 0.0
        %773 = vadd.xlane.f32.xlu0 %v772
        %v774 = vpop.xlane.xlu0 %773
        %v775 = vsel %vm631, %v771, 0.0
        %776 = vadd.xlane.f32.xlu0 %v775
        %v777 = vpop.xlane.xlu0 %776
        %v778 = vrcp.pop %v774
        %v779 = vrcp.pop %v777
        %v780 = vmul.f32 %v769, %v778
        %v781 = vmul.f32 %v771, %v779
        %v782 = vpack.c.bf16 %v781, %v780
        %783 = vrot.lane.b32.xlu0 %v659, 96
        %v784 = vpop.permute.xlu0 %783
        %v787 = vsel %vm631, %v782, 0
        %789 = vmatprep.subr.bf16.mxu0 0
        %790 = vmatpush1.bf16.msra.mxu0 %v784
        %791 = vmatprep.subr.bf16.mxu0 0
        %792 = vmatpush1.bf16.msra.mxu0 0
        %793 = vmatprep.subr.bf16.mxu0 0
        %794 = vmatpush1.bf16.msra.mxu0 0
        %795 = vmatprep.subr.bf16.mxu0 0
        %796 = vmatpush1.bf16.msra.mxu0 0
        %797 = vmatprep.subr.bf16.mxu0 0
        %798 = vmatpush1.bf16.msra.mxu0 0
        %799 = vmatprep.subr.bf16.mxu0 0
        %800 = vmatpush1.bf16.msra.mxu0 0
        %801 = vmatprep.subr.bf16.mxu0 0
        %802 = vmatpush1.bf16.msra.mxu0 0
        %803 = vmatprep.subr.bf16.mxu0 0
        %804 = vmatpush1.bf16.msra.mxu0 0
        %805 = vmatprep.subr.bf16.mxu0 0
        %806 = vmatpush1.bf16.msra.mxu0 0
        %807 = vmatprep.subr.bf16.mxu0 0
        %808 = vmatpush1.bf16.msra.mxu0 0
        %809 = vmatprep.subr.bf16.mxu0 0
        %810 = vmatpush1.bf16.msra.mxu0 0
        %811 = vmatprep.subr.bf16.mxu0 0
        %812 = vmatpush1.bf16.msra.mxu0 0
        %813 = vmatprep.subr.bf16.mxu0 0
        %814 = vmatpush1.bf16.msra.mxu0 0
        %815 = vmatprep.subr.bf16.mxu0 0
        %816 = vmatpush1.bf16.msra.mxu0 0
        %817 = vmatprep.subr.bf16.mxu0 0
        %818 = vmatpush1.bf16.msra.mxu0 0
        %819 = vmatprep.subr.bf16.mxu0 0
        %820 = vmatpush1.bf16.msra.mxu0 0
        %821 = vmatprep.mubr.bf16.mxu0 0
        %822 = vmatmul.mubr.bf16.gmra.mrb[0].mxu0 %v787
        %v823 = vpop.f32.mrb[0].mxu0
        %v824 = vadd.f32 0.0, %v823
        %v825 = vpop.f32.mrb[0].mxu0
        %v826 = vpop.f32.mrb[0].mxu0
        %v827 = vadd.f32 0.0, %v826
        %v828 = vpop.f32.mrb[0].mxu0
        %829 = vdwg.mxu0
        %830 = vrot.lane.b32.xlu0 %v573, 64
        %v831 = vpop.permute.xlu0 %830
        %832 = vrot.lane.b32.xlu0 %v578, 64
        %v833 = vpop.permute.xlu0 %832
        %v835 = vsel %vm579, %v831, 0
        %v838 = vsel %vm579, %v833, 0
        %840 = vmatprep.subr.bf16.mxu0 0
        %841 = vmatpush1.bf16.xpose.msra.mxu0 %v838
        %842 = vmatprep.subr.bf16.mxu0 0
        %843 = vmatpush1.bf16.xpose.msra.mxu0 0
        %844 = vmatprep.subr.bf16.mxu0 0
        %845 = vmatpush1.bf16.xpose.msra.mxu0 0
        %846 = vmatprep.subr.bf16.mxu0 0
        %847 = vmatpush1.bf16.xpose.msra.mxu0 0
        %848 = vmatprep.subr.bf16.mxu0 0
        %849 = vmatpush1.bf16.xpose.msra.mxu0 0
        %850 = vmatprep.subr.bf16.mxu0 0
        %851 = vmatpush1.bf16.xpose.msra.mxu0 0
        %852 = vmatprep.subr.bf16.mxu0 0
        %853 = vmatpush1.bf16.xpose.msra.mxu0 0
        %854 = vmatprep.subr.bf16.mxu0 0
        %855 = vmatpush1.bf16.xpose.msra.mxu0 0
        %856 = vmatprep.subr.bf16.mxu0 0
        %857 = vmatpush1.bf16.xpose.msra.mxu0 0
        %858 = vmatprep.subr.bf16.mxu0 0
        %859 = vmatpush1.bf16.xpose.msra.mxu0 0
        %860 = vmatprep.subr.bf16.mxu0 0
        %861 = vmatpush1.bf16.xpose.msra.mxu0 0
        %862 = vmatprep.subr.bf16.mxu0 0
        %863 = vmatpush1.bf16.xpose.msra.mxu0 0
        %864 = vmatprep.subr.bf16.mxu0 0
        %865 = vmatpush1.bf16.xpose.msra.mxu0 0
        %866 = vmatprep.subr.bf16.mxu0 0
        %867 = vmatpush1.bf16.xpose.msra.mxu0 0
        %868 = vmatprep.subr.bf16.mxu0 0
        %869 = vmatpush1.bf16.xpose.msra.mxu0 0
        %870 = vmatprep.subr.bf16.mxu0 0
        %871 = vmatpush1.bf16.xpose.msra.mxu0 0
        %872 = vmatprep.mubr.bf16.mxu0 0
        %873 = vmatmul.mubr.bf16.gmra.mrb[0].mxu0 %v835
        %v874 = vpop.f32.mrb[0].mxu0
        %v875 = vadd.f32 0.0, %v874
        %v876 = vpop.f32.mrb[0].mxu0
        %v877 = vpop.f32.mrb[0].mxu0
        %v878 = vadd.f32 0.0, %v877
        %v879 = vpop.f32.mrb[0].mxu0
        %880 = vdwg.mxu0
        %v881 = vmul.f32 %v875, 0.17677669
        %v882 = vmul.f32 %v878, 0.17677669
        %v883 = vsel %vm561, %v881, -1e+30
        %v884 = vsel %vm562, %v882, -1e+30
        %v885 = vsel %vm631, %v883, -inf
        %886 = vmax.xlane.f32.xlu0 %v885
        %v887 = vpop.xlane.xlu0 %886
        %v888 = vsel %vm631, %v884, -inf
        %889 = vmax.xlane.f32.xlu0 %v888
        %v890 = vpop.xlane.xlu0 %889
        %v891 = vsub.f32 %v883, %v887
        %v892 = vsub.f32 %v884, %v890
        %v893 = vmul.f32 %v891, 1.442695
        %v894 = vpow.pop %v893
        %v895 = vmul.f32 %v892, 1.442695
        %v896 = vpow.pop %v895
        %v897 = vsel %vm631, %v894, 0.0
        %898 = vadd.xlane.f32.xlu0 %v897
        %v899 = vpop.xlane.xlu0 %898
        %v900 = vsel %vm631, %v896, 0.0
        %901 = vadd.xlane.f32.xlu0 %v900
        %v902 = vpop.xlane.xlu0 %901
        %v903 = vrcp.pop %v899
        %v904 = vrcp.pop %v902
        %v905 = vmul.f32 %v894, %v903
        %v906 = vmul.f32 %v896, %v904
        %v907 = vpack.c.bf16 %v906, %v905
        %908 = vrot.lane.b32.xlu0 %v659, 64
        %v909 = vpop.permute.xlu0 %908
        %v912 = vsel %vm631, %v907, 0
        %914 = vmatprep.subr.bf16.mxu0 0
        %915 = vmatpush1.bf16.msra.mxu0 %v909
        %916 = vmatprep.subr.bf16.mxu0 0
        %917 = vmatpush1.bf16.msra.mxu0 0
        %918 = vmatprep.subr.bf16.mxu0 0
        %919 = vmatpush1.bf16.msra.mxu0 0
        %920 = vmatprep.subr.bf16.mxu0 0
        %921 = vmatpush1.bf16.msra.mxu0 0
        %922 = vmatprep.subr.bf16.mxu0 0
        %923 = vmatpush1.bf16.msra.mxu0 0
        %924 = vmatprep.subr.bf16.mxu0 0
        %925 = vmatpush1.bf16.msra.mxu0 0
        %926 = vmatprep.subr.bf16.mxu0 0
        %927 = vmatpush1.bf16.msra.mxu0 0
        %928 = vmatprep.subr.bf16.mxu0 0
        %929 = vmatpush1.bf16.msra.mxu0 0
        %930 = vmatprep.subr.bf16.mxu0 0
        %931 = vmatpush1.bf16.msra.mxu0 0
        %932 = vmatprep.subr.bf16.mxu0 0
        %933 = vmatpush1.bf16.msra.mxu0 0
        %934 = vmatprep.subr.bf16.mxu0 0
        %935 = vmatpush1.bf16.msra.mxu0 0
        %936 = vmatprep.subr.bf16.mxu0 0
        %937 = vmatpush1.bf16.msra.mxu0 0
        %938 = vmatprep.subr.bf16.mxu0 0
        %939 = vmatpush1.bf16.msra.mxu0 0
        %940 = vmatprep.subr.bf16.mxu0 0
        %941 = vmatpush1.bf16.msra.mxu0 0
        %942 = vmatprep.subr.bf16.mxu0 0
        %943 = vmatpush1.bf16.msra.mxu0 0
        %944 = vmatprep.subr.bf16.mxu0 0
        %945 = vmatpush1.bf16.msra.mxu0 0
        %946 = vmatprep.mubr.bf16.mxu0 0
        %947 = vmatmul.mubr.bf16.gmra.mrb[0].mxu0 %v912
        %v948 = vpop.f32.mrb[0].mxu0
        %v949 = vadd.f32 0.0, %v948
        %v950 = vpop.f32.mrb[0].mxu0
        %v951 = vpop.f32.mrb[0].mxu0
        %v952 = vadd.f32 0.0, %v951
        %v953 = vpop.f32.mrb[0].mxu0
        %954 = vdwg.mxu0
        %955 = vrot.lane.b32.xlu0 %v573, 32
        %v956 = vpop.permute.xlu0 %955
        %957 = vrot.lane.b32.xlu0 %v578, 32
        %v958 = vpop.permute.xlu0 %957
        %v960 = vsel %vm579, %v956, 0
        %v963 = vsel %vm579, %v958, 0
        %965 = vmatprep.subr.bf16.mxu0 0
        %966 = vmatpush1.bf16.xpose.msra.mxu0 %v963
        %967 = vmatprep.subr.bf16.mxu0 0
        %968 = vmatpush1.bf16.xpose.msra.mxu0 0
        %969 = vmatprep.subr.bf16.mxu0 0
        %970 = vmatpush1.bf16.xpose.msra.mxu0 0
        %971 = vmatprep.subr.bf16.mxu0 0
        %972 = vmatpush1.bf16.xpose.msra.mxu0 0
        %973 = vmatprep.subr.bf16.mxu0 0
        %974 = vmatpush1.bf16.xpose.msra.mxu0 0
        %975 = vmatprep.subr.bf16.mxu0 0
        %976 = vmatpush1.bf16.xpose.msra.mxu0 0
        %977 = vmatprep.subr.bf16.mxu0 0
        %978 = vmatpush1.bf16.xpose.msra.mxu0 0
        %979 = vmatprep.subr.bf16.mxu0 0
        %980 = vmatpush1.bf16.xpose.msra.mxu0 0
        %981 = vmatprep.subr.bf16.mxu0 0
        %982 = vmatpush1.bf16.xpose.msra.mxu0 0
        %983 = vmatprep.subr.bf16.mxu0 0
        %984 = vmatpush1.bf16.xpose.msra.mxu0 0
        %985 = vmatprep.subr.bf16.mxu0 0
        %986 = vmatpush1.bf16.xpose.msra.mxu0 0
        %987 = vmatprep.subr.bf16.mxu0 0
        %988 = vmatpush1.bf16.xpose.msra.mxu0 0
        %989 = vmatprep.subr.bf16.mxu0 0
        %990 = vmatpush1.bf16.xpose.msra.mxu0 0
        %991 = vmatprep.subr.bf16.mxu0 0
        %992 = vmatpush1.bf16.xpose.msra.mxu0 0
        %993 = vmatprep.subr.bf16.mxu0 0
        %994 = vmatpush1.bf16.xpose.msra.mxu0 0
        %995 = vmatprep.subr.bf16.mxu0 0
        %996 = vmatpush1.bf16.xpose.msra.mxu0 0
        %997 = vmatprep.mubr.bf16.mxu0 0
        %998 = vmatmul.mubr.bf16.gmra.mrb[0].mxu0 %v960
        %v999 = vpop.f32.mrb[0].mxu0
        %v1000 = vadd.f32 0.0, %v999
        %v1001 = vpop.f32.mrb[0].mxu0
        %v1002 = vpop.f32.mrb[0].mxu0
        %v1003 = vadd.f32 0.0, %v1002
        %v1004 = vpop.f32.mrb[0].mxu0
        %1005 = vdwg.mxu0
        %v1006 = vmul.f32 %v1000, 0.17677669
        %v1007 = vmul.f32 %v1003, 0.17677669
        %v1008 = vsel %vm561, %v1006, -1e+30
        %v1009 = vsel %vm562, %v1007, -1e+30
        %v1010 = vsel %vm631, %v1008, -inf
        %1011 = vmax.xlane.f32.xlu0 %v1010
        %v1012 = vpop.xlane.xlu0 %1011
        %v1013 = vsel %vm631, %v1009, -inf
        %1014 = vmax.xlane.f32.xlu0 %v1013
        %v1015 = vpop.xlane.xlu0 %1014
        %v1016 = vsub.f32 %v1008, %v1012
        %v1017 = vsub.f32 %v1009, %v1015
        %v1018 = vmul.f32 %v1016, 1.442695
        %v1019 = vpow.pop %v1018
        %v1020 = vmul.f32 %v1017, 1.442695
        %v1021 = vpow.pop %v1020
        %v1022 = vsel %vm631, %v1019, 0.0
        %1023 = vadd.xlane.f32.xlu0 %v1022
        %v1024 = vpop.xlane.xlu0 %1023
        %v1025 = vsel %vm631, %v1021, 0.0
        %1026 = vadd.xlane.f32.xlu0 %v1025
        %v1027 = vpop.xlane.xlu0 %1026
        %v1028 = vrcp.pop %v1024
        %v1029 = vrcp.pop %v1027
        %v1030 = vmul.f32 %v1019, %v1028
        %v1031 = vmul.f32 %v1021, %v1029
        %v1032 = vpack.c.bf16 %v1031, %v1030
        %1033 = vrot.lane.b32.xlu0 %v659, 32
        %v1034 = vpop.permute.xlu0 %1033
        %v1037 = vsel %vm631, %v1032, 0
        %1039 = vmatprep.subr.bf16.mxu0 0
        %1040 = vmatpush1.bf16.msra.mxu0 %v1034
        %1041 = vmatprep.subr.bf16.mxu0 0
        %1042 = vmatpush1.bf16.msra.mxu0 0
        %1043 = vmatprep.subr.bf16.mxu0 0
        %1044 = vmatpush1.bf16.msra.mxu0 0
        %1045 = vmatprep.subr.bf16.mxu0 0
        %1046 = vmatpush1.bf16.msra.mxu0 0
        %1047 = vmatprep.subr.bf16.mxu0 0
        %1048 = vmatpush1.bf16.msra.mxu0 0
        %1049 = vmatprep.subr.bf16.mxu0 0
        %1050 = vmatpush1.bf16.msra.mxu0 0
        %1051 = vmatprep.subr.bf16.mxu0 0
        %1052 = vmatpush1.bf16.msra.mxu0 0
        %1053 = vmatprep.subr.bf16.mxu0 0
        %1054 = vmatpush1.bf16.msra.mxu0 0
        %1055 = vmatprep.subr.bf16.mxu0 0
        %1056 = vmatpush1.bf16.msra.mxu0 0
        %1057 = vmatprep.subr.bf16.mxu0 0
        %1058 = vmatpush1.bf16.msra.mxu0 0
        %1059 = vmatprep.subr.bf16.mxu0 0
        %1060 = vmatpush1.bf16.msra.mxu0 0
        %1061 = vmatprep.subr.bf16.mxu0 0
        %1062 = vmatpush1.bf16.msra.mxu0 0
        %1063 = vmatprep.subr.bf16.mxu0 0
        %1064 = vmatpush1.bf16.msra.mxu0 0
        %1065 = vmatprep.subr.bf16.mxu0 0
        %1066 = vmatpush1.bf16.msra.mxu0 0
        %1067 = vmatprep.subr.bf16.mxu0 0
        %1068 = vmatpush1.bf16.msra.mxu0 0
        %1069 = vmatprep.subr.bf16.mxu0 0
        %1070 = vmatpush1.bf16.msra.mxu0 0
        %1071 = vmatprep.mubr.bf16.mxu0 0
        %1072 = vmatmul.mubr.bf16.gmra.mrb[0].mxu0 %v1037
        %v1073 = vpop.f32.mrb[0].mxu0
        %v1074 = vadd.f32 0.0, %v1073
        %v1075 = vpop.f32.mrb[0].mxu0
        %v1076 = vpop.f32.mrb[0].mxu0
        %v1077 = vadd.f32 0.0, %v1076
        %v1078 = vpop.f32.mrb[0].mxu0
        %1079 = vdwg.mxu0
        %1082 = vrot.lane.b32.xlu0 %v824, 32
        %v1083 = vpop.permute.xlu0 %1082
        %1084 = vrot.lane.b32.xlu0 %v827, 32
        %v1085 = vpop.permute.xlu0 %1084
        %1090 = vrot.lane.b32.xlu0 %v949, 64
        %v1091 = vpop.permute.xlu0 %1090
        %1092 = vrot.lane.b32.xlu0 %v952, 64
        %v1093 = vpop.permute.xlu0 %1092
        %1098 = vrot.lane.b32.xlu0 %v1074, 96
        %v1099 = vpop.permute.xlu0 %1098
        %1100 = vrot.lane.b32.xlu0 %v1077, 96
        %v1101 = vpop.permute.xlu0 %1100
        %v1104 = vsel %vm579, %v699, %v1083
        %v1105 = vsel %vm579, %v702, %v1085
        %vm1106 = vcmask 523264
        %v1107 = vsel %vm1106, %v1104, %v1091
        %v1108 = vsel %vm1106, %v1105, %v1093
        %vm1109 = vcmask 785408
        %v1110 = vsel %vm1109, %v1107, %v1099
        %v1111 = vsel %vm1109, %v1108, %v1101
        %v1112 = vpack.c.bf16 %v1111, %v1110
        %v1113 = vld [vmem:[%s3] sm:$0xf]
        %v1114 = vld [vmem:[%s3 + $0x4] sm:$0xf]
        %v1115 = vld [vmem:[%s3 + $0x8] sm:$0xf]
        %v1116 = vld [vmem:[%s3 + $0xc] sm:$0xf]
        %v1117 = vld [vmem:[%s3 + $0x10] sm:$0xf]
        %v1118 = vld [vmem:[%s3 + $0x14] sm:$0xf]
        %v1119 = vld [vmem:[%s3 + $0x18] sm:$0xf]
        %v1120 = vld [vmem:[%s3 + $0x1c] sm:$0xf]
        %v1121 = vld [vmem:[%s3 + $0x20] sm:$0xf]
        %v1122 = vld [vmem:[%s3 + $0x24] sm:$0xf]
        %v1123 = vld [vmem:[%s3 + $0x28] sm:$0xf]
        %v1124 = vld [vmem:[%s3 + $0x2c] sm:$0xf]
        %v1125 = vld [vmem:[%s3 + $0x30] sm:$0xf]
        %v1126 = vld [vmem:[%s3 + $0x34] sm:$0xf]
        %v1127 = vld [vmem:[%s3 + $0x38] sm:$0xf]
        %v1128 = vld [vmem:[%s3 + $0x3c] sm:$0xf]
        %v1129 = vld [vmem:[%s4] sm:$0x1]
        %v1131 = vlaneseq
        %v1132 = vshrl.u32 %v1131, 7
        %v1133 = vsub.s32 0, %v1132
        %v1134 = vrot.slane %v1129, %v1133
        %v1152 = vunpack.c.l.b16 %v1113
        %v1153 = vunpack.c.l.b16 %v1114
        %v1154 = vunpack.c.l.b16 %v1115
        %v1155 = vunpack.c.l.b16 %v1116
        %v1156 = vunpack.c.l.b16 %v1117
        %v1157 = vunpack.c.l.b16 %v1118
        %v1158 = vunpack.c.l.b16 %v1119
        %v1159 = vunpack.c.l.b16 %v1120
        %v1160 = vunpack.c.l.b16 %v1121
        %v1161 = vunpack.c.l.b16 %v1122
        %v1162 = vunpack.c.l.b16 %v1123
        %v1163 = vunpack.c.l.b16 %v1124
        %v1164 = vunpack.c.l.b16 %v1125
        %v1165 = vunpack.c.l.b16 %v1126
        %v1166 = vunpack.c.l.b16 %v1127
        %v1167 = vunpack.c.l.b16 %v1128
        %v1168 = vpack.c.b16 %v1153, %v1152
        %v1169 = vpack.c.b16 %v1155, %v1154
        %v1170 = vpack.c.b16 %v1157, %v1156
        %v1171 = vpack.c.b16 %v1159, %v1158
        %v1172 = vpack.c.b16 %v1161, %v1160
        %v1173 = vpack.c.b16 %v1163, %v1162
        %v1174 = vpack.c.b16 %v1165, %v1164
        %v1175 = vpack.c.b16 %v1167, %v1166
        %1184 = vmatprep.subr.bf16.mxu0 0
        %1185 = vmatpush1.bf16.msra.mxu0 %v1168
        %1186 = vmatprep.subr.bf16.mxu0 0
        %1187 = vmatpush1.bf16.msra.mxu0 %v1169
        %1188 = vmatprep.subr.bf16.mxu0 0
        %1189 = vmatpush1.bf16.msra.mxu0 %v1170
        %1190 = vmatprep.subr.bf16.mxu0 0
        %1191 = vmatpush1.bf16.msra.mxu0 %v1171
        %1192 = vmatprep.subr.bf16.mxu0 0
        %1193 = vmatpush1.bf16.msra.mxu0 %v1172
        %1194 = vmatprep.subr.bf16.mxu0 0
        %1195 = vmatpush1.bf16.msra.mxu0 %v1173
        %1196 = vmatprep.subr.bf16.mxu0 0
        %1197 = vmatpush1.bf16.msra.mxu0 %v1174
        %1198 = vmatprep.subr.bf16.mxu0 0
        %1199 = vmatpush1.bf16.msra.mxu0 %v1175
        %1200 = vmatprep.subr.bf16.mxu0 0
        %1201 = vmatpush1.bf16.msra.mxu0 0
        %1202 = vmatprep.subr.bf16.mxu0 0
        %1203 = vmatpush1.bf16.msra.mxu0 0
        %1204 = vmatprep.subr.bf16.mxu0 0
        %1205 = vmatpush1.bf16.msra.mxu0 0
        %1206 = vmatprep.subr.bf16.mxu0 0
        %1207 = vmatpush1.bf16.msra.mxu0 0
        %1208 = vmatprep.subr.bf16.mxu0 0
        %1209 = vmatpush1.bf16.msra.mxu0 0
        %1210 = vmatprep.subr.bf16.mxu0 0
        %1211 = vmatpush1.bf16.msra.mxu0 0
        %1212 = vmatprep.subr.bf16.mxu0 0
        %1213 = vmatpush1.bf16.msra.mxu0 0
        %1214 = vmatprep.subr.bf16.mxu0 0
        %1215 = vmatpush1.bf16.msra.mxu0 0
        %1216 = vmatprep.mubr.bf16.mxu0 0
        %1217 = vmatmul.mubr.bf16.gmra.mrb[0].mxu0 %v1112
        %v1218 = vpop.f32.mrb[0].mxu0
        %v1219 = vadd.f32 %v1134, %v1218
        %v1220 = vpop.f32.mrb[0].mxu0
        %v1221 = vpop.f32.mrb[0].mxu0
        %v1222 = vadd.f32 %v1134, %v1221
        %v1223 = vpop.f32.mrb[0].mxu0
        %1224 = vdwg.mxu0
        %v1225 = vld [vmem:[%s5] sm:$0xf]
        %v1226 = vld [vmem:[%s5 + $0x4] sm:$0xf]
        %v1227 = vld [vmem:[%s5 + $0x8] sm:$0xf]
        %v1228 = vld [vmem:[%s5 + $0xc] sm:$0xf]
        %v1229 = vld [vmem:[%s5 + $0x10] sm:$0xf]
        %v1230 = vld [vmem:[%s5 + $0x14] sm:$0xf]
        %v1231 = vld [vmem:[%s5 + $0x18] sm:$0xf]
        %v1232 = vld [vmem:[%s5 + $0x1c] sm:$0xf]
        %v1233 = vld [vmem:[%s5 + $0x20] sm:$0xf]
        %v1234 = vld [vmem:[%s5 + $0x24] sm:$0xf]
        %v1235 = vld [vmem:[%s5 + $0x28] sm:$0xf]
        %v1236 = vld [vmem:[%s5 + $0x2c] sm:$0xf]
        %v1237 = vld [vmem:[%s5 + $0x30] sm:$0xf]
        %v1238 = vld [vmem:[%s5 + $0x34] sm:$0xf]
        %v1239 = vld [vmem:[%s5 + $0x38] sm:$0xf]
        %v1240 = vld [vmem:[%s5 + $0x3c] sm:$0xf]
        %v1257 = vunpack.c.l.b16 %v1225
        %v1258 = vunpack.c.l.b16 %v1226
        %v1259 = vunpack.c.l.b16 %v1227
        %v1260 = vunpack.c.l.b16 %v1228
        %v1261 = vunpack.c.l.b16 %v1229
        %v1262 = vunpack.c.l.b16 %v1230
        %v1263 = vunpack.c.l.b16 %v1231
        %v1264 = vunpack.c.l.b16 %v1232
        %v1265 = vunpack.c.l.b16 %v1233
        %v1266 = vunpack.c.l.b16 %v1234
        %v1267 = vunpack.c.l.b16 %v1235
        %v1268 = vunpack.c.l.b16 %v1236
        %v1269 = vunpack.c.l.b16 %v1237
        %v1270 = vunpack.c.l.b16 %v1238
        %v1271 = vunpack.c.l.b16 %v1239
        %v1272 = vunpack.c.l.b16 %v1240
        %v1273 = vpack.c.b16 %v1258, %v1257
        %v1274 = vpack.c.b16 %v1260, %v1259
        %v1275 = vpack.c.b16 %v1262, %v1261
        %v1276 = vpack.c.b16 %v1264, %v1263
        %v1277 = vpack.c.b16 %v1266, %v1265
        %v1278 = vpack.c.b16 %v1268, %v1267
        %v1279 = vpack.c.b16 %v1270, %v1269
        %v1280 = vpack.c.b16 %v1272, %v1271
        %1289 = vmatprep.subr.bf16.mxu0 0
        %1290 = vmatpush1.bf16.msra.mxu0 %v1273
        %1291 = vmatprep.subr.bf16.mxu0 0
        %1292 = vmatpush1.bf16.msra.mxu0 %v1274
        %1293 = vmatprep.subr.bf16.mxu0 0
        %1294 = vmatpush1.bf16.msra.mxu0 %v1275
        %1295 = vmatprep.subr.bf16.mxu0 0
        %1296 = vmatpush1.bf16.msra.mxu0 %v1276
        %1297 = vmatprep.subr.bf16.mxu0 0
        %1298 = vmatpush1.bf16.msra.mxu0 %v1277
        %1299 = vmatprep.subr.bf16.mxu0 0
        %1300 = vmatpush1.bf16.msra.mxu0 %v1278
        %1301 = vmatprep.subr.bf16.mxu0 0
        %1302 = vmatpush1.bf16.msra.mxu0 %v1279
        %1303 = vmatprep.subr.bf16.mxu0 0
        %1304 = vmatpush1.bf16.msra.mxu0 %v1280
        %1305 = vmatprep.subr.bf16.mxu0 0
        %1306 = vmatpush1.bf16.msra.mxu0 0
        %1307 = vmatprep.subr.bf16.mxu0 0
        %1308 = vmatpush1.bf16.msra.mxu0 0
        %1309 = vmatprep.subr.bf16.mxu0 0
        %1310 = vmatpush1.bf16.msra.mxu0 0
        %1311 = vmatprep.subr.bf16.mxu0 0
        %1312 = vmatpush1.bf16.msra.mxu0 0
        %1313 = vmatprep.subr.bf16.mxu0 0
        %1314 = vmatpush1.bf16.msra.mxu0 0
        %1315 = vmatprep.subr.bf16.mxu0 0
        %1316 = vmatpush1.bf16.msra.mxu0 0
        %1317 = vmatprep.subr.bf16.mxu0 0
        %1318 = vmatpush1.bf16.msra.mxu0 0
        %1319 = vmatprep.subr.bf16.mxu0 0
        %1320 = vmatpush1.bf16.msra.mxu0 0
        %1321 = vmatprep.mubr.bf16.mxu0 0
        %1322 = vmatmul.mubr.bf16.gmra.mrb[0].mxu0 %v1112
        %v1323 = vpop.f32.mrb[0].mxu0
        %v1324 = vadd.f32 0.0, %v1323
        %v1325 = vpop.f32.mrb[0].mxu0
        %v1326 = vpop.f32.mrb[0].mxu0
        %v1327 = vadd.f32 0.0, %v1326
        %v1328 = vpop.f32.mrb[0].mxu0
        %1329 = vdwg.mxu0
        %v1330 = vpack.c.bf16 %v1327, %v1324
        %v1331 = vld [vmem:[%s6] sm:$0x3]
        %vm1332 = vcmask 31744
        %v1334 = vsel %vm1332, %v1330, 0
        %vm1336 = vcmask 1041408
        %v1338 = vsel %vm1336, %v1331, 0
        %1340 = vmatprep.subr.bf16.mxu0 0
        %1341 = vmatpush1.bf16.msra.mxu0 %v1338
        %1342 = vmatprep.subr.bf16.mxu0 0
        %1343 = vmatpush1.bf16.msra.mxu0 0
        %1344 = vmatprep.subr.bf16.mxu0 0
        %1345 = vmatpush1.bf16.msra.mxu0 0
        %1346 = vmatprep.subr.bf16.mxu0 0
        %1347 = vmatpush1.bf16.msra.mxu0 0
        %1348 = vmatprep.subr.bf16.mxu0 0
        %1349 = vmatpush1.bf16.msra.mxu0 0
        %1350 = vmatprep.subr.bf16.mxu0 0
        %1351 = vmatpush1.bf16.msra.mxu0 0
        %1352 = vmatprep.subr.bf16.mxu0 0
        %1353 = vmatpush1.bf16.msra.mxu0 0
        %1354 = vmatprep.subr.bf16.mxu0 0
        %1355 = vmatpush1.bf16.msra.mxu0 0
        %1356 = vmatprep.subr.bf16.mxu0 0
        %1357 = vmatpush1.bf16.msra.mxu0 0
        %1358 = vmatprep.subr.bf16.mxu0 0
        %1359 = vmatpush1.bf16.msra.mxu0 0
        %1360 = vmatprep.subr.bf16.mxu0 0
        %1361 = vmatpush1.bf16.msra.mxu0 0
        %1362 = vmatprep.subr.bf16.mxu0 0
        %1363 = vmatpush1.bf16.msra.mxu0 0
        %1364 = vmatprep.subr.bf16.mxu0 0
        %1365 = vmatpush1.bf16.msra.mxu0 0
        %1366 = vmatprep.subr.bf16.mxu0 0
        %1367 = vmatpush1.bf16.msra.mxu0 0
        %1368 = vmatprep.subr.bf16.mxu0 0
        %1369 = vmatpush1.bf16.msra.mxu0 0
        %1370 = vmatprep.subr.bf16.mxu0 0
        %1371 = vmatpush1.bf16.msra.mxu0 0
        %1372 = vmatprep.mubr.bf16.mxu0 0
        %1373 = vmatmul.mubr.bf16.gmra.mrb[0].mxu0 %v1334
        %v1374 = vpop.f32.mrb[0].mxu0
        %v1375 = vadd.f32 0.0, %v1374
        %v1376 = vpop.f32.mrb[0].mxu0
        %v1377 = vpop.f32.mrb[0].mxu0
        %v1378 = vadd.f32 0.0, %v1377
        %v1379 = vpop.f32.mrb[0].mxu0
        %1380 = vdwg.mxu0
        %v1381 = vld [vmem:[%s539] sm:$0xff]
        %v1382 = vld [vmem:[%s539 + $0x8] sm:$0xff]
        %v1383 = vadd.f32 %v1381, %v1219
        %v1384 = vadd.f32 %v1382, %v1222
        %v1385 = vadd.f32 %v1383, %v1375
        %v1386 = vadd.f32 %v1384, %v1378
        %1387 = vst [vmem:[%s549] sm:$0xff] %v1385
        %1388 = vst [vmem:[%s549 + $0x8] sm:$0xff] %v1386
        %s1389 = smul.u32 2, %s24
        %p1390 = scmp.lt.s32.totalorder %s23, 1
        %s1391 = scalar_select %p1390, %s23, 1
        %p1392 = scmp.lt.s32.totalorder %s1389, 1
        %s1393 = scalar_select %p1392, %s1389, 1
        %s1394 = smul.addr %s1391, 2
        %s1395 = sadd.s32 %s1393, %s1394
        %s1396 = smul.addr %s1395, 8
        %s1397 = scalar_lea.vmem %s8, %s1396
        // Predicated region
        $region176: #{gpt_forward.10} parent=162 // pred_check
          %p1398 = pneg %p243
        $region177: #{gpt_forward.10} parent=162 // pred_check_branch
          %1400 = sbr.rel (%p1398) target = $region179
        $region178: #{gpt_forward.10} parent=162 // pred_region
          %s1401 = smul.u32 2, %s24
        $region179: #{gpt_forward.10} parent=162 // pred_fallthru
          _
      $region163: #{gpt_forward.10} parent=5 // pred_fallthru
        _
      %p1402 = scmp.le.s32.totalorder 2, %s14
      // Predicated region
      $region180: #{gpt_forward.10} parent=5 // pred_check
        %p1403 = pneg %p1402
      $region181: #{gpt_forward.10} parent=5 // pred_check_branch
        %1405 = sbr.rel (%p1403) target = $region183
      $region182: #{gpt_forward.10} parent=5 // pred_region
        %s1406 = ssub.s32 %s14, 2
        // Predicated region
        $region184: #{gpt_forward.10} parent=182 // pred_check
          %p1407 = pneg %p249
        $region185: #{gpt_forward.10} parent=182 // pred_check_branch
          %1409 = sbr.rel (%p1407) target = $region187
        $region186: #{gpt_forward.10} parent=182 // pred_region
          %s1410 = smul.u32 2, %s26
          %p1411 = scmp.lt.s32.totalorder %s25, 1
          %s1412 = scalar_select %p1411, %s25, 1
          %p1413 = scmp.lt.s32.totalorder %s1410, 1
          %s1414 = scalar_select %p1413, %s1410, 1
          %s1415 = smul.addr %s1412, 2
          %s1416 = sadd.s32 %s1414, %s1415
          %s1417 = smul.addr %s1416, 8
          %s1418 = scalar_lea.vmem %s8, %s1417
        $region187: #{gpt_forward.10} parent=182 // pred_fallthru
          _
      $region183: #{gpt_forward.10} parent=5 // pred_fallthru
        _
    $region6: #{gpt_forward.10} parent=1 // loop_footer
      %s18 = sadd.s32 1, %s14
    $region7: #{gpt_forward.10} parent=1 // loop_footer_branch
      %13 = sbr.rel target = $region3
    $region8: #{gpt_forward.10} parent=1 // loop_exit
      _

// kernel: gpt_forward.12
$region0: #{gpt_forward.12}
  #allocation0 [shape = 'u32[]', space=smem, size = 0x4, offset = 0x4, fixed_abs, tag = 'smem constant byte address 0x4 - core index']
  #allocation1 [shape = 'u32[144,128]{1,0:T(1,128)}', space=vmem, size = 0x12000, scoped, tag = 'internal scratch']
  #allocation2 [shape = 'f32[32,128]{1,0:T(8,128)}', space=vmem, size = 0x4000, scoped, tag = 'scratch operand']
  %s0 = inlined_call_operand.vmem [shape: bf16[32,512], index: 0, kind: input, shape index: {}]
  %s1 = inlined_call_operand.vmem [shape: bf16[512,128], index: 1, kind: input, shape index: {}]
  %s2 = inlined_call_operand.vmem [shape: f32[1,128], index: 2, kind: input, shape index: {}]
  %s3 = inlined_call_operand.vmem [shape: f32[32,128], index: 3, kind: input, shape index: {}, may-alias: {3,4}]
  %s4 = inlined_call_operand.vmem [shape: f32[32,128], index: 4, kind: output, shape index: {}, may-alias: {3,4}]
  %s5 = sld [smem:[#allocation0]]
  $region34: #{gpt_forward.12} parent=0
    _
  %s7 = ssub.s32 1, %s5
  %s8 = scalar_select 0, %s7, %s5
  // Predicated region
  $region2: #{gpt_forward.12} parent=0 // pred_check
    _
  $region3: #{gpt_forward.12} parent=0 // pred_check_branch
    %10 = sbr.rel (0) target = $region5
  $region4: #{gpt_forward.12} parent=0 // pred_region
    _
  $region5: #{gpt_forward.12} parent=0 // pred_fallthru
    _
  // Predicated region
  $region6: #{gpt_forward.12} parent=0 // pred_check
    _
  $region7: #{gpt_forward.12} parent=0 // pred_check_branch
    %12 = sbr.rel (0) target = $region9
  $region8: #{gpt_forward.12} parent=0 // pred_region
    _
  $region9: #{gpt_forward.12} parent=0 // pred_fallthru
    _
  // Predicated region
  $region10: #{gpt_forward.12} parent=0 // pred_check
    _
  $region11: #{gpt_forward.12} parent=0 // pred_check_branch
    %14 = sbr.rel (0) target = $region13
  $region12: #{gpt_forward.12} parent=0 // pred_region
    _
  $region13: #{gpt_forward.12} parent=0 // pred_fallthru
    _
  // Predicated region
  $region14: #{gpt_forward.12} parent=0 // pred_check
    _
  $region15: #{gpt_forward.12} parent=0 // pred_check_branch
    %16 = sbr.rel (0) target = $region17
  $region16: #{gpt_forward.12} parent=0 // pred_region
    _
  $region17: #{gpt_forward.12} parent=0 // pred_fallthru
    _
  %p18 = scmp.eq.s32.totalorder 0, 0
  // Predicated region
  $region18: #{gpt_forward.12} parent=0 // pred_check
    %p19 = pneg %p18
  $region19: #{gpt_forward.12} parent=0 // pred_check_branch
    %21 = sbr.rel (%p19) target = $region21
  $region20: #{gpt_forward.12} parent=0 // pred_region
    %22 = vst [vmem:[#allocation2] sm:$0xff] 0.0
    %23 = vst [vmem:[#allocation2 + $0x8] sm:$0xff] 0.0
    %24 = vst [vmem:[#allocation2 + $0x10] sm:$0xff] 0.0
    %25 = vst [vmem:[#allocation2 + $0x18] sm:$0xff] 0.0
  $region21: #{gpt_forward.12} parent=0 // pred_fallthru
    _
  %v26 = vld [vmem:[#allocation2] sm:$0xff]
  %v27 = vld [vmem:[#allocation2 + $0x8] sm:$0xff]
  %v28 = vld [vmem:[#allocation2 + $0x10] sm:$0xff]
  %v29 = vld [vmem:[#allocation2 + $0x18] sm:$0xff]
  %v30 = vld [vmem:[%s0] sm:$0xff]
  %v31 = vld [vmem:[%s0 + $0x8] sm:$0xff]
  %v32 = vld [vmem:[%s0 + $0x10] sm:$0xff]
  %v33 = vld [vmem:[%s0 + $0x18] sm:$0xff]
  %v34 = vld [vmem:[%s0 + $0x20] sm:$0xff]
  %v35 = vld [vmem:[%s0 + $0x28] sm:$0xff]
  %v36 = vld [vmem:[%s0 + $0x30] sm:$0xff]
  %v37 = vld [vmem:[%s0 + $0x38] sm:$0xff]
  %v38 = vld [vmem:[%s1] sm:$0xf]
  %v39 = vld [vmem:[%s1 + $0x4] sm:$0xf]
  %v40 = vld [vmem:[%s1 + $0x8] sm:$0xf]
  %v41 = vld [vmem:[%s1 + $0xc] sm:$0xf]
  %v42 = vld [vmem:[%s1 + $0x10] sm:$0xf]
  %v43 = vld [vmem:[%s1 + $0x14] sm:$0xf]
  %v44 = vld [vmem:[%s1 + $0x18] sm:$0xf]
  %v45 = vld [vmem:[%s1 + $0x1c] sm:$0xf]
  %v46 = vld [vmem:[%s1 + $0x20] sm:$0xf]
  %v47 = vld [vmem:[%s1 + $0x24] sm:$0xf]
  %v48 = vld [vmem:[%s1 + $0x28] sm:$0xf]
  %v49 = vld [vmem:[%s1 + $0x2c] sm:$0xf]
  %v50 = vld [vmem:[%s1 + $0x30] sm:$0xf]
  %v51 = vld [vmem:[%s1 + $0x34] sm:$0xf]
  %v52 = vld [vmem:[%s1 + $0x38] sm:$0xf]
  %v53 = vld [vmem:[%s1 + $0x3c] sm:$0xf]
  %v54 = vld [vmem:[%s1 + $0x40] sm:$0xf]
  %v55 = vld [vmem:[%s1 + $0x44] sm:$0xf]
  %v56 = vld [vmem:[%s1 + $0x48] sm:$0xf]
  %v57 = vld [vmem:[%s1 + $0x4c] sm:$0xf]
  %v58 = vld [vmem:[%s1 + $0x50] sm:$0xf]
  %v59 = vld [vmem:[%s1 + $0x54] sm:$0xf]
  %v60 = vld [vmem:[%s1 + $0x58] sm:$0xf]
  %v61 = vld [vmem:[%s1 + $0x5c] sm:$0xf]
  %v62 = vld [vmem:[%s1 + $0x60] sm:$0xf]
  %v63 = vld [vmem:[%s1 + $0x64] sm:$0xf]
  %v64 = vld [vmem:[%s1 + $0x68] sm:$0xf]
  %v65 = vld [vmem:[%s1 + $0x6c] sm:$0xf]
  %v66 = vld [vmem:[%s1 + $0x70] sm:$0xf]
  %v67 = vld [vmem:[%s1 + $0x74] sm:$0xf]
  %v68 = vld [vmem:[%s1 + $0x78] sm:$0xf]
  %v69 = vld [vmem:[%s1 + $0x7c] sm:$0xf]
  %v70 = vld [vmem:[%s1 + $0x80] sm:$0xf]
  %v71 = vld [vmem:[%s1 + $0x84] sm:$0xf]
  %v72 = vld [vmem:[%s1 + $0x88] sm:$0xf]
  %v73 = vld [vmem:[%s1 + $0x8c] sm:$0xf]
  %v74 = vld [vmem:[%s1 + $0x90] sm:$0xf]
  %v75 = vld [vmem:[%s1 + $0x94] sm:$0xf]
  %v76 = vld [vmem:[%s1 + $0x98] sm:$0xf]
  %v77 = vld [vmem:[%s1 + $0x9c] sm:$0xf]
  %v78 = vld [vmem:[%s1 + $0xa0] sm:$0xf]
  %v79 = vld [vmem:[%s1 + $0xa4] sm:$0xf]
  %v80 = vld [vmem:[%s1 + $0xa8] sm:$0xf]
  %v81 = vld [vmem:[%s1 + $0xac] sm:$0xf]
  %v82 = vld [vmem:[%s1 + $0xb0] sm:$0xf]
  %v83 = vld [vmem:[%s1 + $0xb4] sm:$0xf]
  %v84 = vld [vmem:[%s1 + $0xb8] sm:$0xf]
  %v85 = vld [vmem:[%s1 + $0xbc] sm:$0xf]
  %v86 = vld [vmem:[%s1 + $0xc0] sm:$0xf]
  %v87 = vld [vmem:[%s1 + $0xc4] sm:$0xf]
  %v88 = vld [vmem:[%s1 + $0xc8] sm:$0xf]
  %v89 = vld [vmem:[%s1 + $0xcc] sm:$0xf]
  %v90 = vld [vmem:[%s1 + $0xd0] sm:$0xf]
  %v91 = vld [vmem:[%s1 + $0xd4] sm:$0xf]
  %v92 = vld [vmem:[%s1 + $0xd8] sm:$0xf]
  %v93 = vld [vmem:[%s1 + $0xdc] sm:$0xf]
  %v94 = vld [vmem:[%s1 + $0xe0] sm:$0xf]
  %v95 = vld [vmem:[%s1 + $0xe4] sm:$0xf]
  %v96 = vld [vmem:[%s1 + $0xe8] sm:$0xf]
  %v97 = vld [vmem:[%s1 + $0xec] sm:$0xf]
  %v98 = vld [vmem:[%s1 + $0xf0] sm:$0xf]
  %v99 = vld [vmem:[%s1 + $0xf4] sm:$0xf]
  %v100 = vld [vmem:[%s1 + $0xf8] sm:$0xf]
  %v101 = vld [vmem:[%s1 + $0xfc] sm:$0xf]
  %v110 = vunpack.c.l.b16 %v30
  %v111 = vunpack.c.h.b16 %v30
  %v112 = vunpack.c.l.b16 %v31
  %v113 = vunpack.c.h.b16 %v31
  %v114 = vunpack.c.l.b16 %v32
  %v115 = vunpack.c.h.b16 %v32
  %v116 = vunpack.c.l.b16 %v33
  %v117 = vunpack.c.h.b16 %v33
  %v118 = vunpack.c.l.b16 %v34
  %v119 = vunpack.c.h.b16 %v34
  %v120 = vunpack.c.l.b16 %v35
  %v121 = vunpack.c.h.b16 %v35
  %v122 = vunpack.c.l.b16 %v36
  %v123 = vunpack.c.h.b16 %v36
  %v124 = vunpack.c.l.b16 %v37
  %v125 = vunpack.c.h.b16 %v37
  %v126 = vpack.c.b16 %v114, %v110
  %v127 = vpack.c.b16 %v115, %v111
  %v128 = vpack.c.b16 %v116, %v112
  %v129 = vpack.c.b16 %v117, %v113
  %v130 = vpack.c.b16 %v122, %v118
  %v131 = vpack.c.b16 %v123, %v119
  %v132 = vpack.c.b16 %v124, %v120
  %v133 = vpack.c.b16 %v125, %v121
  %v206 = vunpack.c.l.b16 %v38
  %v207 = vunpack.c.l.b16 %v39
  %v208 = vunpack.c.l.b16 %v40
  %v209 = vunpack.c.l.b16 %v41
  %v210 = vunpack.c.l.b16 %v42
  %v211 = vunpack.c.l.b16 %v43
  %v212 = vunpack.c.l.b16 %v44
  %v213 = vunpack.c.l.b16 %v45
  %v214 = vunpack.c.l.b16 %v46
  %v215 = vunpack.c.l.b16 %v47
  %v216 = vunpack.c.l.b16 %v48
  %v217 = vunpack.c.l.b16 %v49
  %v218 = vunpack.c.l.b16 %v50
  %v219 = vunpack.c.l.b16 %v51
  %v220 = vunpack.c.l.b16 %v52
  %v221 = vunpack.c.l.b16 %v53
  %v222 = vunpack.c.l.b16 %v54
  %v223 = vunpack.c.l.b16 %v55
  %v224 = vunpack.c.l.b16 %v56
  %v225 = vunpack.c.l.b16 %v57
  %v226 = vunpack.c.l.b16 %v58
  %v227 = vunpack.c.l.b16 %v59
  %v228 = vunpack.c.l.b16 %v60
  %v229 = vunpack.c.l.b16 %v61
  %v230 = vunpack.c.l.b16 %v62
  %v231 = vunpack.c.l.b16 %v63
  %v232 = vunpack.c.l.b16 %v64
  %v233 = vunpack.c.l.b16 %v65
  %v234 = vunpack.c.l.b16 %v66
  %v235 = vunpack.c.l.b16 %v67
  %v236 = vunpack.c.l.b16 %v68
  %v237 = vunpack.c.l.b16 %v69
  %v238 = vunpack.c.l.b16 %v70
  %v239 = vunpack.c.l.b16 %v71
  %v240 = vunpack.c.l.b16 %v72
  %v241 = vunpack.c.l.b16 %v73
  %v242 = vunpack.c.l.b16 %v74
  %v243 = vunpack.c.l.b16 %v75
  %v244 = vunpack.c.l.b16 %v76
  %v245 = vunpack.c.l.b16 %v77
  %v246 = vunpack.c.l.b16 %v78
  %v247 = vunpack.c.l.b16 %v79
  %v248 = vunpack.c.l.b16 %v80
  %v249 = vunpack.c.l.b16 %v81
  %v250 = vunpack.c.l.b16 %v82
  %v251 = vunpack.c.l.b16 %v83
  %v252 = vunpack.c.l.b16 %v84
  %v253 = vunpack.c.l.b16 %v85
  %v254 = vunpack.c.l.b16 %v86
  %v255 = vunpack.c.l.b16 %v87
  %v256 = vunpack.c.l.b16 %v88
  %v257 = vunpack.c.l.b16 %v89
  %v258 = vunpack.c.l.b16 %v90
  %v259 = vunpack.c.l.b16 %v91
  %v260 = vunpack.c.l.b16 %v92
  %v261 = vunpack.c.l.b16 %v93
  %v262 = vunpack.c.l.b16 %v94
  %v263 = vunpack.c.l.b16 %v95
  %v264 = vunpack.c.l.b16 %v96
  %v265 = vunpack.c.l.b16 %v97
  %v266 = vunpack.c.l.b16 %v98
  %v267 = vunpack.c.l.b16 %v99
  %v268 = vunpack.c.l.b16 %v100
  %v269 = vunpack.c.l.b16 %v101
  %v270 = vpack.c.b16 %v207, %v206
  %v271 = vpack.c.b16 %v209, %v208
  %v272 = vpack.c.b16 %v211, %v210
  %v273 = vpack.c.b16 %v213, %v212
  %v274 = vpack.c.b16 %v215, %v214
  %v275 = vpack.c.b16 %v217, %v216
  %v276 = vpack.c.b16 %v219, %v218
  %v277 = vpack.c.b16 %v221, %v220
  %v278 = vpack.c.b16 %v223, %v222
  %v279 = vpack.c.b16 %v225, %v224
  %v280 = vpack.c.b16 %v227, %v226
  %v281 = vpack.c.b16 %v229, %v228
  %v282 = vpack.c.b16 %v231, %v230
  %v283 = vpack.c.b16 %v233, %v232
  %v284 = vpack.c.b16 %v235, %v234
  %v285 = vpack.c.b16 %v237, %v236
  %v286 = vpack.c.b16 %v239, %v238
  %v287 = vpack.c.b16 %v241, %v240
  %v288 = vpack.c.b16 %v243, %v242
  %v289 = vpack.c.b16 %v245, %v244
  %v290 = vpack.c.b16 %v247, %v246
  %v291 = vpack.c.b16 %v249, %v248
  %v292 = vpack.c.b16 %v251, %v250
  %v293 = vpack.c.b16 %v253, %v252
  %v294 = vpack.c.b16 %v255, %v254
  %v295 = vpack.c.b16 %v257, %v256
  %v296 = vpack.c.b16 %v259, %v258
  %v297 = vpack.c.b16 %v261, %v260
  %v298 = vpack.c.b16 %v263, %v262
  %v299 = vpack.c.b16 %v265, %v264
  %v300 = vpack.c.b16 %v267, %v266
  %v301 = vpack.c.b16 %v269, %v268
  %334 = vmatprep.subr.bf16.mxu0 0
  %335 = vmatpush1.bf16.msra.mxu0 %v270
  %336 = vmatprep.subr.bf16.mxu0 0
  %337 = vmatpush1.bf16.msra.mxu0 %v271
  %338 = vmatprep.subr.bf16.mxu0 0
  %339 = vmatpush1.bf16.msra.mxu0 %v272
  %340 = vmatprep.subr.bf16.mxu0 0
  %341 = vmatpush1.bf16.msra.mxu0 %v273
  %342 = vmatprep.subr.bf16.mxu0 0
  %343 = vmatpush1.bf16.msra.mxu0 %v274
  %344 = vmatprep.subr.bf16.mxu0 0
  %345 = vmatpush1.bf16.msra.mxu0 %v275
  %346 = vmatprep.subr.bf16.mxu0 0
  %347 = vmatpush1.bf16.msra.mxu0 %v276
  %348 = vmatprep.subr.bf16.mxu0 0
  %349 = vmatpush1.bf16.msra.mxu0 %v277
  %350 = vmatprep.subr.bf16.mxu0 0
  %351 = vmatpush1.bf16.msra.mxu0 %v278
  %352 = vmatprep.subr.bf16.mxu0 0
  %353 = vmatpush1.bf16.msra.mxu0 %v279
  %354 = vmatprep.subr.bf16.mxu0 0
  %355 = vmatpush1.bf16.msra.mxu0 %v280
  %356 = vmatprep.subr.bf16.mxu0 0
  %357 = vmatpush1.bf16.msra.mxu0 %v281
  %358 = vmatprep.subr.bf16.mxu0 0
  %359 = vmatpush1.bf16.msra.mxu0 %v282
  %360 = vmatprep.subr.bf16.mxu0 0
  %361 = vmatpush1.bf16.msra.mxu0 %v283
  %362 = vmatprep.subr.bf16.mxu0 0
  %363 = vmatpush1.bf16.msra.mxu0 %v284
  %364 = vmatprep.subr.bf16.mxu0 0
  %365 = vmatpush1.bf16.msra.mxu0 %v285
  %366 = vmatprep.mubr.bf16.mxu0 %v127
  %367 = vmatmul.mubr.bf16.gmra.mrb[0].mxu0 %v126
  %v368 = vpop.f32.mrb[0].mxu0
  %v369 = vadd.f32 0.0, %v368
  %v370 = vpop.f32.mrb[0].mxu0
  %v371 = vpop.f32.mrb[0].mxu0
  %v372 = vadd.f32 0.0, %v371
  %v373 = vpop.f32.mrb[0].mxu0
  %374 = vmatprep.mubr.bf16.mxu0 %v131
  %375 = vmatmul.mubr.bf16.gmra.mrb[0].mxu0 %v130
  %v376 = vpop.f32.mrb[0].mxu0
  %v377 = vadd.f32 0.0, %v376
  %v378 = vpop.f32.mrb[0].mxu0
  %v379 = vpop.f32.mrb[0].mxu0
  %v380 = vadd.f32 0.0, %v379
  %v381 = vpop.f32.mrb[0].mxu0
  %382 = vdwg.mxu0
  %383 = vmatprep.subr.bf16.mxu0 0
  %384 = vmatpush1.bf16.msra.mxu0 %v286
  %385 = vmatprep.subr.bf16.mxu0 0
  %386 = vmatpush1.bf16.msra.mxu0 %v287
  %387 = vmatprep.subr.bf16.mxu0 0
  %388 = vmatpush1.bf16.msra.mxu0 %v288
  %389 = vmatprep.subr.bf16.mxu0 0
  %390 = vmatpush1.bf16.msra.mxu0 %v289
  %391 = vmatprep.subr.bf16.mxu0 0
  %392 = vmatpush1.bf16.msra.mxu0 %v290
  %393 = vmatprep.subr.bf16.mxu0 0
  %394 = vmatpush1.bf16.msra.mxu0 %v291
  %395 = vmatprep.subr.bf16.mxu0 0
  %396 = vmatpush1.bf16.msra.mxu0 %v292
  %397 = vmatprep.subr.bf16.mxu0 0
  %398 = vmatpush1.bf16.msra.mxu0 %v293
  %399 = vmatprep.subr.bf16.mxu0 0
  %400 = vmatpush1.bf16.msra.mxu0 %v294
  %401 = vmatprep.subr.bf16.mxu0 0
  %402 = vmatpush1.bf16.msra.mxu0 %v295
  %403 = vmatprep.subr.bf16.mxu0 0
  %404 = vmatpush1.bf16.msra.mxu0 %v296
  %405 = vmatprep.subr.bf16.mxu0 0
  %406 = vmatpush1.bf16.msra.mxu0 %v297
  %407 = vmatprep.subr.bf16.mxu0 0
  %408 = vmatpush1.bf16.msra.mxu0 %v298
  %409 = vmatprep.subr.bf16.mxu0 0
  %410 = vmatpush1.bf16.msra.mxu0 %v299
  %411 = vmatprep.subr.bf16.mxu0 0
  %412 = vmatpush1.bf16.msra.mxu0 %v300
  %413 = vmatprep.subr.bf16.mxu0 0
  %414 = vmatpush1.bf16.msra.mxu0 %v301
  %415 = vmatprep.mubr.bf16.mxu0 %v129
  %416 = vmatmul.mubr.bf16.gmra.mrb[0].mxu0 %v128
  %v417 = vpop.f32.mrb[0].mxu0
  %v418 = vadd.f32 %v369, %v417
  %v419 = vpop.f32.mrb[0].mxu0
  %v420 = vpop.f32.mrb[0].mxu0
  %v421 = vadd.f32 %v372, %v420
  %v422 = vpop.f32.mrb[0].mxu0
  %423 = vmatprep.mubr.bf16.mxu0 %v133
  %424 = vmatmul.mubr.bf16.gmra.mrb[0].mxu0 %v132
  %v425 = vpop.f32.mrb[0].mxu0
  %v426 = vadd.f32 %v377, %v425
  %v427 = vpop.f32.mrb[0].mxu0
  %v428 = vpop.f32.mrb[0].mxu0
  %v429 = vadd.f32 %v380, %v428
  %v430 = vpop.f32.mrb[0].mxu0
  %431 = vdwg.mxu0
  %v432 = vadd.f32 %v26, %v418
  %v433 = vadd.f32 %v27, %v421
  %v434 = vadd.f32 %v28, %v426
  %v435 = vadd.f32 %v29, %v429
  %436 = vst [vmem:[#allocation2] sm:$0xff] %v432
  %437 = vst [vmem:[#allocation2 + $0x8] sm:$0xff] %v433
  %438 = vst [vmem:[#allocation2 + $0x10] sm:$0xff] %v434
  %439 = vst [vmem:[#allocation2 + $0x18] sm:$0xff] %v435
  // Predicated region
  $region22: #{gpt_forward.12} parent=0 // pred_check
    %p440 = pneg %p18
  $region23: #{gpt_forward.12} parent=0 // pred_check_branch
    %442 = sbr.rel (%p440) target = $region25
  $region24: #{gpt_forward.12} parent=0 // pred_region
    %v443 = vld [vmem:[#allocation2] sm:$0xff]
    %v444 = vld [vmem:[#allocation2 + $0x8] sm:$0xff]
    %v445 = vld [vmem:[#allocation2 + $0x10] sm:$0xff]
    %v446 = vld [vmem:[#allocation2 + $0x18] sm:$0xff]
    %v447 = vld [vmem:[%s2] sm:$0x1]
    %v449 = vlaneseq
    %v450 = vshrl.u32 %v449, 7
    %v451 = vsub.s32 0, %v450
    %v452 = vrot.slane %v447, %v451
    %v454 = vadd.f32 %v443, %v452
    %v455 = vadd.f32 %v444, %v452
    %v456 = vadd.f32 %v445, %v452
    %v457 = vadd.f32 %v446, %v452
    %v458 = vld [vmem:[%s3] sm:$0xff]
    %v459 = vld [vmem:[%s3 + $0x8] sm:$0xff]
    %v460 = vld [vmem:[%s3 + $0x10] sm:$0xff]
    %v461 = vld [vmem:[%s3 + $0x18] sm:$0xff]
    %v462 = vadd.f32 %v454, %v458
    %v463 = vadd.f32 %v455, %v459
    %v464 = vadd.f32 %v456, %v460
    %v465 = vadd.f32 %v457, %v461
    %466 = vst [vmem:[%s4] sm:$0xff] %v462
    %467 = vst [vmem:[%s4 + $0x8] sm:$0xff] %v463
    %468 = vst [vmem:[%s4 + $0x10] sm:$0xff] %v464
    %469 = vst [vmem:[%s4 + $0x18] sm:$0xff] %v465
  $region25: #{gpt_forward.12} parent=0 // pred_fallthru
    _
  // Predicated region
  $region26: #{gpt_forward.12} parent=0 // pred_check
    _
  $region27: #{gpt_forward.12} parent=0 // pred_check_branch
    %471 = sbr.rel (0) target = $region29
  $region28: #{gpt_forward.12} parent=0 // pred_region
    _
  $region29: #{gpt_forward.12} parent=0 // pred_fallthru
    _
  // Predicated region
  $region30: #{gpt_forward.12} parent=0 // pred_check
    _
  $region31: #{gpt_forward.12} parent=0 // pred_check_branch
    %473 = sbr.rel (0) target = $region33
  $region32: #{gpt_forward.12} parent=0 // pred_region
    _
  $region33: #{gpt_forward.12} parent=0 // pred_fallthru
    _

// kernel: gpt_forward.9
$region0: #{gpt_forward.9}
  #allocation0 [shape = 'u32[]', space=smem, size = 0x4, offset = 0x4, fixed_abs, tag = 'smem constant byte address 0x4 - core index']
  #allocation1 [shape = 'u32[144,128]{1,0:T(1,128)}', space=vmem, size = 0x12000, scoped, tag = 'internal scratch']
  %s0 = inlined_call_operand.vmem [shape: f32[32,128], index: 0, kind: input, shape index: {}]
  %s1 = inlined_call_operand.vmem [shape: f32[1,128], index: 1, kind: input, shape index: {}]
  %s2 = inlined_call_operand.vmem [shape: f32[1,128], index: 2, kind: input, shape index: {}]
  %s3 = inlined_call_operand.vmem [shape: bf16[128,384], index: 3, kind: input, shape index: {}]
  %s4 = inlined_call_operand.vmem [shape: f32[1,384], index: 4, kind: input, shape index: {}]
  %s5 = inlined_call_operand.vmem [shape: bf16[128,12], index: 5, kind: input, shape index: {}]
  %s6 = inlined_call_operand.vmem [shape: f32[1,12], index: 6, kind: input, shape index: {}]
  %s7 = inlined_call_operand.vmem [shape: bf16[12,384], index: 7, kind: input, shape index: {}]
  %s8 = inlined_call_operand.vmem [shape: bf16[32,384], index: 8, kind: output, shape index: {}]
  %s9 = sld [smem:[#allocation0]]
  $region42: #{gpt_forward.9} parent=0
    _
  %s11 = ssub.s32 1, %s9
  %s12 = scalar_select 0, %s11, %s9
  // Predicated region
  $region2: #{gpt_forward.9} parent=0 // pred_check
    _
  $region3: #{gpt_forward.9} parent=0 // pred_check_branch
    %14 = sbr.rel (0) target = $region5
  $region4: #{gpt_forward.9} parent=0 // pred_region
    _
  $region5: #{gpt_forward.9} parent=0 // pred_fallthru
    _
  // Predicated region
  $region6: #{gpt_forward.9} parent=0 // pred_check
    _
  $region7: #{gpt_forward.9} parent=0 // pred_check_branch
    %16 = sbr.rel (0) target = $region9
  $region8: #{gpt_forward.9} parent=0 // pred_region
    _
  $region9: #{gpt_forward.9} parent=0 // pred_fallthru
    _
  // Predicated region
  $region10: #{gpt_forward.9} parent=0 // pred_check
    _
  $region11: #{gpt_forward.9} parent=0 // pred_check_branch
    %18 = sbr.rel (0) target = $region13
  $region12: #{gpt_forward.9} parent=0 // pred_region
    _
  $region13: #{gpt_forward.9} parent=0 // pred_fallthru
    _
  // Predicated region
  $region14: #{gpt_forward.9} parent=0 // pred_check
    _
  $region15: #{gpt_forward.9} parent=0 // pred_check_branch
    %20 = sbr.rel (0) target = $region17
  $region16: #{gpt_forward.9} parent=0 // pred_region
    _
  $region17: #{gpt_forward.9} parent=0 // pred_fallthru
    _
  // Predicated region
  $region18: #{gpt_forward.9} parent=0 // pred_check
    _
  $region19: #{gpt_forward.9} parent=0 // pred_check_branch
    %22 = sbr.rel (0) target = $region21
  $region20: #{gpt_forward.9} parent=0 // pred_region
    _
  $region21: #{gpt_forward.9} parent=0 // pred_fallthru
    _
  // Predicated region
  $region22: #{gpt_forward.9} parent=0 // pred_check
    _
  $region23: #{gpt_forward.9} parent=0 // pred_check_branch
    %24 = sbr.rel (0) target = $region25
  $region24: #{gpt_forward.9} parent=0 // pred_region
    _
  $region25: #{gpt_forward.9} parent=0 // pred_fallthru
    _
  // Predicated region
  $region26: #{gpt_forward.9} parent=0 // pred_check
    _
  $region27: #{gpt_forward.9} parent=0 // pred_check_branch
    %26 = sbr.rel (0) target = $region29
  $region28: #{gpt_forward.9} parent=0 // pred_region
    _
  $region29: #{gpt_forward.9} parent=0 // pred_fallthru
    _
  // Predicated region
  $region30: #{gpt_forward.9} parent=0 // pred_check
    _
  $region31: #{gpt_forward.9} parent=0 // pred_check_branch
    %28 = sbr.rel (0) target = $region33
  $region32: #{gpt_forward.9} parent=0 // pred_region
    _
  $region33: #{gpt_forward.9} parent=0 // pred_fallthru
    _
  %v30 = vld [vmem:[%s0] sm:$0xff]
  %v31 = vld [vmem:[%s0 + $0x8] sm:$0xff]
  %v32 = vld [vmem:[%s0 + $0x10] sm:$0xff]
  %v33 = vld [vmem:[%s0 + $0x18] sm:$0xff]
  %v34 = vld [vmem:[%s1] sm:$0x1]
  %v35 = vld [vmem:[%s2] sm:$0x1]
  %36 = vadd.xlane.f32.xlu0 %v30
  %v37 = vpop.xlane.xlu0 %36
  %38 = vadd.xlane.f32.xlu0 %v31
  %v39 = vpop.xlane.xlu0 %38
  %40 = vadd.xlane.f32.xlu0 %v32
  %v41 = vpop.xlane.xlu0 %40
  %42 = vadd.xlane.f32.xlu0 %v33
  %v43 = vpop.xlane.xlu0 %42
  %v44 = vrcp.pop 128.0
  %v45 = vmul.f32 %v37, %v44
  %v46 = vmul.f32 %v39, %v44
  %v47 = vmul.f32 %v41, %v44
  %v48 = vmul.f32 %v43, %v44
  %v49 = vsub.f32 %v30, %v45
  %v50 = vsub.f32 %v31, %v46
  %v51 = vsub.f32 %v32, %v47
  %v52 = vsub.f32 %v33, %v48
  %v53 = vmul.f32 %v49, %v49
  %v54 = vmul.f32 %v50, %v50
  %v55 = vmul.f32 %v51, %v51
  %v56 = vmul.f32 %v52, %v52
  %57 = vadd.xlane.f32.xlu0 %v53
  %v58 = vpop.xlane.xlu0 %57
  %59 = vadd.xlane.f32.xlu0 %v54
  %v60 = vpop.xlane.xlu0 %59
  %61 = vadd.xlane.f32.xlu0 %v55
  %v62 = vpop.xlane.xlu0 %61
  %63 = vadd.xlane.f32.xlu0 %v56
  %v64 = vpop.xlane.xlu0 %63
  %v65 = vmul.f32 %v58, %v44
  %v66 = vmul.f32 %v60, %v44
  %v67 = vmul.f32 %v62, %v44
  %v68 = vmul.f32 %v64, %v44
  %v69 = vadd.f32 %v65, 1e-05
  %v70 = vadd.f32 %v66, 1e-05
  %v71 = vadd.f32 %v67, 1e-05
  %v72 = vadd.f32 %v68, 1e-05
  %v73 = vrsqrt.pop %v69
  %v74 = vrsqrt.pop %v70
  %v75 = vrsqrt.pop %v71
  %v76 = vrsqrt.pop %v72
  %v77 = vmul.f32 %v49, %v73
  %v78 = vmul.f32 %v50, %v74
  %v79 = vmul.f32 %v51, %v75
  %v80 = vmul.f32 %v52, %v76
  %v82 = vlaneseq
  %v83 = vshrl.u32 %v82, 7
  %v84 = vsub.s32 0, %v83
  %v85 = vrot.slane %v34, %v84
  %v87 = vmul.f32 %v77, %v85
  %v88 = vmul.f32 %v78, %v85
  %v89 = vmul.f32 %v79, %v85
  %v90 = vmul.f32 %v80, %v85
  %v92 = vlaneseq
  %v93 = vshrl.u32 %v92, 7
  %v94 = vsub.s32 0, %v93
  %v95 = vrot.slane %v35, %v94
  %v97 = vadd.f32 %v87, %v95
  %v98 = vadd.f32 %v88, %v95
  %v99 = vadd.f32 %v89, %v95
  %v100 = vadd.f32 %v90, %v95
  %v101 = vpack.c.bf16 %v98, %v97
  %v102 = vpack.c.bf16 %v100, %v99
  %v103 = vld [vmem:[%s3] sm:$0xff]
  %v104 = vld [vmem:[%s3 + $0x8] sm:$0xf]
  %v105 = vld [vmem:[%s3 + $0xc] sm:$0xff]
  %v106 = vld [vmem:[%s3 + $0x14] sm:$0xf]
  %v107 = vld [vmem:[%s3 + $0x18] sm:$0xff]
  %v108 = vld [vmem:[%s3 + $0x20] sm:$0xf]
  %v109 = vld [vmem:[%s3 + $0x24] sm:$0xff]
  %v110 = vld [vmem:[%s3 + $0x2c] sm:$0xf]
  %v111 = vld [vmem:[%s3 + $0x30] sm:$0xff]
  %v112 = vld [vmem:[%s3 + $0x38] sm:$0xf]
  %v113 = vld [vmem:[%s3 + $0x3c] sm:$0xff]
  %v114 = vld [vmem:[%s3 + $0x44] sm:$0xf]
  %v115 = vld [vmem:[%s3 + $0x48] sm:$0xff]
  %v116 = vld [vmem:[%s3 + $0x50] sm:$0xf]
  %v117 = vld [vmem:[%s3 + $0x54] sm:$0xff]
  %v118 = vld [vmem:[%s3 + $0x5c] sm:$0xf]
  %v119 = vld [vmem:[%s3 + $0x60] sm:$0xff]
  %v120 = vld [vmem:[%s3 + $0x68] sm:$0xf]
  %v121 = vld [vmem:[%s3 + $0x6c] sm:$0xff]
  %v122 = vld [vmem:[%s3 + $0x74] sm:$0xf]
  %v123 = vld [vmem:[%s3 + $0x78] sm:$0xff]
  %v124 = vld [vmem:[%s3 + $0x80] sm:$0xf]
  %v125 = vld [vmem:[%s3 + $0x84] sm:$0xff]
  %v126 = vld [vmem:[%s3 + $0x8c] sm:$0xf]
  %v127 = vld [vmem:[%s3 + $0x90] sm:$0xff]
  %v128 = vld [vmem:[%s3 + $0x98] sm:$0xf]
  %v129 = vld [vmem:[%s3 + $0x9c] sm:$0xff]
  %v130 = vld [vmem:[%s3 + $0xa4] sm:$0xf]
  %v131 = vld [vmem:[%s3 + $0xa8] sm:$0xff]
  %v132 = vld [vmem:[%s3 + $0xb0] sm:$0xf]
  %v133 = vld [vmem:[%s3 + $0xb4] sm:$0xff]
  %v134 = vld [vmem:[%s3 + $0xbc] sm:$0xf]
  %v135 = vld [vmem:[%s4] sm:$0x7]
  %v137 = vlaneseq
  %v138 = vshrl.u32 %v137, 7
  %v139 = vsub.s32 0, %v138
  %v140 = vrot.slane %v135, %v139
  %v141 = vlaneseq
  %v142 = vshrl.u32 %v141, 7
  %v143 = vsub.s32 1, %v142
  %v144 = vrot.slane %v135, %v143
  %v145 = vlaneseq
  %v146 = vshrl.u32 %v145, 7
  %v147 = vsub.s32 2, %v146
  %v148 = vrot.slane %v135, %v147
  %v184 = vunpack.c.l.b16 %v103
  %v185 = vunpack.c.h.b16 %v103
  %v186 = vunpack.c.l.b16 %v104
  %v187 = vunpack.c.l.b16 %v105
  %v188 = vunpack.c.h.b16 %v105
  %v189 = vunpack.c.l.b16 %v106
  %v190 = vunpack.c.l.b16 %v107
  %v191 = vunpack.c.h.b16 %v107
  %v192 = vunpack.c.l.b16 %v108
  %v193 = vunpack.c.l.b16 %v109
  %v194 = vunpack.c.h.b16 %v109
  %v195 = vunpack.c.l.b16 %v110
  %v196 = vunpack.c.l.b16 %v111
  %v197 = vunpack.c.h.b16 %v111
  %v198 = vunpack.c.l.b16 %v112
  %v199 = vunpack.c.l.b16 %v113
  %v200 = vunpack.c.h.b16 %v113
  %v201 = vunpack.c.l.b16 %v114
  %v202 = vunpack.c.l.b16 %v115
  %v203 = vunpack.c.h.b16 %v115
  %v204 = vunpack.c.l.b16 %v116
  %v205 = vunpack.c.l.b16 %v117
  %v206 = vunpack.c.h.b16 %v117
  %v207 = vunpack.c.l.b16 %v118
  %v208 = vunpack.c.l.b16 %v119
  %v209 = vunpack.c.h.b16 %v119
  %v210 = vunpack.c.l.b16 %v120
  %v211 = vunpack.c.l.b16 %v121
  %v212 = vunpack.c.h.b16 %v121
  %v213 = vunpack.c.l.b16 %v122
  %v214 = vunpack.c.l.b16 %v123
  %v215 = vunpack.c.h.b16 %v123
  %v216 = vunpack.c.l.b16 %v124
  %v217 = vunpack.c.l.b16 %v125
  %v218 = vunpack.c.h.b16 %v125
  %v219 = vunpack.c.l.b16 %v126
  %v220 = vunpack.c.l.b16 %v127
  %v221 = vunpack.c.h.b16 %v127
  %v222 = vunpack.c.l.b16 %v128
  %v223 = vunpack.c.l.b16 %v129
  %v224 = vunpack.c.h.b16 %v129
  %v225 = vunpack.c.l.b16 %v130
  %v226 = vunpack.c.l.b16 %v131
  %v227 = vunpack.c.h.b16 %v131
  %v228 = vunpack.c.l.b16 %v132
  %v229 = vunpack.c.l.b16 %v133
  %v230 = vunpack.c.h.b16 %v133
  %v231 = vunpack.c.l.b16 %v134
  %v232 = vpack.c.b16 %v187, %v184
  %v233 = vpack.c.b16 %v188, %v185
  %v234 = vpack.c.b16 %v189, %v186
  %v235 = vpack.c.b16 %v193, %v190
  %v236 = vpack.c.b16 %v194, %v191
  %v237 = vpack.c.b16 %v195, %v192
  %v238 = vpack.c.b16 %v199, %v196
  %v239 = vpack.c.b16 %v200, %v197
  %v240 = vpack.c.b16 %v201, %v198
  %v241 = vpack.c.b16 %v205, %v202
  %v242 = vpack.c.b16 %v206, %v203
  %v243 = vpack.c.b16 %v207, %v204
  %v244 = vpack.c.b16 %v211, %v208
  %v245 = vpack.c.b16 %v212, %v209
  %v246 = vpack.c.b16 %v213, %v210
  %v247 = vpack.c.b16 %v217, %v214
  %v248 = vpack.c.b16 %v218, %v215
  %v249 = vpack.c.b16 %v219, %v216
  %v250 = vpack.c.b16 %v223, %v220
  %v251 = vpack.c.b16 %v224, %v221
  %v252 = vpack.c.b16 %v225, %v222
  %v253 = vpack.c.b16 %v229, %v226
  %v254 = vpack.c.b16 %v230, %v227
  %v255 = vpack.c.b16 %v231, %v228
  %280 = vmatprep.subr.bf16.mxu0 %v233
  %281 = vmatpush1.bf16.msra.mxu0 %v232
  %282 = vmatprep.subr.bf16.mxu0 %v236
  %283 = vmatpush1.bf16.msra.mxu0 %v235
  %284 = vmatprep.subr.bf16.mxu0 %v239
  %285 = vmatpush1.bf16.msra.mxu0 %v238
  %286 = vmatprep.subr.bf16.mxu0 %v242
  %287 = vmatpush1.bf16.msra.mxu0 %v241
  %288 = vmatprep.subr.bf16.mxu0 %v245
  %289 = vmatpush1.bf16.msra.mxu0 %v244
  %290 = vmatprep.subr.bf16.mxu0 %v248
  %291 = vmatpush1.bf16.msra.mxu0 %v247
  %292 = vmatprep.subr.bf16.mxu0 %v251
  %293 = vmatpush1.bf16.msra.mxu0 %v250
  %294 = vmatprep.subr.bf16.mxu0 %v254
  %295 = vmatpush1.bf16.msra.mxu0 %v253
  %296 = vmatprep.subr.bf16.mxu0 0
  %297 = vmatpush1.bf16.msra.mxu0 0
  %298 = vmatprep.subr.bf16.mxu0 0
  %299 = vmatpush1.bf16.msra.mxu0 0
  %300 = vmatprep.subr.bf16.mxu0 0
  %301 = vmatpush1.bf16.msra.mxu0 0
  %302 = vmatprep.subr.bf16.mxu0 0
  %303 = vmatpush1.bf16.msra.mxu0 0
  %304 = vmatprep.subr.bf16.mxu0 0
  %305 = vmatpush1.bf16.msra.mxu0 0
  %306 = vmatprep.subr.bf16.mxu0 0
  %307 = vmatpush1.bf16.msra.mxu0 0
  %308 = vmatprep.subr.bf16.mxu0 0
  %309 = vmatpush1.bf16.msra.mxu0 0
  %310 = vmatprep.subr.bf16.mxu0 0
  %311 = vmatpush1.bf16.msra.mxu0 0
  %312 = vmatprep.mubr.bf16.mxu0 0
  %313 = vmatmul.mubr.bf16.gmra.mrb[0].mxu0 %v101
  %v314 = vpop.f32.mrb[0].mxu0
  %v315 = vadd.f32 %v140, %v314
  %v316 = vpop.f32.mrb[0].mxu0
  %v317 = vadd.f32 %v144, %v316
  %v318 = vpop.f32.mrb[0].mxu0
  %v319 = vadd.f32 %v140, %v318
  %v320 = vpop.f32.mrb[0].mxu0
  %v321 = vadd.f32 %v144, %v320
  %322 = vmatprep.mubr.bf16.mxu0 0
  %323 = vmatmul.mubr.bf16.gmra.mrb[0].mxu0 %v102
  %v324 = vpop.f32.mrb[0].mxu0
  %v325 = vadd.f32 %v140, %v324
  %v326 = vpop.f32.mrb[0].mxu0
  %v327 = vadd.f32 %v144, %v326
  %v328 = vpop.f32.mrb[0].mxu0
  %v329 = vadd.f32 %v140, %v328
  %v330 = vpop.f32.mrb[0].mxu0
  %v331 = vadd.f32 %v144, %v330
  %332 = vdwg.mxu0
  %333 = vmatprep.subr.bf16.mxu0 0
  %334 = vmatpush1.bf16.msra.mxu0 %v234
  %335 = vmatprep.subr.bf16.mxu0 0
  %336 = vmatpush1.bf16.msra.mxu0 %v237
  %337 = vmatprep.subr.bf16.mxu0 0
  %338 = vmatpush1.bf16.msra.mxu0 %v240
  %339 = vmatprep.subr.bf16.mxu0 0
  %340 = vmatpush1.bf16.msra.mxu0 %v243
  %341 = vmatprep.subr.bf16.mxu0 0
  %342 = vmatpush1.bf16.msra.mxu0 %v246
  %343 = vmatprep.subr.bf16.mxu0 0
  %344 = vmatpush1.bf16.msra.mxu0 %v249
  %345 = vmatprep.subr.bf16.mxu0 0
  %346 = vmatpush1.bf16.msra.mxu0 %v252
  %347 = vmatprep.subr.bf16.mxu0 0
  %348 = vmatpush1.bf16.msra.mxu0 %v255
  %349 = vmatprep.subr.bf16.mxu0 0
  %350 = vmatpush1.bf16.msra.mxu0 0
  %351 = vmatprep.subr.bf16.mxu0 0
  %352 = vmatpush1.bf16.msra.mxu0 0
  %353 = vmatprep.subr.bf16.mxu0 0
  %354 = vmatpush1.bf16.msra.mxu0 0
  %355 = vmatprep.subr.bf16.mxu0 0
  %356 = vmatpush1.bf16.msra.mxu0 0
  %357 = vmatprep.subr.bf16.mxu0 0
  %358 = vmatpush1.bf16.msra.mxu0 0
  %359 = vmatprep.subr.bf16.mxu0 0
  %360 = vmatpush1.bf16.msra.mxu0 0
  %361 = vmatprep.subr.bf16.mxu0 0
  %362 = vmatpush1.bf16.msra.mxu0 0
  %363 = vmatprep.subr.bf16.mxu0 0
  %364 = vmatpush1.bf16.msra.mxu0 0
  %365 = vmatprep.mubr.bf16.mxu0 0
  %366 = vmatmul.mubr.bf16.gmra.mrb[0].mxu0 %v101
  %v367 = vpop.f32.mrb[0].mxu0
  %v368 = vadd.f32 %v148, %v367
  %v369 = vpop.f32.mrb[0].mxu0
  %v370 = vpop.f32.mrb[0].mxu0
  %v371 = vadd.f32 %v148, %v370
  %v372 = vpop.f32.mrb[0].mxu0
  %373 = vmatprep.mubr.bf16.mxu0 0
  %374 = vmatmul.mubr.bf16.gmra.mrb[0].mxu0 %v102
  %v375 = vpop.f32.mrb[0].mxu0
  %v376 = vadd.f32 %v148, %v375
  %v377 = vpop.f32.mrb[0].mxu0
  %v378 = vpop.f32.mrb[0].mxu0
  %v379 = vadd.f32 %v148, %v378
  %v380 = vpop.f32.mrb[0].mxu0
  %381 = vdwg.mxu0
  %v382 = vld [vmem:[%s5] sm:$0xf]
  %v383 = vld [vmem:[%s5 + $0x4] sm:$0xf]
  %v384 = vld [vmem:[%s5 + $0x8] sm:$0xf]
  %v385 = vld [vmem:[%s5 + $0xc] sm:$0xf]
  %v386 = vld [vmem:[%s5 + $0x10] sm:$0xf]
  %v387 = vld [vmem:[%s5 + $0x14] sm:$0xf]
  %v388 = vld [vmem:[%s5 + $0x18] sm:$0xf]
  %v389 = vld [vmem:[%s5 + $0x1c] sm:$0xf]
  %v390 = vld [vmem:[%s5 + $0x20] sm:$0xf]
  %v391 = vld [vmem:[%s5 + $0x24] sm:$0xf]
  %v392 = vld [vmem:[%s5 + $0x28] sm:$0xf]
  %v393 = vld [vmem:[%s5 + $0x2c] sm:$0xf]
  %v394 = vld [vmem:[%s5 + $0x30] sm:$0xf]
  %v395 = vld [vmem:[%s5 + $0x34] sm:$0xf]
  %v396 = vld [vmem:[%s5 + $0x38] sm:$0xf]
  %v397 = vld [vmem:[%s5 + $0x3c] sm:$0xf]
  %v398 = vld [vmem:[%s6] sm:$0x1]
  %v400 = vlaneseq
  %v401 = vshrl.u32 %v400, 7
  %v402 = vsub.s32 0, %v401
  %v403 = vrot.slane %v398, %v402
  %v421 = vunpack.c.l.b16 %v382
  %v422 = vunpack.c.l.b16 %v383
  %v423 = vunpack.c.l.b16 %v384
  %v424 = vunpack.c.l.b16 %v385
  %v425 = vunpack.c.l.b16 %v386
  %v426 = vunpack.c.l.b16 %v387
  %v427 = vunpack.c.l.b16 %v388
  %v428 = vunpack.c.l.b16 %v389
  %v429 = vunpack.c.l.b16 %v390
  %v430 = vunpack.c.l.b16 %v391
  %v431 = vunpack.c.l.b16 %v392
  %v432 = vunpack.c.l.b16 %v393
  %v433 = vunpack.c.l.b16 %v394
  %v434 = vunpack.c.l.b16 %v395
  %v435 = vunpack.c.l.b16 %v396
  %v436 = vunpack.c.l.b16 %v397
  %v437 = vpack.c.b16 %v422, %v421
  %v438 = vpack.c.b16 %v424, %v423
  %v439 = vpack.c.b16 %v426, %v425
  %v440 = vpack.c.b16 %v428, %v427
  %v441 = vpack.c.b16 %v430, %v429
  %v442 = vpack.c.b16 %v432, %v431
  %v443 = vpack.c.b16 %v434, %v433
  %v444 = vpack.c.b16 %v436, %v435
  %453 = vmatprep.subr.bf16.mxu0 0
  %454 = vmatpush1.bf16.msra.mxu0 %v437
  %455 = vmatprep.subr.bf16.mxu0 0
  %456 = vmatpush1.bf16.msra.mxu0 %v438
  %457 = vmatprep.subr.bf16.mxu0 0
  %458 = vmatpush1.bf16.msra.mxu0 %v439
  %459 = vmatprep.subr.bf16.mxu0 0
  %460 = vmatpush1.bf16.msra.mxu0 %v440
  %461 = vmatprep.subr.bf16.mxu0 0
  %462 = vmatpush1.bf16.msra.mxu0 %v441
  %463 = vmatprep.subr.bf16.mxu0 0
  %464 = vmatpush1.bf16.msra.mxu0 %v442
  %465 = vmatprep.subr.bf16.mxu0 0
  %466 = vmatpush1.bf16.msra.mxu0 %v443
  %467 = vmatprep.subr.bf16.mxu0 0
  %468 = vmatpush1.bf16.msra.mxu0 %v444
  %469 = vmatprep.subr.bf16.mxu0 0
  %470 = vmatpush1.bf16.msra.mxu0 0
  %471 = vmatprep.subr.bf16.mxu0 0
  %472 = vmatpush1.bf16.msra.mxu0 0
  %473 = vmatprep.subr.bf16.mxu0 0
  %474 = vmatpush1.bf16.msra.mxu0 0
  %475 = vmatprep.subr.bf16.mxu0 0
  %476 = vmatpush1.bf16.msra.mxu0 0
  %477 = vmatprep.subr.bf16.mxu0 0
  %478 = vmatpush1.bf16.msra.mxu0 0
  %479 = vmatprep.subr.bf16.mxu0 0
  %480 = vmatpush1.bf16.msra.mxu0 0
  %481 = vmatprep.subr.bf16.mxu0 0
  %482 = vmatpush1.bf16.msra.mxu0 0
  %483 = vmatprep.subr.bf16.mxu0 0
  %484 = vmatpush1.bf16.msra.mxu0 0
  %485 = vmatprep.mubr.bf16.mxu0 0
  %486 = vmatmul.mubr.bf16.gmra.mrb[0].mxu0 %v101
  %v487 = vpop.f32.mrb[0].mxu0
  %v488 = vadd.f32 %v403, %v487
  %v489 = vpop.f32.mrb[0].mxu0
  %v490 = vpop.f32.mrb[0].mxu0
  %v491 = vadd.f32 %v403, %v490
  %v492 = vpop.f32.mrb[0].mxu0
  %493 = vmatprep.mubr.bf16.mxu0 0
  %494 = vmatmul.mubr.bf16.gmra.mrb[0].mxu0 %v102
  %v495 = vpop.f32.mrb[0].mxu0
  %v496 = vadd.f32 %v403, %v495
  %v497 = vpop.f32.mrb[0].mxu0
  %v498 = vpop.f32.mrb[0].mxu0
  %v499 = vadd.f32 %v403, %v498
  %v500 = vpop.f32.mrb[0].mxu0
  %501 = vdwg.mxu0
  %v502 = vpack.c.bf16 %v491, %v488
  %v503 = vpack.c.bf16 %v499, %v496
  %v504 = vld [vmem:[%s7] sm:$0xff]
  %v505 = vld [vmem:[%s7 + $0x8] sm:$0xf]
  %v506 = vld [vmem:[%s7 + $0xc] sm:$0x33]
  %v507 = vld [vmem:[%s7 + $0x14] sm:$0x3]
  %v512 = vunpack.c.l.b16 %v504
  %v513 = vunpack.c.h.b16 %v504
  %v514 = vunpack.c.l.b16 %v505
  %v515 = vunpack.c.l.b16 %v506
  %v516 = vunpack.c.h.b16 %v506
  %v517 = vunpack.c.l.b16 %v507
  %v518 = vpack.c.b16 %v515, %v512
  %v519 = vpack.c.b16 %v516, %v513
  %v520 = vpack.c.b16 %v517, %v514
  %vm521 = vcmask 97280
  %v523 = vsel %vm521, %v502, 0
  %v526 = vsel %vm521, %v503, 0
  %vm528 = vcmask 1045504
  %v530 = vsel %vm528, %v518, 0
  %v533 = vsel %vm528, %v519, 0
  %v536 = vsel %vm528, %v520, 0
  %538 = vmatprep.subr.bf16.mxu0 %v533
  %539 = vmatpush1.bf16.msra.mxu0 %v530
  %540 = vmatprep.subr.bf16.mxu0 0
  %541 = vmatpush1.bf16.msra.mxu0 0
  %542 = vmatprep.subr.bf16.mxu0 0
  %543 = vmatpush1.bf16.msra.mxu0 0
  %544 = vmatprep.subr.bf16.mxu0 0
  %545 = vmatpush1.bf16.msra.mxu0 0
  %546 = vmatprep.subr.bf16.mxu0 0
  %547 = vmatpush1.bf16.msra.mxu0 0
  %548 = vmatprep.subr.bf16.mxu0 0
  %549 = vmatpush1.bf16.msra.mxu0 0
  %550 = vmatprep.subr.bf16.mxu0 0
  %551 = vmatpush1.bf16.msra.mxu0 0
  %552 = vmatprep.subr.bf16.mxu0 0
  %553 = vmatpush1.bf16.msra.mxu0 0
  %554 = vmatprep.subr.bf16.mxu0 0
  %555 = vmatpush1.bf16.msra.mxu0 0
  %556 = vmatprep.subr.bf16.mxu0 0
  %557 = vmatpush1.bf16.msra.mxu0 0
  %558 = vmatprep.subr.bf16.mxu0 0
  %559 = vmatpush1.bf16.msra.mxu0 0
  %560 = vmatprep.subr.bf16.mxu0 0
  %561 = vmatpush1.bf16.msra.mxu0 0
  %562 = vmatprep.subr.bf16.mxu0 0
  %563 = vmatpush1.bf16.msra.mxu0 0
  %564 = vmatprep.subr.bf16.mxu0 0
  %565 = vmatpush1.bf16.msra.mxu0 0
  %566 = vmatprep.subr.bf16.mxu0 0
  %567 = vmatpush1.bf16.msra.mxu0 0
  %568 = vmatprep.subr.bf16.mxu0 0
  %569 = vmatpush1.bf16.msra.mxu0 0
  %570 = vmatprep.mubr.bf16.mxu0 0
  %571 = vmatmul.mubr.bf16.gmra.mrb[0].mxu0 %v523
  %v572 = vpop.f32.mrb[0].mxu0
  %v573 = vadd.f32 0.0, %v572
  %v574 = vpop.f32.mrb[0].mxu0
  %v575 = vadd.f32 0.0, %v574
  %v576 = vpop.f32.mrb[0].mxu0
  %v577 = vadd.f32 0.0, %v576
  %v578 = vpop.f32.mrb[0].mxu0
  %v579 = vadd.f32 0.0, %v578
  %580 = vmatprep.mubr.bf16.mxu0 0
  %581 = vmatmul.mubr.bf16.gmra.mrb[0].mxu0 %v526
  %v582 = vpop.f32.mrb[0].mxu0
  %v583 = vadd.f32 0.0, %v582
  %v584 = vpop.f32.mrb[0].mxu0
  %v585 = vadd.f32 0.0, %v584
  %v586 = vpop.f32.mrb[0].mxu0
  %v587 = vadd.f32 0.0, %v586
  %v588 = vpop.f32.mrb[0].mxu0
  %v589 = vadd.f32 0.0, %v588
  %590 = vdwg.mxu0
  %591 = vmatprep.subr.bf16.mxu0 0
  %592 = vmatpush1.bf16.msra.mxu0 %v536
  %593 = vmatprep.subr.bf16.mxu0 0
  %594 = vmatpush1.bf16.msra.mxu0 0
  %595 = vmatprep.subr.bf16.mxu0 0
  %596 = vmatpush1.bf16.msra.mxu0 0
  %597 = vmatprep.subr.bf16.mxu0 0
  %598 = vmatpush1.bf16.msra.mxu0 0
  %599 = vmatprep.subr.bf16.mxu0 0
  %600 = vmatpush1.bf16.msra.mxu0 0
  %601 = vmatprep.subr.bf16.mxu0 0
  %602 = vmatpush1.bf16.msra.mxu0 0
  %603 = vmatprep.subr.bf16.mxu0 0
  %604 = vmatpush1.bf16.msra.mxu0 0
  %605 = vmatprep.subr.bf16.mxu0 0
  %606 = vmatpush1.bf16.msra.mxu0 0
  %607 = vmatprep.subr.bf16.mxu0 0
  %608 = vmatpush1.bf16.msra.mxu0 0
  %609 = vmatprep.subr.bf16.mxu0 0
  %610 = vmatpush1.bf16.msra.mxu0 0
  %611 = vmatprep.subr.bf16.mxu0 0
  %612 = vmatpush1.bf16.msra.mxu0 0
  %613 = vmatprep.subr.bf16.mxu0 0
  %614 = vmatpush1.bf16.msra.mxu0 0
  %615 = vmatprep.subr.bf16.mxu0 0
  %616 = vmatpush1.bf16.msra.mxu0 0
  %617 = vmatprep.subr.bf16.mxu0 0
  %618 = vmatpush1.bf16.msra.mxu0 0
  %619 = vmatprep.subr.bf16.mxu0 0
  %620 = vmatpush1.bf16.msra.mxu0 0
  %621 = vmatprep.subr.bf16.mxu0 0
  %622 = vmatpush1.bf16.msra.mxu0 0
  %623 = vmatprep.mubr.bf16.mxu0 0
  %624 = vmatmul.mubr.bf16.gmra.mrb[0].mxu0 %v523
  %v625 = vpop.f32.mrb[0].mxu0
  %v626 = vadd.f32 0.0, %v625
  %v627 = vpop.f32.mrb[0].mxu0
  %v628 = vpop.f32.mrb[0].mxu0
  %v629 = vadd.f32 0.0, %v628
  %v630 = vpop.f32.mrb[0].mxu0
  %631 = vmatprep.mubr.bf16.mxu0 0
  %632 = vmatmul.mubr.bf16.gmra.mrb[0].mxu0 %v526
  %v633 = vpop.f32.mrb[0].mxu0
  %v634 = vadd.f32 0.0, %v633
  %v635 = vpop.f32.mrb[0].mxu0
  %v636 = vpop.f32.mrb[0].mxu0
  %v637 = vadd.f32 0.0, %v636
  %v638 = vpop.f32.mrb[0].mxu0
  %639 = vdwg.mxu0
  %v640 = vadd.f32 %v315, %v573
  %v641 = vadd.f32 %v317, %v575
  %v642 = vadd.f32 %v368, %v626
  %v643 = vadd.f32 %v319, %v577
  %v644 = vadd.f32 %v321, %v579
  %v645 = vadd.f32 %v371, %v629
  %v646 = vadd.f32 %v325, %v583
  %v647 = vadd.f32 %v327, %v585
  %v648 = vadd.f32 %v376, %v634
  %v649 = vadd.f32 %v329, %v587
  %v650 = vadd.f32 %v331, %v589
  %v651 = vadd.f32 %v379, %v637
  %v652 = vpack.c.bf16 %v643, %v640
  %v653 = vpack.c.bf16 %v644, %v641
  %v654 = vpack.c.bf16 %v645, %v642
  %v655 = vpack.c.bf16 %v649, %v646
  %v656 = vpack.c.bf16 %v650, %v647
  %v657 = vpack.c.bf16 %v651, %v648
  %v664 = vunpack.c.l.b16 %v652
  %v665 = vunpack.c.l.b16 %v653
  %v666 = vunpack.c.l.b16 %v654
  %v667 = vunpack.c.h.b16 %v652
  %v668 = vunpack.c.h.b16 %v653
  %v669 = vunpack.c.h.b16 %v654
  %v670 = vunpack.c.l.b16 %v655
  %v671 = vunpack.c.l.b16 %v656
  %v672 = vunpack.c.l.b16 %v657
  %v673 = vunpack.c.h.b16 %v655
  %v674 = vunpack.c.h.b16 %v656
  %v675 = vunpack.c.h.b16 %v657
  %v676 = vpack.c.b16 %v665, %v664
  %v677 = vpack.c.b16 %v666, %v666
  %v678 = vpack.c.b16 %v668, %v667
  %v679 = vpack.c.b16 %v669, %v669
  %v680 = vpack.c.b16 %v671, %v670
  %v681 = vpack.c.b16 %v672, %v672
  %v682 = vpack.c.b16 %v674, %v673
  %v683 = vpack.c.b16 %v675, %v675
  %692 = vst [vmem:[%s8] sm:$0xff] %v676
  %693 = vst [vmem:[%s8 + $0x8] sm:$0xf] %v677
  %694 = vst [vmem:[%s8 + $0xc] sm:$0xff] %v678
  %695 = vst [vmem:[%s8 + $0x14] sm:$0xf] %v679
  %696 = vst [vmem:[%s8 + $0x18] sm:$0xff] %v680
  %697 = vst [vmem:[%s8 + $0x20] sm:$0xf] %v681
  %698 = vst [vmem:[%s8 + $0x24] sm:$0xff] %v682
  %699 = vst [vmem:[%s8 + $0x2c] sm:$0xf] %v683
  // Predicated region
  $region34: #{gpt_forward.9} parent=0 // pred_check
    _
  $region35: #{gpt_forward.9} parent=0 // pred_check_branch
    %701 = sbr.rel (0) target = $region37
  $region36: #{gpt_forward.9} parent=0 // pred_region
    _
  $region37: #{gpt_forward.9} parent=0 // pred_fallthru
    _
  // Predicated region
  $region38: #{gpt_forward.9} parent=0 // pred_check
    _
  $region39: #{gpt_forward.9} parent=0 // pred_check_branch
    %703 = sbr.rel (0) target = $region41
  $region40: #{gpt_forward.9} parent=0 // pred_region
    _
  $region41: #{gpt_forward.9} parent=0 // pred_fallthru
    _

// kernel: gpt_forward.17
$region0: #{gpt_forward.17}
  #allocation0 [shape = 'u32[]', space=smem, size = 0x4, offset = 0x4, fixed_abs, tag = 'smem constant byte address 0x4 - core index']
  #allocation1 [shape = 'u32[144,128]{1,0:T(1,128)}', space=vmem, size = 0x12000, scoped, tag = 'internal scratch']
  #allocation2 [shape = 'bf16[32,128]{1,0:T(16,128)(2,1)}', space=vmem, size = 0x2000, scoped, tag = 'scratch operand']
  %s0 = inlined_call_operand.vmem [shape: f32[32,128], index: 0, kind: input, shape index: {}]
  %s1 = inlined_call_operand.vmem [shape: f32[1,128], index: 1, kind: input, shape index: {}]
  %s2 = inlined_call_operand.vmem [shape: f32[1,128], index: 2, kind: input, shape index: {}]
  %s3 = inlined_call_operand.vmem [shape: bf16[128,1024], index: 3, kind: input, shape index: {}]
  %s4 = inlined_call_operand.vmem [shape: f32[1,1024], index: 4, kind: input, shape index: {}]
  %s5 = inlined_call_operand.vmem [shape: f32[32,1024], index: 5, kind: output, shape index: {}]
  %s6 = sld [smem:[#allocation0]]
  $region34: #{gpt_forward.17} parent=0
    _
  %s8 = ssub.s32 1, %s6
  %s9 = scalar_select 0, %s8, %s6
  // Predicated region
  $region2: #{gpt_forward.17} parent=0 // pred_check
    _
  $region3: #{gpt_forward.17} parent=0 // pred_check_branch
    %11 = sbr.rel (0) target = $region5
  $region4: #{gpt_forward.17} parent=0 // pred_region
    _
  $region5: #{gpt_forward.17} parent=0 // pred_fallthru
    _
  // Predicated region
  $region6: #{gpt_forward.17} parent=0 // pred_check
    _
  $region7: #{gpt_forward.17} parent=0 // pred_check_branch
    %13 = sbr.rel (0) target = $region9
  $region8: #{gpt_forward.17} parent=0 // pred_region
    _
  $region9: #{gpt_forward.17} parent=0 // pred_fallthru
    _
  // Predicated region
  $region10: #{gpt_forward.17} parent=0 // pred_check
    _
  $region11: #{gpt_forward.17} parent=0 // pred_check_branch
    %15 = sbr.rel (0) target = $region13
  $region12: #{gpt_forward.17} parent=0 // pred_region
    _
  $region13: #{gpt_forward.17} parent=0 // pred_fallthru
    _
  // Predicated region
  $region14: #{gpt_forward.17} parent=0 // pred_check
    _
  $region15: #{gpt_forward.17} parent=0 // pred_check_branch
    %17 = sbr.rel (0) target = $region17
  $region16: #{gpt_forward.17} parent=0 // pred_region
    _
  $region17: #{gpt_forward.17} parent=0 // pred_fallthru
    _
  // Predicated region
  $region18: #{gpt_forward.17} parent=0 // pred_check
    _
  $region19: #{gpt_forward.17} parent=0 // pred_check_branch
    %19 = sbr.rel (0) target = $region21
  $region20: #{gpt_forward.17} parent=0 // pred_region
    _
  $region21: #{gpt_forward.17} parent=0 // pred_fallthru
    _
  %p21 = scmp.eq.s32.totalorder 0, 0
  // Predicated region
  $region22: #{gpt_forward.17} parent=0 // pred_check
    %p22 = pneg %p21
  $region23: #{gpt_forward.17} parent=0 // pred_check_branch
    %24 = sbr.rel (%p22) target = $region25
  $region24: #{gpt_forward.17} parent=0 // pred_region
    %v25 = vld [vmem:[%s0] sm:$0xff]
    %v26 = vld [vmem:[%s0 + $0x8] sm:$0xff]
    %v27 = vld [vmem:[%s0 + $0x10] sm:$0xff]
    %v28 = vld [vmem:[%s0 + $0x18] sm:$0xff]
    %v29 = vld [vmem:[%s1] sm:$0x1]
    %v30 = vld [vmem:[%s2] sm:$0x1]
    %31 = vadd.xlane.f32.xlu0 %v25
    %v32 = vpop.xlane.xlu0 %31
    %33 = vadd.xlane.f32.xlu0 %v26
    %v34 = vpop.xlane.xlu0 %33
    %35 = vadd.xlane.f32.xlu0 %v27
    %v36 = vpop.xlane.xlu0 %35
    %37 = vadd.xlane.f32.xlu0 %v28
    %v38 = vpop.xlane.xlu0 %37
    %v39 = vrcp.pop 128.0
    %v40 = vmul.f32 %v32, %v39
    %v41 = vmul.f32 %v34, %v39
    %v42 = vmul.f32 %v36, %v39
    %v43 = vmul.f32 %v38, %v39
    %v44 = vsub.f32 %v25, %v40
    %v45 = vsub.f32 %v26, %v41
    %v46 = vsub.f32 %v27, %v42
    %v47 = vsub.f32 %v28, %v43
    %v48 = vmul.f32 %v44, %v44
    %v49 = vmul.f32 %v45, %v45
    %v50 = vmul.f32 %v46, %v46
    %v51 = vmul.f32 %v47, %v47
    %52 = vadd.xlane.f32.xlu0 %v48
    %v53 = vpop.xlane.xlu0 %52
    %54 = vadd.xlane.f32.xlu0 %v49
    %v55 = vpop.xlane.xlu0 %54
    %56 = vadd.xlane.f32.xlu0 %v50
    %v57 = vpop.xlane.xlu0 %56
    %58 = vadd.xlane.f32.xlu0 %v51
    %v59 = vpop.xlane.xlu0 %58
    %v60 = vmul.f32 %v53, %v39
    %v61 = vmul.f32 %v55, %v39
    %v62 = vmul.f32 %v57, %v39
    %v63 = vmul.f32 %v59, %v39
    %v64 = vadd.f32 %v60, 1e-05
    %v65 = vadd.f32 %v61, 1e-05
    %v66 = vadd.f32 %v62, 1e-05
    %v67 = vadd.f32 %v63, 1e-05
    %v68 = vrsqrt.pop %v64
    %v69 = vrsqrt.pop %v65
    %v70 = vrsqrt.pop %v66
    %v71 = vrsqrt.pop %v67
    %v72 = vmul.f32 %v44, %v68
    %v73 = vmul.f32 %v45, %v69
    %v74 = vmul.f32 %v46, %v70
    %v75 = vmul.f32 %v47, %v71
    %v77 = vlaneseq
    %v78 = vshrl.u32 %v77, 7
    %v79 = vsub.s32 0, %v78
    %v80 = vrot.slane %v29, %v79
    %v82 = vmul.f32 %v72, %v80
    %v83 = vmul.f32 %v73, %v80
    %v84 = vmul.f32 %v74, %v80
    %v85 = vmul.f32 %v75, %v80
    %v87 = vlaneseq
    %v88 = vshrl.u32 %v87, 7
    %v89 = vsub.s32 0, %v88
    %v90 = vrot.slane %v30, %v89
    %v92 = vadd.f32 %v82, %v90
    %v93 = vadd.f32 %v83, %v90
    %v94 = vadd.f32 %v84, %v90
    %v95 = vadd.f32 %v85, %v90
    %v96 = vpack.c.bf16 %v93, %v92
    %v97 = vpack.c.bf16 %v95, %v94
    %98 = vst [vmem:[#allocation2] sm:$0xff] %v96
    %99 = vst [vmem:[#allocation2 + $0x8] sm:$0xff] %v97
  $region25: #{gpt_forward.17} parent=0 // pred_fallthru
    _
  %v100 = vld [vmem:[#allocation2] sm:$0xff]
  %v101 = vld [vmem:[#allocation2 + $0x8] sm:$0xff]
  %v102 = vld [vmem:[%s3] sm:$0xff]
  %v103 = vld [vmem:[%s3 + $0x8] sm:$0xff]
  %v104 = vld [vmem:[%s3 + $0x10] sm:$0xff]
  %v105 = vld [vmem:[%s3 + $0x18] sm:$0xff]
  %v106 = vld [vmem:[%s3 + $0x20] sm:$0xff]
  %v107 = vld [vmem:[%s3 + $0x28] sm:$0xff]
  %v108 = vld [vmem:[%s3 + $0x30] sm:$0xff]
  %v109 = vld [vmem:[%s3 + $0x38] sm:$0xff]
  %v110 = vld [vmem:[%s3 + $0x40] sm:$0xff]
  %v111 = vld [vmem:[%s3 + $0x48] sm:$0xff]
  %v112 = vld [vmem:[%s3 + $0x50] sm:$0xff]
  %v113 = vld [vmem:[%s3 + $0x58] sm:$0xff]
  %v114 = vld [vmem:[%s3 + $0x60] sm:$0xff]
  %v115 = vld [vmem:[%s3 + $0x68] sm:$0xff]
  %v116 = vld [vmem:[%s3 + $0x70] sm:$0xff]
  %v117 = vld [vmem:[%s3 + $0x78] sm:$0xff]
  %v118 = vld [vmem:[%s3 + $0x80] sm:$0xff]
  %v119 = vld [vmem:[%s3 + $0x88] sm:$0xff]
  %v120 = vld [vmem:[%s3 + $0x90] sm:$0xff]
  %v121 = vld [vmem:[%s3 + $0x98] sm:$0xff]
  %v122 = vld [vmem:[%s3 + $0xa0] sm:$0xff]
  %v123 = vld [vmem:[%s3 + $0xa8] sm:$0xff]
  %v124 = vld [vmem:[%s3 + $0xb0] sm:$0xff]
  %v125 = vld [vmem:[%s3 + $0xb8] sm:$0xff]
  %v126 = vld [vmem:[%s3 + $0xc0] sm:$0xff]
  %v127 = vld [vmem:[%s3 + $0xc8] sm:$0xff]
  %v128 = vld [vmem:[%s3 + $0xd0] sm:$0xff]
  %v129 = vld [vmem:[%s3 + $0xd8] sm:$0xff]
  %v130 = vld [vmem:[%s3 + $0xe0] sm:$0xff]
  %v131 = vld [vmem:[%s3 + $0xe8] sm:$0xff]
  %v132 = vld [vmem:[%s3 + $0xf0] sm:$0xff]
  %v133 = vld [vmem:[%s3 + $0xf8] sm:$0xff]
  %v134 = vld [vmem:[%s3 + $0x100] sm:$0xff]
  %v135 = vld [vmem:[%s3 + $0x108] sm:$0xff]
  %v136 = vld [vmem:[%s3 + $0x110] sm:$0xff]
  %v137 = vld [vmem:[%s3 + $0x118] sm:$0xff]
  %v138 = vld [vmem:[%s3 + $0x120] sm:$0xff]
  %v139 = vld [vmem:[%s3 + $0x128] sm:$0xff]
  %v140 = vld [vmem:[%s3 + $0x130] sm:$0xff]
  %v141 = vld [vmem:[%s3 + $0x138] sm:$0xff]
  %v142 = vld [vmem:[%s3 + $0x140] sm:$0xff]
  %v143 = vld [vmem:[%s3 + $0x148] sm:$0xff]
  %v144 = vld [vmem:[%s3 + $0x150] sm:$0xff]
  %v145 = vld [vmem:[%s3 + $0x158] sm:$0xff]
  %v146 = vld [vmem:[%s3 + $0x160] sm:$0xff]
  %v147 = vld [vmem:[%s3 + $0x168] sm:$0xff]
  %v148 = vld [vmem:[%s3 + $0x170] sm:$0xff]
  %v149 = vld [vmem:[%s3 + $0x178] sm:$0xff]
  %v150 = vld [vmem:[%s3 + $0x180] sm:$0xff]
  %v151 = vld [vmem:[%s3 + $0x188] sm:$0xff]
  %v152 = vld [vmem:[%s3 + $0x190] sm:$0xff]
  %v153 = vld [vmem:[%s3 + $0x198] sm:$0xff]
  %v154 = vld [vmem:[%s3 + $0x1a0] sm:$0xff]
  %v155 = vld [vmem:[%s3 + $0x1a8] sm:$0xff]
  %v156 = vld [vmem:[%s3 + $0x1b0] sm:$0xff]
  %v157 = vld [vmem:[%s3 + $0x1b8] sm:$0xff]
  %v158 = vld [vmem:[%s3 + $0x1c0] sm:$0xff]
  %v159 = vld [vmem:[%s3 + $0x1c8] sm:$0xff]
  %v160 = vld [vmem:[%s3 + $0x1d0] sm:$0xff]
  %v161 = vld [vmem:[%s3 + $0x1d8] sm:$0xff]
  %v162 = vld [vmem:[%s3 + $0x1e0] sm:$0xff]
  %v163 = vld [vmem:[%s3 + $0x1e8] sm:$0xff]
  %v164 = vld [vmem:[%s3 + $0x1f0] sm:$0xff]
  %v165 = vld [vmem:[%s3 + $0x1f8] sm:$0xff]
  %v166 = vld [vmem:[%s4] sm:$0xff]
  %v168 = vlaneseq
  %v169 = vshrl.u32 %v168, 7
  %v170 = vsub.s32 0, %v169
  %v171 = vrot.slane %v166, %v170
  %v172 = vlaneseq
  %v173 = vshrl.u32 %v172, 7
  %v174 = vsub.s32 1, %v173
  %v175 = vrot.slane %v166, %v174
  %v176 = vlaneseq
  %v177 = vshrl.u32 %v176, 7
  %v178 = vsub.s32 2, %v177
  %v179 = vrot.slane %v166, %v178
  %v180 = vlaneseq
  %v181 = vshrl.u32 %v180, 7
  %v182 = vsub.s32 3, %v181
  %v183 = vrot.slane %v166, %v182
  %v184 = vlaneseq
  %v185 = vshrl.u32 %v184, 7
  %v186 = vsub.s32 4, %v185
  %v187 = vrot.slane %v166, %v186
  %v188 = vlaneseq
  %v189 = vshrl.u32 %v188, 7
  %v190 = vsub.s32 5, %v189
  %v191 = vrot.slane %v166, %v190
  %v192 = vlaneseq
  %v193 = vshrl.u32 %v192, 7
  %v194 = vsub.s32 6, %v193
  %v195 = vrot.slane %v166, %v194
  %v196 = vlaneseq
  %v197 = vshrl.u32 %v196, 7
  %v198 = vsub.s32 7, %v197
  %v199 = vrot.slane %v166, %v198
  %v272 = vunpack.c.l.b16 %v102
  %v273 = vunpack.c.h.b16 %v102
  %v274 = vunpack.c.l.b16 %v103
  %v275 = vunpack.c.h.b16 %v103
  %v276 = vunpack.c.l.b16 %v104
  %v277 = vunpack.c.h.b16 %v104
  %v278 = vunpack.c.l.b16 %v105
  %v279 = vunpack.c.h.b16 %v105
  %v280 = vunpack.c.l.b16 %v106
  %v281 = vunpack.c.h.b16 %v106
  %v282 = vunpack.c.l.b16 %v107
  %v283 = vunpack.c.h.b16 %v107
  %v284 = vunpack.c.l.b16 %v108
  %v285 = vunpack.c.h.b16 %v108
  %v286 = vunpack.c.l.b16 %v109
  %v287 = vunpack.c.h.b16 %v109
  %v288 = vunpack.c.l.b16 %v110
  %v289 = vunpack.c.h.b16 %v110
  %v290 = vunpack.c.l.b16 %v111
  %v291 = vunpack.c.h.b16 %v111
  %v292 = vunpack.c.l.b16 %v112
  %v293 = vunpack.c.h.b16 %v112
  %v294 = vunpack.c.l.b16 %v113
  %v295 = vunpack.c.h.b16 %v113
  %v296 = vunpack.c.l.b16 %v114
  %v297 = vunpack.c.h.b16 %v114
  %v298 = vunpack.c.l.b16 %v115
  %v299 = vunpack.c.h.b16 %v115
  %v300 = vunpack.c.l.b16 %v116
  %v301 = vunpack.c.h.b16 %v116
  %v302 = vunpack.c.l.b16 %v117
  %v303 = vunpack.c.h.b16 %v117
  %v304 = vunpack.c.l.b16 %v118
  %v305 = vunpack.c.h.b16 %v118
  %v306 = vunpack.c.l.b16 %v119
  %v307 = vunpack.c.h.b16 %v119
  %v308 = vunpack.c.l.b16 %v120
  %v309 = vunpack.c.h.b16 %v120
  %v310 = vunpack.c.l.b16 %v121
  %v311 = vunpack.c.h.b16 %v121
  %v312 = vunpack.c.l.b16 %v122
  %v313 = vunpack.c.h.b16 %v122
  %v314 = vunpack.c.l.b16 %v123
  %v315 = vunpack.c.h.b16 %v123
  %v316 = vunpack.c.l.b16 %v124
  %v317 = vunpack.c.h.b16 %v124
  %v318 = vunpack.c.l.b16 %v125
  %v319 = vunpack.c.h.b16 %v125
  %v320 = vunpack.c.l.b16 %v126
  %v321 = vunpack.c.h.b16 %v126
  %v322 = vunpack.c.l.b16 %v127
  %v323 = vunpack.c.h.b16 %v127
  %v324 = vunpack.c.l.b16 %v128
  %v325 = vunpack.c.h.b16 %v128
  %v326 = vunpack.c.l.b16 %v129
  %v327 = vunpack.c.h.b16 %v129
  %v328 = vunpack.c.l.b16 %v130
  %v329 = vunpack.c.h.b16 %v130
  %v330 = vunpack.c.l.b16 %v131
  %v331 = vunpack.c.h.b16 %v131
  %v332 = vunpack.c.l.b16 %v132
  %v333 = vunpack.c.h.b16 %v132
  %v334 = vunpack.c.l.b16 %v133
  %v335 = vunpack.c.h.b16 %v133
  %v336 = vunpack.c.l.b16 %v134
  %v337 = vunpack.c.h.b16 %v134
  %v338 = vunpack.c.l.b16 %v135
  %v339 = vunpack.c.h.b16 %v135
  %v340 = vunpack.c.l.b16 %v136
  %v341 = vunpack.c.h.b16 %v136
  %v342 = vunpack.c.l.b16 %v137
  %v343 = vunpack.c.h.b16 %v137
  %v344 = vunpack.c.l.b16 %v138
  %v345 = vunpack.c.h.b16 %v138
  %v346 = vunpack.c.l.b16 %v139
  %v347 = vunpack.c.h.b16 %v139
  %v348 = vunpack.c.l.b16 %v140
  %v349 = vunpack.c.h.b16 %v140
  %v350 = vunpack.c.l.b16 %v141
  %v351 = vunpack.c.h.b16 %v141
  %v352 = vunpack.c.l.b16 %v142
  %v353 = vunpack.c.h.b16 %v142
  %v354 = vunpack.c.l.b16 %v143
  %v355 = vunpack.c.h.b16 %v143
  %v356 = vunpack.c.l.b16 %v144
  %v357 = vunpack.c.h.b16 %v144
  %v358 = vunpack.c.l.b16 %v145
  %v359 = vunpack.c.h.b16 %v145
  %v360 = vunpack.c.l.b16 %v146
  %v361 = vunpack.c.h.b16 %v146
  %v362 = vunpack.c.l.b16 %v147
  %v363 = vunpack.c.h.b16 %v147
  %v364 = vunpack.c.l.b16 %v148
  %v365 = vunpack.c.h.b16 %v148
  %v366 = vunpack.c.l.b16 %v149
  %v367 = vunpack.c.h.b16 %v149
  %v368 = vunpack.c.l.b16 %v150
  %v369 = vunpack.c.h.b16 %v150
  %v370 = vunpack.c.l.b16 %v151
  %v371 = vunpack.c.h.b16 %v151
  %v372 = vunpack.c.l.b16 %v152
  %v373 = vunpack.c.h.b16 %v152
  %v374 = vunpack.c.l.b16 %v153
  %v375 = vunpack.c.h.b16 %v153
  %v376 = vunpack.c.l.b16 %v154
  %v377 = vunpack.c.h.b16 %v154
  %v378 = vunpack.c.l.b16 %v155
  %v379 = vunpack.c.h.b16 %v155
  %v380 = vunpack.c.l.b16 %v156
  %v381 = vunpack.c.h.b16 %v156
  %v382 = vunpack.c.l.b16 %v157
  %v383 = vunpack.c.h.b16 %v157
  %v384 = vunpack.c.l.b16 %v158
  %v385 = vunpack.c.h.b16 %v158
  %v386 = vunpack.c.l.b16 %v159
  %v387 = vunpack.c.h.b16 %v159
  %v388 = vunpack.c.l.b16 %v160
  %v389 = vunpack.c.h.b16 %v160
  %v390 = vunpack.c.l.b16 %v161
  %v391 = vunpack.c.h.b16 %v161
  %v392 = vunpack.c.l.b16 %v162
  %v393 = vunpack.c.h.b16 %v162
  %v394 = vunpack.c.l.b16 %v163
  %v395 = vunpack.c.h.b16 %v163
  %v396 = vunpack.c.l.b16 %v164
  %v397 = vunpack.c.h.b16 %v164
  %v398 = vunpack.c.l.b16 %v165
  %v399 = vunpack.c.h.b16 %v165
  %v400 = vpack.c.b16 %v280, %v272
  %v401 = vpack.c.b16 %v281, %v273
  %v402 = vpack.c.b16 %v282, %v274
  %v403 = vpack.c.b16 %v283, %v275
  %v404 = vpack.c.b16 %v284, %v276
  %v405 = vpack.c.b16 %v285, %v277
  %v406 = vpack.c.b16 %v286, %v278
  %v407 = vpack.c.b16 %v287, %v279
  %v408 = vpack.c.b16 %v296, %v288
  %v409 = vpack.c.b16 %v297, %v289
  %v410 = vpack.c.b16 %v298, %v290
  %v411 = vpack.c.b16 %v299, %v291
  %v412 = vpack.c.b16 %v300, %v292
  %v413 = vpack.c.b16 %v301, %v293
  %v414 = vpack.c.b16 %v302, %v294
  %v415 = vpack.c.b16 %v303, %v295
  %v416 = vpack.c.b16 %v312, %v304
  %v417 = vpack.c.b16 %v313, %v305
  %v418 = vpack.c.b16 %v314, %v306
  %v419 = vpack.c.b16 %v315, %v307
  %v420 = vpack.c.b16 %v316, %v308
  %v421 = vpack.c.b16 %v317, %v309
  %v422 = vpack.c.b16 %v318, %v310
  %v423 = vpack.c.b16 %v319, %v311
  %v424 = vpack.c.b16 %v328, %v320
  %v425 = vpack.c.b16 %v329, %v321
  %v426 = vpack.c.b16 %v330, %v322
  %v427 = vpack.c.b16 %v331, %v323
  %v428 = vpack.c.b16 %v332, %v324
  %v429 = vpack.c.b16 %v333, %v325
  %v430 = vpack.c.b16 %v334, %v326
  %v431 = vpack.c.b16 %v335, %v327
  %v432 = vpack.c.b16 %v344, %v336
  %v433 = vpack.c.b16 %v345, %v337
  %v434 = vpack.c.b16 %v346, %v338
  %v435 = vpack.c.b16 %v347, %v339
  %v436 = vpack.c.b16 %v348, %v340
  %v437 = vpack.c.b16 %v349, %v341
  %v438 = vpack.c.b16 %v350, %v342
  %v439 = vpack.c.b16 %v351, %v343
  %v440 = vpack.c.b16 %v360, %v352
  %v441 = vpack.c.b16 %v361, %v353
  %v442 = vpack.c.b16 %v362, %v354
  %v443 = vpack.c.b16 %v363, %v355
  %v444 = vpack.c.b16 %v364, %v356
  %v445 = vpack.c.b16 %v365, %v357
  %v446 = vpack.c.b16 %v366, %v358
  %v447 = vpack.c.b16 %v367, %v359
  %v448 = vpack.c.b16 %v376, %v368
  %v449 = vpack.c.b16 %v377, %v369
  %v450 = vpack.c.b16 %v378, %v370
  %v451 = vpack.c.b16 %v379, %v371
  %v452 = vpack.c.b16 %v380, %v372
  %v453 = vpack.c.b16 %v381, %v373
  %v454 = vpack.c.b16 %v382, %v374
  %v455 = vpack.c.b16 %v383, %v375
  %v456 = vpack.c.b16 %v392, %v384
  %v457 = vpack.c.b16 %v393, %v385
  %v458 = vpack.c.b16 %v394, %v386
  %v459 = vpack.c.b16 %v395, %v387
  %v460 = vpack.c.b16 %v396, %v388
  %v461 = vpack.c.b16 %v397, %v389
  %v462 = vpack.c.b16 %v398, %v390
  %v463 = vpack.c.b16 %v399, %v391
  %528 = vmatprep.subr.bf16.mxu0 %v401
  %529 = vmatpush1.bf16.msra.mxu0 %v400
  %530 = vmatprep.subr.bf16.mxu0 %v409
  %531 = vmatpush1.bf16.msra.mxu0 %v408
  %532 = vmatprep.subr.bf16.mxu0 %v417
  %533 = vmatpush1.bf16.msra.mxu0 %v416
  %534 = vmatprep.subr.bf16.mxu0 %v425
  %535 = vmatpush1.bf16.msra.mxu0 %v424
  %536 = vmatprep.subr.bf16.mxu0 %v433
  %537 = vmatpush1.bf16.msra.mxu0 %v432
  %538 = vmatprep.subr.bf16.mxu0 %v441
  %539 = vmatpush1.bf16.msra.mxu0 %v440
  %540 = vmatprep.subr.bf16.mxu0 %v449
  %541 = vmatpush1.bf16.msra.mxu0 %v448
  %542 = vmatprep.subr.bf16.mxu0 %v457
  %543 = vmatpush1.bf16.msra.mxu0 %v456
  %544 = vmatprep.subr.bf16.mxu0 0
  %545 = vmatpush1.bf16.msra.mxu0 0
  %546 = vmatprep.subr.bf16.mxu0 0
  %547 = vmatpush1.bf16.msra.mxu0 0
  %548 = vmatprep.subr.bf16.mxu0 0
  %549 = vmatpush1.bf16.msra.mxu0 0
  %550 = vmatprep.subr.bf16.mxu0 0
  %551 = vmatpush1.bf16.msra.mxu0 0
  %552 = vmatprep.subr.bf16.mxu0 0
  %553 = vmatpush1.bf16.msra.mxu0 0
  %554 = vmatprep.subr.bf16.mxu0 0
  %555 = vmatpush1.bf16.msra.mxu0 0
  %556 = vmatprep.subr.bf16.mxu0 0
  %557 = vmatpush1.bf16.msra.mxu0 0
  %558 = vmatprep.subr.bf16.mxu0 0
  %559 = vmatpush1.bf16.msra.mxu0 0
  %560 = vmatprep.mubr.bf16.mxu0 0
  %561 = vmatmul.mubr.bf16.gmra.mrb[0].mxu0 %v100
  %v562 = vpop.f32.mrb[0].mxu0
  %v563 = vadd.f32 %v171, %v562
  %v564 = vpop.f32.mrb[0].mxu0
  %v565 = vadd.f32 %v175, %v564
  %v566 = vpop.f32.mrb[0].mxu0
  %v567 = vadd.f32 %v171, %v566
  %v568 = vpop.f32.mrb[0].mxu0
  %v569 = vadd.f32 %v175, %v568
  %570 = vmatprep.mubr.bf16.mxu0 0
  %571 = vmatmul.mubr.bf16.gmra.mrb[0].mxu0 %v101
  %v572 = vpop.f32.mrb[0].mxu0
  %v573 = vadd.f32 %v171, %v572
  %v574 = vpop.f32.mrb[0].mxu0
  %v575 = vadd.f32 %v175, %v574
  %v576 = vpop.f32.mrb[0].mxu0
  %v577 = vadd.f32 %v171, %v576
  %v578 = vpop.f32.mrb[0].mxu0
  %v579 = vadd.f32 %v175, %v578
  %580 = vdwg.mxu0
  %581 = vmatprep.subr.bf16.mxu0 %v403
  %582 = vmatpush1.bf16.msra.mxu0 %v402
  %583 = vmatprep.subr.bf16.mxu0 %v411
  %584 = vmatpush1.bf16.msra.mxu0 %v410
  %585 = vmatprep.subr.bf16.mxu0 %v419
  %586 = vmatpush1.bf16.msra.mxu0 %v418
  %587 = vmatprep.subr.bf16.mxu0 %v427
  %588 = vmatpush1.bf16.msra.mxu0 %v426
  %589 = vmatprep.subr.bf16.mxu0 %v435
  %590 = vmatpush1.bf16.msra.mxu0 %v434
  %591 = vmatprep.subr.bf16.mxu0 %v443
  %592 = vmatpush1.bf16.msra.mxu0 %v442
  %593 = vmatprep.subr.bf16.mxu0 %v451
  %594 = vmatpush1.bf16.msra.mxu0 %v450
  %595 = vmatprep.subr.bf16.mxu0 %v459
  %596 = vmatpush1.bf16.msra.mxu0 %v458
  %597 = vmatprep.subr.bf16.mxu0 0
  %598 = vmatpush1.bf16.msra.mxu0 0
  %599 = vmatprep.subr.bf16.mxu0 0
  %600 = vmatpush1.bf16.msra.mxu0 0
  %601 = vmatprep.subr.bf16.mxu0 0
  %602 = vmatpush1.bf16.msra.mxu0 0
  %603 = vmatprep.subr.bf16.mxu0 0
  %604 = vmatpush1.bf16.msra.mxu0 0
  %605 = vmatprep.subr.bf16.mxu0 0
  %606 = vmatpush1.bf16.msra.mxu0 0
  %607 = vmatprep.subr.bf16.mxu0 0
  %608 = vmatpush1.bf16.msra.mxu0 0
  %609 = vmatprep.subr.bf16.mxu0 0
  %610 = vmatpush1.bf16.msra.mxu0 0
  %611 = vmatprep.subr.bf16.mxu0 0
  %612 = vmatpush1.bf16.msra.mxu0 0
  %613 = vmatprep.mubr.bf16.mxu0 0
  %614 = vmatmul.mubr.bf16.gmra.mrb[0].mxu0 %v100
  %v615 = vpop.f32.mrb[0].mxu0
  %v616 = vadd.f32 %v179, %v615
  %v617 = vpop.f32.mrb[0].mxu0
  %v618 = vadd.f32 %v183, %v617
  %v619 = vpop.f32.mrb[0].mxu0
  %v620 = vadd.f32 %v179, %v619
  %v621 = vpop.f32.mrb[0].mxu0
  %v622 = vadd.f32 %v183, %v621
  %623 = vmatprep.mubr.bf16.mxu0 0
  %624 = vmatmul.mubr.bf16.gmra.mrb[0].mxu0 %v101
  %v625 = vpop.f32.mrb[0].mxu0
  %v626 = vadd.f32 %v179, %v625
  %v627 = vpop.f32.mrb[0].mxu0
  %v628 = vadd.f32 %v183, %v627
  %v629 = vpop.f32.mrb[0].mxu0
  %v630 = vadd.f32 %v179, %v629
  %v631 = vpop.f32.mrb[0].mxu0
  %v632 = vadd.f32 %v183, %v631
  %633 = vdwg.mxu0
  %634 = vmatprep.subr.bf16.mxu0 %v405
  %635 = vmatpush1.bf16.msra.mxu0 %v404
  %636 = vmatprep.subr.bf16.mxu0 %v413
  %637 = vmatpush1.bf16.msra.mxu0 %v412
  %638 = vmatprep.subr.bf16.mxu0 %v421
  %639 = vmatpush1.bf16.msra.mxu0 %v420
  %640 = vmatprep.subr.bf16.mxu0 %v429
  %641 = vmatpush1.bf16.msra.mxu0 %v428
  %642 = vmatprep.subr.bf16.mxu0 %v437
  %643 = vmatpush1.bf16.msra.mxu0 %v436
  %644 = vmatprep.subr.bf16.mxu0 %v445
  %645 = vmatpush1.bf16.msra.mxu0 %v444
  %646 = vmatprep.subr.bf16.mxu0 %v453
  %647 = vmatpush1.bf16.msra.mxu0 %v452
  %648 = vmatprep.subr.bf16.mxu0 %v461
  %649 = vmatpush1.bf16.msra.mxu0 %v460
  %650 = vmatprep.subr.bf16.mxu0 0
  %651 = vmatpush1.bf16.msra.mxu0 0
  %652 = vmatprep.subr.bf16.mxu0 0
  %653 = vmatpush1.bf16.msra.mxu0 0
  %654 = vmatprep.subr.bf16.mxu0 0
  %655 = vmatpush1.bf16.msra.mxu0 0
  %656 = vmatprep.subr.bf16.mxu0 0
  %657 = vmatpush1.bf16.msra.mxu0 0
  %658 = vmatprep.subr.bf16.mxu0 0
  %659 = vmatpush1.bf16.msra.mxu0 0
  %660 = vmatprep.subr.bf16.mxu0 0
  %661 = vmatpush1.bf16.msra.mxu0 0
  %662 = vmatprep.subr.bf16.mxu0 0
  %663 = vmatpush1.bf16.msra.mxu0 0
  %664 = vmatprep.subr.bf16.mxu0 0
  %665 = vmatpush1.bf16.msra.mxu0 0
  %666 = vmatprep.mubr.bf16.mxu0 0
  %667 = vmatmul.mubr.bf16.gmra.mrb[0].mxu0 %v100
  %v668 = vpop.f32.mrb[0].mxu0
  %v669 = vadd.f32 %v187, %v668
  %v670 = vpop.f32.mrb[0].mxu0
  %v671 = vadd.f32 %v191, %v670
  %v672 = vpop.f32.mrb[0].mxu0
  %v673 = vadd.f32 %v187, %v672
  %v674 = vpop.f32.mrb[0].mxu0
  %v675 = vadd.f32 %v191, %v674
  %676 = vmatprep.mubr.bf16.mxu0 0
  %677 = vmatmul.mubr.bf16.gmra.mrb[0].mxu0 %v101
  %v678 = vpop.f32.mrb[0].mxu0
  %v679 = vadd.f32 %v187, %v678
  %v680 = vpop.f32.mrb[0].mxu0
  %v681 = vadd.f32 %v191, %v680
  %v682 = vpop.f32.mrb[0].mxu0
  %v683 = vadd.f32 %v187, %v682
  %v684 = vpop.f32.mrb[0].mxu0
  %v685 = vadd.f32 %v191, %v684
  %686 = vdwg.mxu0
  %687 = vmatprep.subr.bf16.mxu0 %v407
  %688 = vmatpush1.bf16.msra.mxu0 %v406
  %689 = vmatprep.subr.bf16.mxu0 %v415
  %690 = vmatpush1.bf16.msra.mxu0 %v414
  %691 = vmatprep.subr.bf16.mxu0 %v423
  %692 = vmatpush1.bf16.msra.mxu0 %v422
  %693 = vmatprep.subr.bf16.mxu0 %v431
  %694 = vmatpush1.bf16.msra.mxu0 %v430
  %695 = vmatprep.subr.bf16.mxu0 %v439
  %696 = vmatpush1.bf16.msra.mxu0 %v438
  %697 = vmatprep.subr.bf16.mxu0 %v447
  %698 = vmatpush1.bf16.msra.mxu0 %v446
  %699 = vmatprep.subr.bf16.mxu0 %v455
  %700 = vmatpush1.bf16.msra.mxu0 %v454
  %701 = vmatprep.subr.bf16.mxu0 %v463
  %702 = vmatpush1.bf16.msra.mxu0 %v462
  %703 = vmatprep.subr.bf16.mxu0 0
  %704 = vmatpush1.bf16.msra.mxu0 0
  %705 = vmatprep.subr.bf16.mxu0 0
  %706 = vmatpush1.bf16.msra.mxu0 0
  %707 = vmatprep.subr.bf16.mxu0 0
  %708 = vmatpush1.bf16.msra.mxu0 0
  %709 = vmatprep.subr.bf16.mxu0 0
  %710 = vmatpush1.bf16.msra.mxu0 0
  %711 = vmatprep.subr.bf16.mxu0 0
  %712 = vmatpush1.bf16.msra.mxu0 0
  %713 = vmatprep.subr.bf16.mxu0 0
  %714 = vmatpush1.bf16.msra.mxu0 0
  %715 = vmatprep.subr.bf16.mxu0 0
  %716 = vmatpush1.bf16.msra.mxu0 0
  %717 = vmatprep.subr.bf16.mxu0 0
  %718 = vmatpush1.bf16.msra.mxu0 0
  %719 = vmatprep.mubr.bf16.mxu0 0
  %720 = vmatmul.mubr.bf16.gmra.mrb[0].mxu0 %v100
  %v721 = vpop.f32.mrb[0].mxu0
  %v722 = vadd.f32 %v195, %v721
  %v723 = vpop.f32.mrb[0].mxu0
  %v724 = vadd.f32 %v199, %v723
  %v725 = vpop.f32.mrb[0].mxu0
  %v726 = vadd.f32 %v195, %v725
  %v727 = vpop.f32.mrb[0].mxu0
  %v728 = vadd.f32 %v199, %v727
  %729 = vmatprep.mubr.bf16.mxu0 0
  %730 = vmatmul.mubr.bf16.gmra.mrb[0].mxu0 %v101
  %v731 = vpop.f32.mrb[0].mxu0
  %v732 = vadd.f32 %v195, %v731
  %v733 = vpop.f32.mrb[0].mxu0
  %v734 = vadd.f32 %v199, %v733
  %v735 = vpop.f32.mrb[0].mxu0
  %v736 = vadd.f32 %v195, %v735
  %v737 = vpop.f32.mrb[0].mxu0
  %v738 = vadd.f32 %v199, %v737
  %739 = vdwg.mxu0
  %740 = vst [vmem:[%s5] sm:$0xff] %v563
  %741 = vst [vmem:[%s5 + $0x8] sm:$0xff] %v565
  %742 = vst [vmem:[%s5 + $0x10] sm:$0xff] %v616
  %743 = vst [vmem:[%s5 + $0x18] sm:$0xff] %v618
  %744 = vst [vmem:[%s5 + $0x20] sm:$0xff] %v669
  %745 = vst [vmem:[%s5 + $0x28] sm:$0xff] %v671
  %746 = vst [vmem:[%s5 + $0x30] sm:$0xff] %v722
  %747 = vst [vmem:[%s5 + $0x38] sm:$0xff] %v724
  %748 = vst [vmem:[%s5 + $0x40] sm:$0xff] %v567
  %749 = vst [vmem:[%s5 + $0x48] sm:$0xff] %v569
  %750 = vst [vmem:[%s5 + $0x50] sm:$0xff] %v620
  %751 = vst [vmem:[%s5 + $0x58] sm:$0xff] %v622
  %752 = vst [vmem:[%s5 + $0x60] sm:$0xff] %v673
  %753 = vst [vmem:[%s5 + $0x68] sm:$0xff] %v675
  %754 = vst [vmem:[%s5 + $0x70] sm:$0xff] %v726
  %755 = vst [vmem:[%s5 + $0x78] sm:$0xff] %v728
  %756 = vst [vmem:[%s5 + $0x80] sm:$0xff] %v573
  %757 = vst [vmem:[%s5 + $0x88] sm:$0xff] %v575
  %758 = vst [vmem:[%s5 + $0x90] sm:$0xff] %v626
  %759 = vst [vmem:[%s5 + $0x98] sm:$0xff] %v628
  %760 = vst [vmem:[%s5 + $0xa0] sm:$0xff] %v679
  %761 = vst [vmem:[%s5 + $0xa8] sm:$0xff] %v681
  %762 = vst [vmem:[%s5 + $0xb0] sm:$0xff] %v732
  %763 = vst [vmem:[%s5 + $0xb8] sm:$0xff] %v734
  %764 = vst [vmem:[%s5 + $0xc0] sm:$0xff] %v577
  %765 = vst [vmem:[%s5 + $0xc8] sm:$0xff] %v579
  %766 = vst [vmem:[%s5 + $0xd0] sm:$0xff] %v630
  %767 = vst [vmem:[%s5 + $0xd8] sm:$0xff] %v632
  %768 = vst [vmem:[%s5 + $0xe0] sm:$0xff] %v683
  %769 = vst [vmem:[%s5 + $0xe8] sm:$0xff] %v685
  %770 = vst [vmem:[%s5 + $0xf0] sm:$0xff] %v736
  %771 = vst [vmem:[%s5 + $0xf8] sm:$0xff] %v738
  // Predicated region
  $region26: #{gpt_forward.17} parent=0 // pred_check
    _
  $region27: #{gpt_forward.17} parent=0 // pred_check_branch
    %773 = sbr.rel (0) target = $region29
  $region28: #{gpt_forward.17} parent=0 // pred_region
    _
  $region29: #{gpt_forward.17} parent=0 // pred_fallthru
    _
  // Predicated region
  $region30: #{gpt_forward.17} parent=0 // pred_check
    _
  $region31: #{gpt_forward.17} parent=0 // pred_check_branch
    %775 = sbr.rel (0) target = $region33
  $region32: #{gpt_forward.17} parent=0 // pred_region
    _
  $region33: #{gpt_forward.17} parent=0 // pred_fallthru
    _

</llo_original>
